<compile_context>
chip_gen: v6e
topology: v6e:2x2x1
jax: 0.10.0
libtpu: 0.0.40
codegen_flags: <defaults>
</compile_context>

<pallas_src>
import functools
import math

import numpy as np

import jax
import jax.numpy as jnp
from jax.experimental import pallas as pl
from jax.experimental.pallas import tpu as pltpu


# ---------------------------------------------------------------------------
# Fixed Filter1D taps / band matrices (host-built constants, never rebuilt
# inside the kernel)
# ---------------------------------------------------------------------------

def _tri_filter(s):
    """Normalized triangular low-pass of width 2*s+1 (stand-in taps)."""
    k = np.arange(2 * s + 1)
    f = (s + 1 - np.abs(k - s)).astype(np.float64)
    return f / f.sum()


def _filter1d_matrix(l_in, s, transpose):
    """Filter1D band matrix built once on the host with numpy.

    transpose=False: (x @ M)[c, j] = sum_k taps[k] * x_zp[c, j*s + k - s]   (stride-s conv)
    transpose=True : (x @ M)[c, m] = s * sum_{j,k: m=j*s+k-s} taps[k] * x[c, j]
    """
    taps = _tri_filter(s)
    if not transpose:
        l_out = l_in // s
        m = np.zeros((l_in, l_out), np.float32)
        for j in range(l_out):
            for k, t in enumerate(taps):
                i = j * s + k - s
                if 0 <= i < l_in:
                    m[i, j] += t
    else:
        l_out = l_in * s
        gain = float(s)  # TODO(synk): verify gain vs. real Filter1D normalization
        m = np.zeros((l_in, l_out), np.float32)
        for j in range(l_in):
            for k, t in enumerate(taps):
                o = j * s + k - s
                if 0 <= o < l_out:
                    m[j, o] += gain * t
    return jnp.asarray(m)


# ---------------------------------------------------------------------------
# In-kernel helpers
# ---------------------------------------------------------------------------

def _edge_masks(cache, L):
    """(1, L) float masks zeroing the wrapped lane of a +/-1 pltpu.roll.
    Memoized per L so each distinct level length builds its iota/compare once."""
    if L not in cache:
        lane = jax.lax.broadcasted_iota(jnp.int32, (1, L), 1)
        cache[L] = ((lane > 0).astype(jnp.float32),
                    (lane < L - 1).astype(jnp.float32))
    return cache[L]


def _smooth3(z, masks):
    """Depthwise [0.25, 0.5, 0.25] filter along lanes with zero-padded edges
    (== Filter1D(C, 1, transpose=False)).  XLU lane rotations, no matmul."""
    first_ok, last_ok = masks
    L = z.shape[-1]
    z_prev = pltpu.roll(z, 1, axis=1) * first_ok          # z[:, j-1]
    z_next = pltpu.roll(z, L - 1, axis=1) * last_ok       # z[:, j+1]
    return 0.25 * z_prev + 0.5 * z + 0.25 * z_next


def _block(x, w1, b1, gnw, gnb, w2, b2, masks, eps=1e-5):
    """block: Conv1d(D->2D,1) -> GroupNorm(1,2D) -> SiLU -> Filter1D(2D,1) -> Conv1d(2D->D,1)."""
    y = jnp.dot(w1, x, preferred_element_type=jnp.float32) + b1           # (2D, L)
    inv_n = 1.0 / y.size
    mean = jnp.sum(y) * inv_n                                             # one-pass stats
    var = jnp.sum(y * y) * inv_n - mean * mean                            # E[y^2] - E[y]^2, f32
    yn = (y - mean) * (jax.lax.rsqrt(var + eps) * gnw) + gnb
    z = yn * jax.nn.sigmoid(yn)                                           # SiLU
    return jnp.dot(w2, _smooth3(z, masks), preferred_element_type=jnp.float32) + b2


# ---------------------------------------------------------------------------
# Fully fused UNet kernel (one grid step == one sample's full forward pass)
# ---------------------------------------------------------------------------

def _make_unet_kernel(n_levels):
    n = n_levels

    def kernel(*refs):
        x_ref, w1_ref, vec_ref, w2_ref, b2_ref, midw_ref, midb_ref = refs[:7]
        down_refs = refs[7:7 + n]
        up_refs = refs[7 + n:7 + 2 * n]
        o_ref = refs[7 + 2 * n]

        mask_cache = {}

        def block(v, idx):
            vec = vec_ref[idx]                                  # (C, 3): b1 | gn_w | gn_b
            return _block(v, w1_ref[idx], vec[:, 0:1], vec[:, 1:2], vec[:, 2:3],
                          w2_ref[idx], b2_ref[idx],
                          _edge_masks(mask_cache, v.shape[-1]))

        x = x_ref[0]                                            # (D, Lp)

        # ---- encoder:  h = pre_i(x);  x = down_i(x - h) ----
        hs = []
        for i in range(n):
            h = block(x, i)
            hs.append(h)                                        # skip stays in VMEM/vregs
            x = jnp.dot(x - h, down_refs[i][...],
                        preferred_element_type=jnp.float32)

        # ---- middle: pointwise Conv1d(D, D, 1) + SiLU stand-in ----
        # TODO(synk): the real `middle` is an arbitrary user-supplied nn.Module.
        y = jnp.dot(midw_ref[...], x, preferred_element_type=jnp.float32) + midb_ref[...]
        x = y * jax.nn.sigmoid(y)

        # ---- decoder:  x = post_i(up_i(x) + h_i) ----
        for i in reversed(range(n)):
            xu = jnp.dot(x, up_refs[i][...], preferred_element_type=jnp.float32)
            x = block(xu + hs.pop(), n + i)

        o_ref[0] = x.astype(o_ref.dtype)

    return kernel


# ---------------------------------------------------------------------------
# Cost estimate (advisory, lets XLA schedule around the custom call)
# ---------------------------------------------------------------------------

def _cost_estimate(B, D, scales, Lp, io_bytes, const_arrays):
    C = 2 * D
    flops, trans = 0, 0

    def block_cost(l):
        return 2 * 2 * C * D * l + 14 * C * l, C * l

    L = Lp
    for s in scales:
        f, t = block_cost(L); flops += f; trans += t
        flops += 2 * D * L * (L // s)
        L //= s
    flops += 2 * D * D * L + 4 * D * L
    trans += D * L
    for i in reversed(range(len(scales))):
        s = scales[i]
        flops += 2 * D * L * (L * s)
        L *= s
        f, t = block_cost(L); flops += f; trans += t

    const_bytes = sum(int(np.prod(a.shape)) * int(a.dtype.itemsize) for a in const_arrays)
    return pl.CostEstimate(flops=int(B * flops),
                           transcendentals=int(B * trans),
                           bytes_accessed=int(io_bytes + const_bytes))


# ---------------------------------------------------------------------------
# Parameters (deterministic, synthetic)
# ---------------------------------------------------------------------------

def init_params(key, dim, scales):
    C = 2 * dim

    def block_params(k):
        k1, k2 = jax.random.split(k)
        return dict(
            w1=jax.random.normal(k1, (C, dim), jnp.float32) / math.sqrt(dim),
            b1=jnp.zeros((C, 1), jnp.float32),
            gnw=jnp.ones((C, 1), jnp.float32),    # GroupNorm affine weight
            gnb=jnp.zeros((C, 1), jnp.float32),   # GroupNorm affine bias
            w2=jax.random.normal(k2, (dim, C), jnp.float32) / math.sqrt(C),
            b2=jnp.zeros((dim, 1), jnp.float32),
        )

    keys = jax.random.split(key, 2 * len(scales) + 1)
    pre = [block_params(keys[i]) for i in range(len(scales))]
    post = [block_params(keys[len(scales) + i]) for i in range(len(scales))]
    mid_w = jax.random.normal(keys[-1], (dim, dim), jnp.float32) / math.sqrt(dim)
    mid_b = jnp.zeros((dim, 1), jnp.float32)
    return dict(pre=pre, post=post, mid_w=mid_w, mid_b=mid_b)


# ---------------------------------------------------------------------------
# UNet forward: pad -> single fused pallas_call -> unpad
# ---------------------------------------------------------------------------

def unet_forward(x, params, scales):
    n = len(scales)
    chunk = math.prod(scales)
    B, D, L0 = x.shape
    C = 2 * D

    # pad(x, chunk_size)
    p = (-L0) % chunk
    if p > 0:
        x = jnp.pad(x, ((0, 0), (0, 0), (0, p)))
    Lp = x.shape[-1]

    # Stack block params across levels (pre[0..n-1] then post[0..n-1]) and pack
    # the per-channel vectors (b1, gn_w, gn_b) into one (2n, C, 3) array.
    blocks = list(params["pre"]) + list(params["post"])
    w1_all = jnp.stack([b["w1"] for b in blocks])                         # (2n, C, D)
    vec_all = jnp.stack([jnp.concatenate([b["b1"], b["gnw"], b["gnb"]], axis=1)
                         for b in blocks])                                # (2n, C, 3)
    w2_all = jnp.stack([b["w2"] for b in blocks])                         # (2n, D, C)
    b2_all = jnp.stack([b["b2"] for b in blocks])                         # (2n, D, 1)

    # Filter1D band matrices, built once on the host.
    down_mats, up_mats, L = [], [], Lp
    for s in scales:
        down_mats.append(_filter1d_matrix(L, s, transpose=False))        # (L, L//s)
        up_mats.append(_filter1d_matrix(L // s, s, transpose=True))      # (L//s, L)
        L //= s

    consts = [w1_all, vec_all, w2_all, b2_all,
              params["mid_w"], params["mid_b"]] + down_mats + up_mats

    batched_spec = pl.BlockSpec((1, D, Lp), lambda b: (b, 0, 0))
    const_specs = [pl.BlockSpec(a.shape, (lambda b, _nd=a.ndim: (0,) * _nd))
                   for a in consts]

    io_bytes = 2 * B * D * Lp * 4
    cost = _cost_estimate(B, D, scales, Lp, io_bytes, consts)

    out = pl.pallas_call(
        _make_unet_kernel(n),
        out_shape=jax.ShapeDtypeStruct((B, D, Lp), x.dtype),
        grid=(B,),
        in_specs=[batched_spec] + const_specs,
        out_specs=batched_spec,
        compiler_params=pltpu.CompilerParams(
            dimension_semantics=("parallel",),       # both TCs on v7x
            vmem_limit_bytes=32 * 1024 * 1024,       # safe on v5e/v6e/v7x; working set ~3 MB
        ),
        cost_estimate=cost,
    )(x, *consts)

    # unpad
    if p > 0:
        out = out[..., :-p]
    return out


# ---------------------------------------------------------------------------

if __name__ == "__main__":
    dim = 8
    scales = (2, 2)          # chunk_size = 4
    B, L = 2, 510            # pads to 512 -> per-level L = 512, 256, 128 (lane-dense)

    key = jax.random.PRNGKey(0)
    kx, kp = jax.random.split(key)
    x = jax.random.normal(kx, (B, dim, L), jnp.float32)
    params = init_params(kp, dim, scales)

    fwd = jax.jit(unet_forward, static_argnames=("scales",))
    out = jax.block_until_ready(fwd(x, params, scales=scales))

    assert out.shape == (B, dim, L), out.shape
    assert bool(jnp.all(jnp.isfinite(out)))
    print("KERNEL_OK")
</pallas_src>

<mosaic_0001>
module attributes {stable_mosaic.version = 11 : i64} {
  func.func @kernel(%arg0: i32, %arg1: memref<1x8x512xf32, #tpu.memory_space<vmem>>, %arg2: memref<4x16x8xf32, #tpu.memory_space<vmem>>, %arg3: memref<4x16x3xf32, #tpu.memory_space<vmem>>, %arg4: memref<4x8x16xf32, #tpu.memory_space<vmem>>, %arg5: memref<4x8x1xf32, #tpu.memory_space<vmem>>, %arg6: memref<8x8xf32, #tpu.memory_space<vmem>>, %arg7: memref<8x1xf32, #tpu.memory_space<vmem>>, %arg8: memref<512x256xf32, #tpu.memory_space<vmem>>, %arg9: memref<256x128xf32, #tpu.memory_space<vmem>>, %arg10: memref<256x512xf32, #tpu.memory_space<vmem>>, %arg11: memref<128x256xf32, #tpu.memory_space<vmem>>, %arg12: memref<1x8x512xf32, #tpu.memory_space<vmem>>) attributes {dimension_semantics = [#tpu.dimension_semantics<parallel>], iteration_bounds = array<i64: 2>, scalar_prefetch = 0 : i64, scratch_operands = 0 : i64, tpu.core_type = #tpu.core_type<tc>, window_params = [{transform_indices = @transform_0, window_bounds = array<i64: 1, 8, 512>}, {pipeline_mode = #tpu.pipeline_mode<synchronous>, transform_indices = @transform_1, window_bounds = array<i64: 4, 16, 8>}, {pipeline_mode = #tpu.pipeline_mode<synchronous>, transform_indices = @transform_2, window_bounds = array<i64: 4, 16, 3>}, {pipeline_mode = #tpu.pipeline_mode<synchronous>, transform_indices = @transform_3, window_bounds = array<i64: 4, 8, 16>}, {pipeline_mode = #tpu.pipeline_mode<synchronous>, transform_indices = @transform_4, window_bounds = array<i64: 4, 8, 1>}, {pipeline_mode = #tpu.pipeline_mode<synchronous>, transform_indices = @transform_5, window_bounds = array<i64: 8, 8>}, {pipeline_mode = #tpu.pipeline_mode<synchronous>, transform_indices = @transform_6, window_bounds = array<i64: 8, 1>}, {pipeline_mode = #tpu.pipeline_mode<synchronous>, transform_indices = @transform_7, window_bounds = array<i64: 512, 256>}, {pipeline_mode = #tpu.pipeline_mode<synchronous>, transform_indices = @transform_8, window_bounds = array<i64: 256, 128>}, {pipeline_mode = #tpu.pipeline_mode<synchronous>, transform_indices = @transform_9, window_bounds = array<i64: 256, 512>}, {pipeline_mode = #tpu.pipeline_mode<synchronous>, transform_indices = @transform_10, window_bounds = array<i64: 128, 256>}, {transform_indices = @transform_11, window_bounds = array<i64: 1, 8, 512>}]} {
    %c0 = arith.constant 0 : index
    %c0_0 = arith.constant 0 : index
    %c0_1 = arith.constant 0 : index
    %0 = vector.load %arg1[%c0, %c0_0, %c0_1] : memref<1x8x512xf32, #tpu.memory_space<vmem>>, vector<1x8x512xf32>
    %1 = vector.shape_cast %0 : vector<1x8x512xf32> to vector<8x512xf32>
    %c0_2 = arith.constant 0 : index
    %c0_3 = arith.constant 0 : index
    %c0_4 = arith.constant 0 : index
    %2 = vector.load %arg3[%c0_2, %c0_3, %c0_4] : memref<4x16x3xf32, #tpu.memory_space<vmem>>, vector<1x16x3xf32>
    %3 = vector.shape_cast %2 : vector<1x16x3xf32> to vector<16x3xf32>
    %c0_5 = arith.constant 0 : index
    %c0_6 = arith.constant 0 : index
    %c0_7 = arith.constant 0 : index
    %4 = vector.load %arg2[%c0_5, %c0_6, %c0_7] : memref<4x16x8xf32, #tpu.memory_space<vmem>>, vector<1x16x8xf32>
    %5 = vector.shape_cast %4 : vector<1x16x8xf32> to vector<16x8xf32>
    %6 = vector.extract_strided_slice %3 {offsets = [0, 0], sizes = [16, 1], strides = [1, 1]} : vector<16x3xf32> to vector<16x1xf32>
    %7 = vector.extract_strided_slice %3 {offsets = [0, 1], sizes = [16, 1], strides = [1, 1]} : vector<16x3xf32> to vector<16x1xf32>
    %8 = vector.extract_strided_slice %3 {offsets = [0, 2], sizes = [16, 1], strides = [1, 1]} : vector<16x3xf32> to vector<16x1xf32>
    %c0_8 = arith.constant 0 : index
    %c0_9 = arith.constant 0 : index
    %c0_10 = arith.constant 0 : index
    %9 = vector.load %arg4[%c0_8, %c0_9, %c0_10] : memref<4x8x16xf32, #tpu.memory_space<vmem>>, vector<1x8x16xf32>
    %10 = vector.shape_cast %9 : vector<1x8x16xf32> to vector<8x16xf32>
    %c0_11 = arith.constant 0 : index
    %c0_12 = arith.constant 0 : index
    %c0_13 = arith.constant 0 : index
    %11 = vector.load %arg5[%c0_11, %c0_12, %c0_13] : memref<4x8x1xf32, #tpu.memory_space<vmem>>, vector<1x8x1xf32>
    %12 = vector.shape_cast %11 : vector<1x8x1xf32> to vector<8x1xf32>
    %13 = tpu.iota {dimensions = array<i32: 1>} : vector<1x512xi32>
    %c0_i32 = arith.constant 0 : i32
    %14 = vector.broadcast %c0_i32 : i32 to vector<1x512xi32>
    %15 = arith.cmpi sgt, %13, %14 : vector<1x512xi32>
    %16 = arith.extui %15 : vector<1x512xi1> to vector<1x512xi32>
    %17 = arith.sitofp %16 : vector<1x512xi32> to vector<1x512xf32>
    %c511_i32 = arith.constant 511 : i32
    %18 = vector.broadcast %c511_i32 : i32 to vector<1x512xi32>
    %19 = arith.cmpi slt, %13, %18 : vector<1x512xi32>
    %20 = arith.extui %19 : vector<1x512xi1> to vector<1x512xi32>
    %21 = arith.sitofp %20 : vector<1x512xi32> to vector<1x512xf32>
    %cst = arith.constant dense<0.000000e+00> : vector<16x512xf32>
    %22 = tpu.matmul %5, %1, %cst {dimension_numbers = #tpu.dot_dimension_numbers<[1], [0], [0], [1], [0, 0, 1, 1], [], []>} : vector<16x8xf32>, vector<8x512xf32>, vector<16x512xf32> -> vector<16x512xf32>
    %23 = vector.broadcast %6 : vector<16x1xf32> to vector<16x512xf32>
    %24 = arith.addf %22, %23 : vector<16x512xf32>
    %25 = vector.shape_cast %24 : vector<16x512xf32> to vector<1x16x512xf32>
    %cst_14 = arith.constant dense<0.000000e+00> : vector<1xf32>
    %26 = vector.multi_reduction <add>, %25, %cst_14 [1, 2] : vector<1x16x512xf32> to vector<1xf32>
    %27 = vector.shape_cast %26 : vector<1xf32> to vector<1x1x1xf32>
    %28 = vector.extract %27[0, 0, 0] : f32 from vector<1x1x1xf32>
    %cst_15 = arith.constant 1.22070313E-4 : f32
    %29 = arith.mulf %28, %cst_15 : f32
    %30 = arith.mulf %24, %24 : vector<16x512xf32>
    %31 = vector.shape_cast %30 : vector<16x512xf32> to vector<1x16x512xf32>
    %cst_16 = arith.constant dense<0.000000e+00> : vector<1xf32>
    %32 = vector.multi_reduction <add>, %31, %cst_16 [1, 2] : vector<1x16x512xf32> to vector<1xf32>
    %33 = vector.shape_cast %32 : vector<1xf32> to vector<1x1x1xf32>
    %34 = vector.extract %33[0, 0, 0] : f32 from vector<1x1x1xf32>
    %cst_17 = arith.constant 1.22070313E-4 : f32
    %35 = arith.mulf %34, %cst_17 : f32
    %36 = arith.mulf %29, %29 : f32
    %37 = arith.subf %35, %36 : f32
    %38 = vector.broadcast %29 : f32 to vector<16x512xf32>
    %39 = arith.subf %24, %38 : vector<16x512xf32>
    %cst_18 = arith.constant 9.99999974E-6 : f32
    %40 = arith.addf %37, %cst_18 : f32
    %41 = math.rsqrt %40 : f32
    %42 = vector.broadcast %41 : f32 to vector<16x1xf32>
    %43 = arith.mulf %42, %7 : vector<16x1xf32>
    %44 = vector.broadcast %43 : vector<16x1xf32> to vector<16x512xf32>
    %45 = arith.mulf %39, %44 : vector<16x512xf32>
    %46 = vector.broadcast %8 : vector<16x1xf32> to vector<16x512xf32>
    %47 = arith.addf %45, %46 : vector<16x512xf32>
    %48 = arith.negf %47 : vector<16x512xf32>
    %49 = math.exp %48 : vector<16x512xf32>
    %cst_19 = arith.constant 1.000000e+00 : f32
    %50 = vector.broadcast %cst_19 : f32 to vector<16x512xf32>
    %51 = arith.addf %50, %49 : vector<16x512xf32>
    %52 = arith.divf %50, %51 : vector<16x512xf32>
    %53 = arith.mulf %47, %52 : vector<16x512xf32>
    %c1_i32 = arith.constant 1 : i32
    %54 = tpu.dynamic_rotate %53 by %c1_i32 dim 1 : vector<16x512xf32>, i32 -> vector<16x512xf32>
    %55 = vector.broadcast %17 : vector<1x512xf32> to vector<16x512xf32>
    %56 = arith.mulf %54, %55 : vector<16x512xf32>
    %c511_i32_20 = arith.constant 511 : i32
    %57 = tpu.dynamic_rotate %53 by %c511_i32_20 dim 1 : vector<16x512xf32>, i32 -> vector<16x512xf32>
    %58 = vector.broadcast %21 : vector<1x512xf32> to vector<16x512xf32>
    %59 = arith.mulf %57, %58 : vector<16x512xf32>
    %cst_21 = arith.constant 2.500000e-01 : f32
    %60 = vector.broadcast %cst_21 : f32 to vector<16x512xf32>
    %61 = arith.mulf %60, %56 : vector<16x512xf32>
    %cst_22 = arith.constant 5.000000e-01 : f32
    %62 = vector.broadcast %cst_22 : f32 to vector<16x512xf32>
    %63 = arith.mulf %62, %53 : vector<16x512xf32>
    %64 = arith.addf %61, %63 : vector<16x512xf32>
    %cst_23 = arith.constant 2.500000e-01 : f32
    %65 = vector.broadcast %cst_23 : f32 to vector<16x512xf32>
    %66 = arith.mulf %65, %59 : vector<16x512xf32>
    %67 = arith.addf %64, %66 : vector<16x512xf32>
    %cst_24 = arith.constant dense<0.000000e+00> : vector<8x512xf32>
    %68 = tpu.matmul %10, %67, %cst_24 {dimension_numbers = #tpu.dot_dimension_numbers<[1], [0], [0], [1], [0, 0, 1, 1], [], []>} : vector<8x16xf32>, vector<16x512xf32>, vector<8x512xf32> -> vector<8x512xf32>
    %69 = vector.broadcast %12 : vector<8x1xf32> to vector<8x512xf32>
    %70 = arith.addf %68, %69 : vector<8x512xf32>
    %71 = arith.subf %1, %70 : vector<8x512xf32>
    %c0_25 = arith.constant 0 : index
    %c0_26 = arith.constant 0 : index
    %72 = vector.load %arg8[%c0_25, %c0_26] : memref<512x256xf32, #tpu.memory_space<vmem>>, vector<512x256xf32>
    %cst_27 = arith.constant dense<0.000000e+00> : vector<8x256xf32>
    %73 = tpu.matmul %71, %72, %cst_27 {dimension_numbers = #tpu.dot_dimension_numbers<[1], [0], [0], [1], [0, 0, 1, 1], [], []>} : vector<8x512xf32>, vector<512x256xf32>, vector<8x256xf32> -> vector<8x256xf32>
    %c1 = arith.constant 1 : index
    %c0_28 = arith.constant 0 : index
    %c0_29 = arith.constant 0 : index
    %74 = vector.load %arg3[%c1, %c0_28, %c0_29] : memref<4x16x3xf32, #tpu.memory_space<vmem>>, vector<1x16x3xf32>
    %75 = vector.shape_cast %74 : vector<1x16x3xf32> to vector<16x3xf32>
    %c1_30 = arith.constant 1 : index
    %c0_31 = arith.constant 0 : index
    %c0_32 = arith.constant 0 : index
    %76 = vector.load %arg2[%c1_30, %c0_31, %c0_32] : memref<4x16x8xf32, #tpu.memory_space<vmem>>, vector<1x16x8xf32>
    %77 = vector.shape_cast %76 : vector<1x16x8xf32> to vector<16x8xf32>
    %78 = vector.extract_strided_slice %75 {offsets = [0, 0], sizes = [16, 1], strides = [1, 1]} : vector<16x3xf32> to vector<16x1xf32>
    %79 = vector.extract_strided_slice %75 {offsets = [0, 1], sizes = [16, 1], strides = [1, 1]} : vector<16x3xf32> to vector<16x1xf32>
    %80 = vector.extract_strided_slice %75 {offsets = [0, 2], sizes = [16, 1], strides = [1, 1]} : vector<16x3xf32> to vector<16x1xf32>
    %c1_33 = arith.constant 1 : index
    %c0_34 = arith.constant 0 : index
    %c0_35 = arith.constant 0 : index
    %81 = vector.load %arg4[%c1_33, %c0_34, %c0_35] : memref<4x8x16xf32, #tpu.memory_space<vmem>>, vector<1x8x16xf32>
    %82 = vector.shape_cast %81 : vector<1x8x16xf32> to vector<8x16xf32>
    %c1_36 = arith.constant 1 : index
    %c0_37 = arith.constant 0 : index
    %c0_38 = arith.constant 0 : index
    %83 = vector.load %arg5[%c1_36, %c0_37, %c0_38] : memref<4x8x1xf32, #tpu.memory_space<vmem>>, vector<1x8x1xf32>
    %84 = vector.shape_cast %83 : vector<1x8x1xf32> to vector<8x1xf32>
    %85 = tpu.iota {dimensions = array<i32: 1>} : vector<1x256xi32>
    %c0_i32_39 = arith.constant 0 : i32
    %86 = vector.broadcast %c0_i32_39 : i32 to vector<1x256xi32>
    %87 = arith.cmpi sgt, %85, %86 : vector<1x256xi32>
    %88 = arith.extui %87 : vector<1x256xi1> to vector<1x256xi32>
    %89 = arith.sitofp %88 : vector<1x256xi32> to vector<1x256xf32>
    %c255_i32 = arith.constant 255 : i32
    %90 = vector.broadcast %c255_i32 : i32 to vector<1x256xi32>
    %91 = arith.cmpi slt, %85, %90 : vector<1x256xi32>
    %92 = arith.extui %91 : vector<1x256xi1> to vector<1x256xi32>
    %93 = arith.sitofp %92 : vector<1x256xi32> to vector<1x256xf32>
    %cst_40 = arith.constant dense<0.000000e+00> : vector<16x256xf32>
    %94 = tpu.matmul %77, %73, %cst_40 {dimension_numbers = #tpu.dot_dimension_numbers<[1], [0], [0], [1], [0, 0, 1, 1], [], []>} : vector<16x8xf32>, vector<8x256xf32>, vector<16x256xf32> -> vector<16x256xf32>
    %95 = vector.broadcast %78 : vector<16x1xf32> to vector<16x256xf32>
    %96 = arith.addf %94, %95 : vector<16x256xf32>
    %97 = vector.shape_cast %96 : vector<16x256xf32> to vector<1x16x256xf32>
    %cst_41 = arith.constant dense<0.000000e+00> : vector<1xf32>
    %98 = vector.multi_reduction <add>, %97, %cst_41 [1, 2] : vector<1x16x256xf32> to vector<1xf32>
    %99 = vector.shape_cast %98 : vector<1xf32> to vector<1x1x1xf32>
    %100 = vector.extract %99[0, 0, 0] : f32 from vector<1x1x1xf32>
    %cst_42 = arith.constant 2.44140625E-4 : f32
    %101 = arith.mulf %100, %cst_42 : f32
    %102 = arith.mulf %96, %96 : vector<16x256xf32>
    %103 = vector.shape_cast %102 : vector<16x256xf32> to vector<1x16x256xf32>
    %cst_43 = arith.constant dense<0.000000e+00> : vector<1xf32>
    %104 = vector.multi_reduction <add>, %103, %cst_43 [1, 2] : vector<1x16x256xf32> to vector<1xf32>
    %105 = vector.shape_cast %104 : vector<1xf32> to vector<1x1x1xf32>
    %106 = vector.extract %105[0, 0, 0] : f32 from vector<1x1x1xf32>
    %cst_44 = arith.constant 2.44140625E-4 : f32
    %107 = arith.mulf %106, %cst_44 : f32
    %108 = arith.mulf %101, %101 : f32
    %109 = arith.subf %107, %108 : f32
    %110 = vector.broadcast %101 : f32 to vector<16x256xf32>
    %111 = arith.subf %96, %110 : vector<16x256xf32>
    %cst_45 = arith.constant 9.99999974E-6 : f32
    %112 = arith.addf %109, %cst_45 : f32
    %113 = math.rsqrt %112 : f32
    %114 = vector.broadcast %113 : f32 to vector<16x1xf32>
    %115 = arith.mulf %114, %79 : vector<16x1xf32>
    %116 = vector.broadcast %115 : vector<16x1xf32> to vector<16x256xf32>
    %117 = arith.mulf %111, %116 : vector<16x256xf32>
    %118 = vector.broadcast %80 : vector<16x1xf32> to vector<16x256xf32>
    %119 = arith.addf %117, %118 : vector<16x256xf32>
    %120 = arith.negf %119 : vector<16x256xf32>
    %121 = math.exp %120 : vector<16x256xf32>
    %cst_46 = arith.constant 1.000000e+00 : f32
    %122 = vector.broadcast %cst_46 : f32 to vector<16x256xf32>
    %123 = arith.addf %122, %121 : vector<16x256xf32>
    %124 = arith.divf %122, %123 : vector<16x256xf32>
    %125 = arith.mulf %119, %124 : vector<16x256xf32>
    %c1_i32_47 = arith.constant 1 : i32
    %126 = tpu.dynamic_rotate %125 by %c1_i32_47 dim 1 : vector<16x256xf32>, i32 -> vector<16x256xf32>
    %127 = vector.broadcast %89 : vector<1x256xf32> to vector<16x256xf32>
    %128 = arith.mulf %126, %127 : vector<16x256xf32>
    %c255_i32_48 = arith.constant 255 : i32
    %129 = tpu.dynamic_rotate %125 by %c255_i32_48 dim 1 : vector<16x256xf32>, i32 -> vector<16x256xf32>
    %130 = vector.broadcast %93 : vector<1x256xf32> to vector<16x256xf32>
    %131 = arith.mulf %129, %130 : vector<16x256xf32>
    %cst_49 = arith.constant 2.500000e-01 : f32
    %132 = vector.broadcast %cst_49 : f32 to vector<16x256xf32>
    %133 = arith.mulf %132, %128 : vector<16x256xf32>
    %cst_50 = arith.constant 5.000000e-01 : f32
    %134 = vector.broadcast %cst_50 : f32 to vector<16x256xf32>
    %135 = arith.mulf %134, %125 : vector<16x256xf32>
    %136 = arith.addf %133, %135 : vector<16x256xf32>
    %cst_51 = arith.constant 2.500000e-01 : f32
    %137 = vector.broadcast %cst_51 : f32 to vector<16x256xf32>
    %138 = arith.mulf %137, %131 : vector<16x256xf32>
    %139 = arith.addf %136, %138 : vector<16x256xf32>
    %cst_52 = arith.constant dense<0.000000e+00> : vector<8x256xf32>
    %140 = tpu.matmul %82, %139, %cst_52 {dimension_numbers = #tpu.dot_dimension_numbers<[1], [0], [0], [1], [0, 0, 1, 1], [], []>} : vector<8x16xf32>, vector<16x256xf32>, vector<8x256xf32> -> vector<8x256xf32>
    %141 = vector.broadcast %84 : vector<8x1xf32> to vector<8x256xf32>
    %142 = arith.addf %140, %141 : vector<8x256xf32>
    %143 = arith.subf %73, %142 : vector<8x256xf32>
    %c0_53 = arith.constant 0 : index
    %c0_54 = arith.constant 0 : index
    %144 = vector.load %arg9[%c0_53, %c0_54] : memref<256x128xf32, #tpu.memory_space<vmem>>, vector<256x128xf32>
    %cst_55 = arith.constant dense<0.000000e+00> : vector<8x128xf32>
    %145 = tpu.matmul %143, %144, %cst_55 {dimension_numbers = #tpu.dot_dimension_numbers<[1], [0], [0], [1], [0, 0, 1, 1], [], []>} : vector<8x256xf32>, vector<256x128xf32>, vector<8x128xf32> -> vector<8x128xf32>
    %c0_56 = arith.constant 0 : index
    %c0_57 = arith.constant 0 : index
    %146 = vector.load %arg6[%c0_56, %c0_57] : memref<8x8xf32, #tpu.memory_space<vmem>>, vector<8x8xf32>
    %cst_58 = arith.constant dense<0.000000e+00> : vector<8x128xf32>
    %147 = tpu.matmul %146, %145, %cst_58 {dimension_numbers = #tpu.dot_dimension_numbers<[1], [0], [0], [1], [0, 0, 1, 1], [], []>} : vector<8x8xf32>, vector<8x128xf32>, vector<8x128xf32> -> vector<8x128xf32>
    %c0_59 = arith.constant 0 : index
    %c0_60 = arith.constant 0 : index
    %148 = vector.load %arg7[%c0_59, %c0_60] : memref<8x1xf32, #tpu.memory_space<vmem>>, vector<8x1xf32>
    %149 = vector.broadcast %148 : vector<8x1xf32> to vector<8x128xf32>
    %150 = arith.addf %147, %149 : vector<8x128xf32>
    %151 = arith.negf %150 : vector<8x128xf32>
    %152 = math.exp %151 : vector<8x128xf32>
    %cst_61 = arith.constant 1.000000e+00 : f32
    %153 = vector.broadcast %cst_61 : f32 to vector<8x128xf32>
    %154 = arith.addf %153, %152 : vector<8x128xf32>
    %155 = arith.divf %153, %154 : vector<8x128xf32>
    %156 = arith.mulf %150, %155 : vector<8x128xf32>
    %c0_62 = arith.constant 0 : index
    %c0_63 = arith.constant 0 : index
    %157 = vector.load %arg11[%c0_62, %c0_63] : memref<128x256xf32, #tpu.memory_space<vmem>>, vector<128x256xf32>
    %cst_64 = arith.constant dense<0.000000e+00> : vector<8x256xf32>
    %158 = tpu.matmul %156, %157, %cst_64 {dimension_numbers = #tpu.dot_dimension_numbers<[1], [0], [0], [1], [0, 0, 1, 1], [], []>} : vector<8x128xf32>, vector<128x256xf32>, vector<8x256xf32> -> vector<8x256xf32>
    %159 = arith.addf %158, %142 : vector<8x256xf32>
    %c3 = arith.constant 3 : index
    %c0_65 = arith.constant 0 : index
    %c0_66 = arith.constant 0 : index
    %160 = vector.load %arg3[%c3, %c0_65, %c0_66] : memref<4x16x3xf32, #tpu.memory_space<vmem>>, vector<1x16x3xf32>
    %161 = vector.shape_cast %160 : vector<1x16x3xf32> to vector<16x3xf32>
    %c3_67 = arith.constant 3 : index
    %c0_68 = arith.constant 0 : index
    %c0_69 = arith.constant 0 : index
    %162 = vector.load %arg2[%c3_67, %c0_68, %c0_69] : memref<4x16x8xf32, #tpu.memory_space<vmem>>, vector<1x16x8xf32>
    %163 = vector.shape_cast %162 : vector<1x16x8xf32> to vector<16x8xf32>
    %164 = vector.extract_strided_slice %161 {offsets = [0, 0], sizes = [16, 1], strides = [1, 1]} : vector<16x3xf32> to vector<16x1xf32>
    %165 = vector.extract_strided_slice %161 {offsets = [0, 1], sizes = [16, 1], strides = [1, 1]} : vector<16x3xf32> to vector<16x1xf32>
    %166 = vector.extract_strided_slice %161 {offsets = [0, 2], sizes = [16, 1], strides = [1, 1]} : vector<16x3xf32> to vector<16x1xf32>
    %c3_70 = arith.constant 3 : index
    %c0_71 = arith.constant 0 : index
    %c0_72 = arith.constant 0 : index
    %167 = vector.load %arg4[%c3_70, %c0_71, %c0_72] : memref<4x8x16xf32, #tpu.memory_space<vmem>>, vector<1x8x16xf32>
    %168 = vector.shape_cast %167 : vector<1x8x16xf32> to vector<8x16xf32>
    %c3_73 = arith.constant 3 : index
    %c0_74 = arith.constant 0 : index
    %c0_75 = arith.constant 0 : index
    %169 = vector.load %arg5[%c3_73, %c0_74, %c0_75] : memref<4x8x1xf32, #tpu.memory_space<vmem>>, vector<1x8x1xf32>
    %170 = vector.shape_cast %169 : vector<1x8x1xf32> to vector<8x1xf32>
    %cst_76 = arith.constant dense<0.000000e+00> : vector<16x256xf32>
    %171 = tpu.matmul %163, %159, %cst_76 {dimension_numbers = #tpu.dot_dimension_numbers<[1], [0], [0], [1], [0, 0, 1, 1], [], []>} : vector<16x8xf32>, vector<8x256xf32>, vector<16x256xf32> -> vector<16x256xf32>
    %172 = vector.broadcast %164 : vector<16x1xf32> to vector<16x256xf32>
    %173 = arith.addf %171, %172 : vector<16x256xf32>
    %174 = vector.shape_cast %173 : vector<16x256xf32> to vector<1x16x256xf32>
    %cst_77 = arith.constant dense<0.000000e+00> : vector<1xf32>
    %175 = vector.multi_reduction <add>, %174, %cst_77 [1, 2] : vector<1x16x256xf32> to vector<1xf32>
    %176 = vector.shape_cast %175 : vector<1xf32> to vector<1x1x1xf32>
    %177 = vector.extract %176[0, 0, 0] : f32 from vector<1x1x1xf32>
    %cst_78 = arith.constant 2.44140625E-4 : f32
    %178 = arith.mulf %177, %cst_78 : f32
    %179 = arith.mulf %173, %173 : vector<16x256xf32>
    %180 = vector.shape_cast %179 : vector<16x256xf32> to vector<1x16x256xf32>
    %cst_79 = arith.constant dense<0.000000e+00> : vector<1xf32>
    %181 = vector.multi_reduction <add>, %180, %cst_79 [1, 2] : vector<1x16x256xf32> to vector<1xf32>
    %182 = vector.shape_cast %181 : vector<1xf32> to vector<1x1x1xf32>
    %183 = vector.extract %182[0, 0, 0] : f32 from vector<1x1x1xf32>
    %cst_80 = arith.constant 2.44140625E-4 : f32
    %184 = arith.mulf %183, %cst_80 : f32
    %185 = arith.mulf %178, %178 : f32
    %186 = arith.subf %184, %185 : f32
    %187 = vector.broadcast %178 : f32 to vector<16x256xf32>
    %188 = arith.subf %173, %187 : vector<16x256xf32>
    %cst_81 = arith.constant 9.99999974E-6 : f32
    %189 = arith.addf %186, %cst_81 : f32
    %190 = math.rsqrt %189 : f32
    %191 = vector.broadcast %190 : f32 to vector<16x1xf32>
    %192 = arith.mulf %191, %165 : vector<16x1xf32>
    %193 = vector.broadcast %192 : vector<16x1xf32> to vector<16x256xf32>
    %194 = arith.mulf %188, %193 : vector<16x256xf32>
    %195 = vector.broadcast %166 : vector<16x1xf32> to vector<16x256xf32>
    %196 = arith.addf %194, %195 : vector<16x256xf32>
    %197 = arith.negf %196 : vector<16x256xf32>
    %198 = math.exp %197 : vector<16x256xf32>
    %cst_82 = arith.constant 1.000000e+00 : f32
    %199 = vector.broadcast %cst_82 : f32 to vector<16x256xf32>
    %200 = arith.addf %199, %198 : vector<16x256xf32>
    %201 = arith.divf %199, %200 : vector<16x256xf32>
    %202 = arith.mulf %196, %201 : vector<16x256xf32>
    %c1_i32_83 = arith.constant 1 : i32
    %203 = tpu.dynamic_rotate %202 by %c1_i32_83 dim 1 : vector<16x256xf32>, i32 -> vector<16x256xf32>
    %204 = vector.broadcast %89 : vector<1x256xf32> to vector<16x256xf32>
    %205 = arith.mulf %203, %204 : vector<16x256xf32>
    %c255_i32_84 = arith.constant 255 : i32
    %206 = tpu.dynamic_rotate %202 by %c255_i32_84 dim 1 : vector<16x256xf32>, i32 -> vector<16x256xf32>
    %207 = vector.broadcast %93 : vector<1x256xf32> to vector<16x256xf32>
    %208 = arith.mulf %206, %207 : vector<16x256xf32>
    %cst_85 = arith.constant 2.500000e-01 : f32
    %209 = vector.broadcast %cst_85 : f32 to vector<16x256xf32>
    %210 = arith.mulf %209, %205 : vector<16x256xf32>
    %cst_86 = arith.constant 5.000000e-01 : f32
    %211 = vector.broadcast %cst_86 : f32 to vector<16x256xf32>
    %212 = arith.mulf %211, %202 : vector<16x256xf32>
    %213 = arith.addf %210, %212 : vector<16x256xf32>
    %cst_87 = arith.constant 2.500000e-01 : f32
    %214 = vector.broadcast %cst_87 : f32 to vector<16x256xf32>
    %215 = arith.mulf %214, %208 : vector<16x256xf32>
    %216 = arith.addf %213, %215 : vector<16x256xf32>
    %cst_88 = arith.constant dense<0.000000e+00> : vector<8x256xf32>
    %217 = tpu.matmul %168, %216, %cst_88 {dimension_numbers = #tpu.dot_dimension_numbers<[1], [0], [0], [1], [0, 0, 1, 1], [], []>} : vector<8x16xf32>, vector<16x256xf32>, vector<8x256xf32> -> vector<8x256xf32>
    %218 = vector.broadcast %170 : vector<8x1xf32> to vector<8x256xf32>
    %219 = arith.addf %217, %218 : vector<8x256xf32>
    %c0_89 = arith.constant 0 : index
    %c0_90 = arith.constant 0 : index
    %220 = vector.load %arg10[%c0_89, %c0_90] : memref<256x512xf32, #tpu.memory_space<vmem>>, vector<256x512xf32>
    %cst_91 = arith.constant dense<0.000000e+00> : vector<8x512xf32>
    %221 = tpu.matmul %219, %220, %cst_91 {dimension_numbers = #tpu.dot_dimension_numbers<[1], [0], [0], [1], [0, 0, 1, 1], [], []>} : vector<8x256xf32>, vector<256x512xf32>, vector<8x512xf32> -> vector<8x512xf32>
    %222 = arith.addf %221, %70 : vector<8x512xf32>
    %c2 = arith.constant 2 : index
    %c0_92 = arith.constant 0 : index
    %c0_93 = arith.constant 0 : index
    %223 = vector.load %arg3[%c2, %c0_92, %c0_93] : memref<4x16x3xf32, #tpu.memory_space<vmem>>, vector<1x16x3xf32>
    %224 = vector.shape_cast %223 : vector<1x16x3xf32> to vector<16x3xf32>
    %c2_94 = arith.constant 2 : index
    %c0_95 = arith.constant 0 : index
    %c0_96 = arith.constant 0 : index
    %225 = vector.load %arg2[%c2_94, %c0_95, %c0_96] : memref<4x16x8xf32, #tpu.memory_space<vmem>>, vector<1x16x8xf32>
    %226 = vector.shape_cast %225 : vector<1x16x8xf32> to vector<16x8xf32>
    %227 = vector.extract_strided_slice %224 {offsets = [0, 0], sizes = [16, 1], strides = [1, 1]} : vector<16x3xf32> to vector<16x1xf32>
    %228 = vector.extract_strided_slice %224 {offsets = [0, 1], sizes = [16, 1], strides = [1, 1]} : vector<16x3xf32> to vector<16x1xf32>
    %229 = vector.extract_strided_slice %224 {offsets = [0, 2], sizes = [16, 1], strides = [1, 1]} : vector<16x3xf32> to vector<16x1xf32>
    %c2_97 = arith.constant 2 : index
    %c0_98 = arith.constant 0 : index
    %c0_99 = arith.constant 0 : index
    %230 = vector.load %arg4[%c2_97, %c0_98, %c0_99] : memref<4x8x16xf32, #tpu.memory_space<vmem>>, vector<1x8x16xf32>
    %231 = vector.shape_cast %230 : vector<1x8x16xf32> to vector<8x16xf32>
    %c2_100 = arith.constant 2 : index
    %c0_101 = arith.constant 0 : index
    %c0_102 = arith.constant 0 : index
    %232 = vector.load %arg5[%c2_100, %c0_101, %c0_102] : memref<4x8x1xf32, #tpu.memory_space<vmem>>, vector<1x8x1xf32>
    %233 = vector.shape_cast %232 : vector<1x8x1xf32> to vector<8x1xf32>
    %cst_103 = arith.constant dense<0.000000e+00> : vector<16x512xf32>
    %234 = tpu.matmul %226, %222, %cst_103 {dimension_numbers = #tpu.dot_dimension_numbers<[1], [0], [0], [1], [0, 0, 1, 1], [], []>} : vector<16x8xf32>, vector<8x512xf32>, vector<16x512xf32> -> vector<16x512xf32>
    %235 = vector.broadcast %227 : vector<16x1xf32> to vector<16x512xf32>
    %236 = arith.addf %234, %235 : vector<16x512xf32>
    %237 = vector.shape_cast %236 : vector<16x512xf32> to vector<1x16x512xf32>
    %cst_104 = arith.constant dense<0.000000e+00> : vector<1xf32>
    %238 = vector.multi_reduction <add>, %237, %cst_104 [1, 2] : vector<1x16x512xf32> to vector<1xf32>
    %239 = vector.shape_cast %238 : vector<1xf32> to vector<1x1x1xf32>
    %240 = vector.extract %239[0, 0, 0] : f32 from vector<1x1x1xf32>
    %cst_105 = arith.constant 1.22070313E-4 : f32
    %241 = arith.mulf %240, %cst_105 : f32
    %242 = arith.mulf %236, %236 : vector<16x512xf32>
    %243 = vector.shape_cast %242 : vector<16x512xf32> to vector<1x16x512xf32>
    %cst_106 = arith.constant dense<0.000000e+00> : vector<1xf32>
    %244 = vector.multi_reduction <add>, %243, %cst_106 [1, 2] : vector<1x16x512xf32> to vector<1xf32>
    %245 = vector.shape_cast %244 : vector<1xf32> to vector<1x1x1xf32>
    %246 = vector.extract %245[0, 0, 0] : f32 from vector<1x1x1xf32>
    %cst_107 = arith.constant 1.22070313E-4 : f32
    %247 = arith.mulf %246, %cst_107 : f32
    %248 = arith.mulf %241, %241 : f32
    %249 = arith.subf %247, %248 : f32
    %250 = vector.broadcast %241 : f32 to vector<16x512xf32>
    %251 = arith.subf %236, %250 : vector<16x512xf32>
    %cst_108 = arith.constant 9.99999974E-6 : f32
    %252 = arith.addf %249, %cst_108 : f32
    %253 = math.rsqrt %252 : f32
    %254 = vector.broadcast %253 : f32 to vector<16x1xf32>
    %255 = arith.mulf %254, %228 : vector<16x1xf32>
    %256 = vector.broadcast %255 : vector<16x1xf32> to vector<16x512xf32>
    %257 = arith.mulf %251, %256 : vector<16x512xf32>
    %258 = vector.broadcast %229 : vector<16x1xf32> to vector<16x512xf32>
    %259 = arith.addf %257, %258 : vector<16x512xf32>
    %260 = arith.negf %259 : vector<16x512xf32>
    %261 = math.exp %260 : vector<16x512xf32>
    %cst_109 = arith.constant 1.000000e+00 : f32
    %262 = vector.broadcast %cst_109 : f32 to vector<16x512xf32>
    %263 = arith.addf %262, %261 : vector<16x512xf32>
    %264 = arith.divf %262, %263 : vector<16x512xf32>
    %265 = arith.mulf %259, %264 : vector<16x512xf32>
    %c1_i32_110 = arith.constant 1 : i32
    %266 = tpu.dynamic_rotate %265 by %c1_i32_110 dim 1 : vector<16x512xf32>, i32 -> vector<16x512xf32>
    %267 = vector.broadcast %17 : vector<1x512xf32> to vector<16x512xf32>
    %268 = arith.mulf %266, %267 : vector<16x512xf32>
    %c511_i32_111 = arith.constant 511 : i32
    %269 = tpu.dynamic_rotate %265 by %c511_i32_111 dim 1 : vector<16x512xf32>, i32 -> vector<16x512xf32>
    %270 = vector.broadcast %21 : vector<1x512xf32> to vector<16x512xf32>
    %271 = arith.mulf %269, %270 : vector<16x512xf32>
    %cst_112 = arith.constant 2.500000e-01 : f32
    %272 = vector.broadcast %cst_112 : f32 to vector<16x512xf32>
    %273 = arith.mulf %272, %268 : vector<16x512xf32>
    %cst_113 = arith.constant 5.000000e-01 : f32
    %274 = vector.broadcast %cst_113 : f32 to vector<16x512xf32>
    %275 = arith.mulf %274, %265 : vector<16x512xf32>
    %276 = arith.addf %273, %275 : vector<16x512xf32>
    %cst_114 = arith.constant 2.500000e-01 : f32
    %277 = vector.broadcast %cst_114 : f32 to vector<16x512xf32>
    %278 = arith.mulf %277, %271 : vector<16x512xf32>
    %279 = arith.addf %276, %278 : vector<16x512xf32>
    %cst_115 = arith.constant dense<0.000000e+00> : vector<8x512xf32>
    %280 = tpu.matmul %231, %279, %cst_115 {dimension_numbers = #tpu.dot_dimension_numbers<[1], [0], [0], [1], [0, 0, 1, 1], [], []>} : vector<8x16xf32>, vector<16x512xf32>, vector<8x512xf32> -> vector<8x512xf32>
    %281 = vector.broadcast %233 : vector<8x1xf32> to vector<8x512xf32>
    %282 = arith.addf %280, %281 : vector<8x512xf32>
    %c0_116 = arith.constant 0 : index
    %c0_117 = arith.constant 0 : index
    %c0_118 = arith.constant 0 : index
    %283 = vector.load %arg12[%c0_116, %c0_117, %c0_118] : memref<1x8x512xf32, #tpu.memory_space<vmem>>, vector<1x8x512xf32>
    %284 = vector.shape_cast %283 : vector<1x8x512xf32> to vector<8x512xf32>
    %285 = vector.shape_cast %282 : vector<8x512xf32> to vector<1x8x512xf32>
    tpu.vector_store %arg12[%c0_116, %c0_117, %c0_118], %285 {strides = array<i32>} : memref<1x8x512xf32, #tpu.memory_space<vmem>>, vector<1x8x512xf32>,
    return
  }
  func.func @transform_0(%arg0: i32) -> (i32, i32, i32) {
    %c0_i32 = arith.constant 0 : i32
    %c0_i32_0 = arith.constant 0 : i32
    %c0_i32_1 = arith.constant 0 : i32
    return %arg0, %c0_i32, %c0_i32_0 : i32, i32, i32
  }
  func.func @transform_1(%arg0: i32) -> (i32, i32, i32) {
    %c0_i32 = arith.constant 0 : i32
    %c0_i32_0 = arith.constant 0 : i32
    %c0_i32_1 = arith.constant 0 : i32
    %c0_i32_2 = arith.constant 0 : i32
    return %c0_i32, %c0_i32_0, %c0_i32_1 : i32, i32, i32
  }
  func.func @transform_2(%arg0: i32) -> (i32, i32, i32) {
    %c0_i32 = arith.constant 0 : i32
    %c0_i32_0 = arith.constant 0 : i32
    %c0_i32_1 = arith.constant 0 : i32
    %c0_i32_2 = arith.constant 0 : i32
    return %c0_i32, %c0_i32_0, %c0_i32_1 : i32, i32, i32
  }
  func.func @transform_3(%arg0: i32) -> (i32, i32, i32) {
    %c0_i32 = arith.constant 0 : i32
    %c0_i32_0 = arith.constant 0 : i32
    %c0_i32_1 = arith.constant 0 : i32
    %c0_i32_2 = arith.constant 0 : i32
    return %c0_i32, %c0_i32_0, %c0_i32_1 : i32, i32, i32
  }
  func.func @transform_4(%arg0: i32) -> (i32, i32, i32) {
    %c0_i32 = arith.constant 0 : i32
    %c0_i32_0 = arith.constant 0 : i32
    %c0_i32_1 = arith.constant 0 : i32
    %c0_i32_2 = arith.constant 0 : i32
    return %c0_i32, %c0_i32_0, %c0_i32_1 : i32, i32, i32
  }
  func.func @transform_5(%arg0: i32) -> (i32, i32) {
    %c0_i32 = arith.constant 0 : i32
    %c0_i32_0 = arith.constant 0 : i32
    %c0_i32_1 = arith.constant 0 : i32
    return %c0_i32, %c0_i32_0 : i32, i32
  }
  func.func @transform_6(%arg0: i32) -> (i32, i32) {
    %c0_i32 = arith.constant 0 : i32
    %c0_i32_0 = arith.constant 0 : i32
    %c0_i32_1 = arith.constant 0 : i32
    return %c0_i32, %c0_i32_0 : i32, i32
  }
  func.func @transform_7(%arg0: i32) -> (i32, i32) {
    %c0_i32 = arith.constant 0 : i32
    %c0_i32_0 = arith.constant 0 : i32
    %c0_i32_1 = arith.constant 0 : i32
    return %c0_i32, %c0_i32_0 : i32, i32
  }
  func.func @transform_8(%arg0: i32) -> (i32, i32) {
    %c0_i32 = arith.constant 0 : i32
    %c0_i32_0 = arith.constant 0 : i32
    %c0_i32_1 = arith.constant 0 : i32
    return %c0_i32, %c0_i32_0 : i32, i32
  }
  func.func @transform_9(%arg0: i32) -> (i32, i32) {
    %c0_i32 = arith.constant 0 : i32
    %c0_i32_0 = arith.constant 0 : i32
    %c0_i32_1 = arith.constant 0 : i32
    return %c0_i32, %c0_i32_0 : i32, i32
  }
  func.func @transform_10(%arg0: i32) -> (i32, i32) {
    %c0_i32 = arith.constant 0 : i32
    %c0_i32_0 = arith.constant 0 : i32
    %c0_i32_1 = arith.constant 0 : i32
    return %c0_i32, %c0_i32_0 : i32, i32
  }
  func.func @transform_11(%arg0: i32) -> (i32, i32, i32) {
    %c0_i32 = arith.constant 0 : i32
    %c0_i32_0 = arith.constant 0 : i32
    %c0_i32_1 = arith.constant 0 : i32
    return %arg0, %c0_i32, %c0_i32_0 : i32, i32, i32
  }
}

</mosaic_0001>

<llo_original>
// kernel: unet_forward.1
$region0: #{unet_forward.1}
  #allocation0 [shape = 'u32[]', space=smem, size = 0x4, offset = 0x4, fixed_abs, tag = 'smem constant byte address 0x4 - core index']
  #allocation1 [shape = 'u32[144,128]{1,0:T(1,128)}', space=vmem, size = 0x12000, scoped, tag = 'internal scratch']
  %s0 = inlined_call_operand.vmem [shape: f32[2,8,512], index: 0, kind: input, shape index: {}]
  %s1 = inlined_call_operand.vmem [shape: f32[4,16,8], index: 1, kind: input, shape index: {}]
  %s2 = inlined_call_operand.vmem [shape: f32[4,16,3], index: 2, kind: input, shape index: {}]
  %s3 = inlined_call_operand.vmem [shape: f32[4,8,16], index: 3, kind: input, shape index: {}]
  %s4 = inlined_call_operand.vmem [shape: f32[4,8,1], index: 4, kind: input, shape index: {}]
  %s5 = inlined_call_operand.vmem [shape: f32[8,8], index: 5, kind: input, shape index: {}]
  %s6 = inlined_call_operand.vmem [shape: f32[8,1], index: 6, kind: input, shape index: {}]
  %s7 = inlined_call_operand.hbm [shape: f32[512,256], index: 7, kind: input, shape index: {}]
  %s8 = inlined_call_operand.vmem [shape: f32[256,128], index: 8, kind: input, shape index: {}]
  %s9 = inlined_call_operand.hbm [shape: f32[256,512], index: 9, kind: input, shape index: {}]
  %s10 = inlined_call_operand.vmem [shape: f32[128,256], index: 10, kind: input, shape index: {}]
  %s11 = inlined_call_operand.hbm [shape: f32[2,8,512], index: 11, kind: output, shape index: {}]
  %s12 = sld [smem:[#allocation0]]
  $region85: #{unet_forward.1} parent=0
    _
  %s14 = ssub.s32 1, %s12
  %s15 = scalar_select 0, %s14, %s12
  $region1: #{unet_forward.1} parent=0
    #allocation2 [shape = 'u8[524288]{0}', space=vmem, size = 0x80000, scoped, tag = 'input window, operand 7, single buffered']
    #allocation3 [shape = 's32[2]{0}', space=sflag, size = 0x8, scoped, tag = 'scoped memory for unet_forward.1']
    #allocation4 [shape = 's32[2]{0}', space=sflag, size = 0x8, scoped, tag = 'scoped memory for unet_forward.1']
    #allocation5 [shape = 'u8[524288]{0}', space=vmem, size = 0x80000, scoped, tag = 'input window, operand 9, single buffered']
    #allocation6 [shape = 's32[1]{0}', space=sflag, size = 0x4, scoped, tag = 'scoped memory for unet_forward.1']
    #allocation7 [shape = 'u8[32768]{0}', space=vmem, size = 0x8000, scoped, tag = 'output window, operand 0']
    %16 = vsyncpa [#allocation3], 0
    %17 = vsyncpa [#allocation6], 0
    %18 = vsyncpa [#allocation4], 0
    %s19 = scalar_lea.sflag [#allocation4], 1
    %20 = vsyncpa %s19, 0
    loop: start=0, step=1, limit=4
    $region2: #{unet_forward.1} parent=1 // loop_pre_header
      _
    $region3: #{unet_forward.1} parent=1 // loop_header
      %s22 = sphi 0, %s26
      %p23 = scmp.ge.s32.totalorder %s22, 4
      %s32 = sphi 0, %s34
      %s35 = sphi 0, %s32
      %s36 = sphi 0, %s35
      %s52 = sphi 0, %s36
      %s56 = sphi 0, %s56
      %s58 = sphi 0, %s56
      %s59 = sphi 0, %s58
      %s73 = sphi 0, %s59
      %s77 = sphi 0, %s77
      %s79 = sphi 0, %s77
      %s80 = sphi 0, %s79
      %s94 = sphi 0, %s80
      %s98 = sphi 0, %s98
      %s100 = sphi 0, %s98
      %s101 = sphi 0, %s100
      %s115 = sphi 0, %s101
      %s119 = sphi 0, %s119
      %s121 = sphi 0, %s119
      %s122 = sphi 0, %s121
      %s136 = sphi 0, %s122
      %s140 = sphi 0, %s140
      %s142 = sphi 0, %s140
      %s143 = sphi 0, %s142
      %s157 = sphi 0, %s143
      %s161 = sphi 0, %s161
      %s163 = sphi 0, %s161
      %s164 = sphi 0, %s163
      %s178 = sphi 0, %s164
      %s182 = sphi 0, %s182
      %s184 = sphi 0, %s182
      %s185 = sphi 0, %s184
      %s199 = sphi 0, %s185
      %s203 = sphi 0, %s203
      %s205 = sphi 0, %s203
      %s206 = sphi 0, %s205
      %s220 = sphi 0, %s206
      %s224 = sphi 0, %s224
      %s226 = sphi 0, %s224
      %s227 = sphi 0, %s226
      %s241 = sphi 0, %s227
      %s245 = sphi 0, %s245
      %s247 = sphi 0, %s245
      %s248 = sphi 0, %s247
      %s262 = sphi 0, %s248
      %s268 = sphi 0, %s270
      %s271 = sphi 0, %s268
      %s272 = sphi 0, %s271
      %s288 = sphi 0, %s272
    $region4: #{unet_forward.1} parent=1 // loop_header_branch
      %25 = sbr.rel (%p23) target = $region8
    $region5: #{unet_forward.1} parent=1 // loop_body
      %s27 = ssub.s32 %s22, 1
      %s28 = ssub.s32 %s22, 2
      %s29 = sadd.s32 %s22, 1
      %s30 = ssub.s32 %s22, %s29
      %p31 = scmp.eq.s32.totalorder %s30, 0
      %s33 = sadd.s32 %s32, 1
      %s34 = scalar_select %p31, %s32, %s33
      %p37 = pneg %p31
      %p38 = scmp.eq.s32.totalorder %s22, 1
      %p39 = por %p37, %p38
      %p40 = scmp.ne.s32.totalorder %s32, %s35
      %p41 = scmp.eq.s32.totalorder %s22, 0
      %p42 = por %p40, %p41
      %p43 = scmp.ne.s32.totalorder %s32, %s35
      %p44 = scmp.eq.s32.totalorder %s27, 1
      %p45 = por %p43, %p44
      %p46 = scmp.ne.s32.totalorder %s35, %s36
      %p47 = scmp.eq.s32.totalorder %s27, 0
      %p48 = por %p46, %p47
      %p49 = scmp.ne.s32.totalorder %s35, %s36
      %p50 = scmp.eq.s32.totalorder %s28, 1
      %p51 = por %p49, %p50
      %p53 = scmp.ne.s32.totalorder %s36, %s52
      %p54 = scmp.eq.s32.totalorder %s28, 0
      %p55 = por %p53, %p54
      %s57 = sadd.s32 %s56, 1
      %p60 = scmp.eq.s32.totalorder %s22, 1
      %p61 = scmp.ne.s32.totalorder %s56, %s58
      %p62 = scmp.eq.s32.totalorder %s22, 0
      %p63 = por %p61, %p62
      %p64 = scmp.ne.s32.totalorder %s56, %s58
      %p65 = scmp.eq.s32.totalorder %s27, 1
      %p66 = por %p64, %p65
      %p67 = scmp.ne.s32.totalorder %s58, %s59
      %p68 = scmp.eq.s32.totalorder %s27, 0
      %p69 = por %p67, %p68
      %p70 = scmp.ne.s32.totalorder %s58, %s59
      %p71 = scmp.eq.s32.totalorder %s28, 1
      %p72 = por %p70, %p71
      %p74 = scmp.ne.s32.totalorder %s59, %s73
      %p75 = scmp.eq.s32.totalorder %s28, 0
      %p76 = por %p74, %p75
      %s78 = sadd.s32 %s77, 1
      %p81 = scmp.eq.s32.totalorder %s22, 1
      %p82 = scmp.ne.s32.totalorder %s77, %s79
      %p83 = scmp.eq.s32.totalorder %s22, 0
      %p84 = por %p82, %p83
      %p85 = scmp.ne.s32.totalorder %s77, %s79
      %p86 = scmp.eq.s32.totalorder %s27, 1
      %p87 = por %p85, %p86
      %p88 = scmp.ne.s32.totalorder %s79, %s80
      %p89 = scmp.eq.s32.totalorder %s27, 0
      %p90 = por %p88, %p89
      %p91 = scmp.ne.s32.totalorder %s79, %s80
      %p92 = scmp.eq.s32.totalorder %s28, 1
      %p93 = por %p91, %p92
      %p95 = scmp.ne.s32.totalorder %s80, %s94
      %p96 = scmp.eq.s32.totalorder %s28, 0
      %p97 = por %p95, %p96
      %s99 = sadd.s32 %s98, 1
      %p102 = scmp.eq.s32.totalorder %s22, 1
      %p103 = scmp.ne.s32.totalorder %s98, %s100
      %p104 = scmp.eq.s32.totalorder %s22, 0
      %p105 = por %p103, %p104
      %p106 = scmp.ne.s32.totalorder %s98, %s100
      %p107 = scmp.eq.s32.totalorder %s27, 1
      %p108 = por %p106, %p107
      %p109 = scmp.ne.s32.totalorder %s100, %s101
      %p110 = scmp.eq.s32.totalorder %s27, 0
      %p111 = por %p109, %p110
      %p112 = scmp.ne.s32.totalorder %s100, %s101
      %p113 = scmp.eq.s32.totalorder %s28, 1
      %p114 = por %p112, %p113
      %p116 = scmp.ne.s32.totalorder %s101, %s115
      %p117 = scmp.eq.s32.totalorder %s28, 0
      %p118 = por %p116, %p117
      %s120 = sadd.s32 %s119, 1
      %p123 = scmp.eq.s32.totalorder %s22, 1
      %p124 = scmp.ne.s32.totalorder %s119, %s121
      %p125 = scmp.eq.s32.totalorder %s22, 0
      %p126 = por %p124, %p125
      %p127 = scmp.ne.s32.totalorder %s119, %s121
      %p128 = scmp.eq.s32.totalorder %s27, 1
      %p129 = por %p127, %p128
      %p130 = scmp.ne.s32.totalorder %s121, %s122
      %p131 = scmp.eq.s32.totalorder %s27, 0
      %p132 = por %p130, %p131
      %p133 = scmp.ne.s32.totalorder %s121, %s122
      %p134 = scmp.eq.s32.totalorder %s28, 1
      %p135 = por %p133, %p134
      %p137 = scmp.ne.s32.totalorder %s122, %s136
      %p138 = scmp.eq.s32.totalorder %s28, 0
      %p139 = por %p137, %p138
      %s141 = sadd.s32 %s140, 1
      %p144 = scmp.eq.s32.totalorder %s22, 1
      %p145 = scmp.ne.s32.totalorder %s140, %s142
      %p146 = scmp.eq.s32.totalorder %s22, 0
      %p147 = por %p145, %p146
      %p148 = scmp.ne.s32.totalorder %s140, %s142
      %p149 = scmp.eq.s32.totalorder %s27, 1
      %p150 = por %p148, %p149
      %p151 = scmp.ne.s32.totalorder %s142, %s143
      %p152 = scmp.eq.s32.totalorder %s27, 0
      %p153 = por %p151, %p152
      %p154 = scmp.ne.s32.totalorder %s142, %s143
      %p155 = scmp.eq.s32.totalorder %s28, 1
      %p156 = por %p154, %p155
      %p158 = scmp.ne.s32.totalorder %s143, %s157
      %p159 = scmp.eq.s32.totalorder %s28, 0
      %p160 = por %p158, %p159
      %s162 = sadd.s32 %s161, 1
      %p165 = scmp.eq.s32.totalorder %s22, 1
      %p166 = scmp.ne.s32.totalorder %s161, %s163
      %p167 = scmp.eq.s32.totalorder %s22, 0
      %p168 = por %p166, %p167
      %p169 = scmp.ne.s32.totalorder %s161, %s163
      %p170 = scmp.eq.s32.totalorder %s27, 1
      %p171 = por %p169, %p170
      %p172 = scmp.ne.s32.totalorder %s163, %s164
      %p173 = scmp.eq.s32.totalorder %s27, 0
      %p174 = por %p172, %p173
      %p175 = scmp.ne.s32.totalorder %s163, %s164
      %p176 = scmp.eq.s32.totalorder %s28, 1
      %p177 = por %p175, %p176
      %p179 = scmp.ne.s32.totalorder %s164, %s178
      %p180 = scmp.eq.s32.totalorder %s28, 0
      %p181 = por %p179, %p180
      %s183 = sadd.s32 %s182, 1
      %p186 = scmp.eq.s32.totalorder %s22, 1
      %p187 = scmp.ne.s32.totalorder %s182, %s184
      %p188 = scmp.eq.s32.totalorder %s22, 0
      %p189 = por %p187, %p188
      %p190 = scmp.ne.s32.totalorder %s182, %s184
      %p191 = scmp.eq.s32.totalorder %s27, 1
      %p192 = por %p190, %p191
      %p193 = scmp.ne.s32.totalorder %s184, %s185
      %p194 = scmp.eq.s32.totalorder %s27, 0
      %p195 = por %p193, %p194
      %p196 = scmp.ne.s32.totalorder %s184, %s185
      %p197 = scmp.eq.s32.totalorder %s28, 1
      %p198 = por %p196, %p197
      %p200 = scmp.ne.s32.totalorder %s185, %s199
      %p201 = scmp.eq.s32.totalorder %s28, 0
      %p202 = por %p200, %p201
      %s204 = sadd.s32 %s203, 1
      %p207 = scmp.eq.s32.totalorder %s22, 1
      %p208 = scmp.ne.s32.totalorder %s203, %s205
      %p209 = scmp.eq.s32.totalorder %s22, 0
      %p210 = por %p208, %p209
      %p211 = scmp.ne.s32.totalorder %s203, %s205
      %p212 = scmp.eq.s32.totalorder %s27, 1
      %p213 = por %p211, %p212
      %p214 = scmp.ne.s32.totalorder %s205, %s206
      %p215 = scmp.eq.s32.totalorder %s27, 0
      %p216 = por %p214, %p215
      %p217 = scmp.ne.s32.totalorder %s205, %s206
      %p218 = scmp.eq.s32.totalorder %s28, 1
      %p219 = por %p217, %p218
      %p221 = scmp.ne.s32.totalorder %s206, %s220
      %p222 = scmp.eq.s32.totalorder %s28, 0
      %p223 = por %p221, %p222
      %s225 = sadd.s32 %s224, 1
      %p228 = scmp.eq.s32.totalorder %s22, 1
      %p229 = scmp.ne.s32.totalorder %s224, %s226
      %p230 = scmp.eq.s32.totalorder %s22, 0
      %p231 = por %p229, %p230
      %p232 = scmp.ne.s32.totalorder %s224, %s226
      %p233 = scmp.eq.s32.totalorder %s27, 1
      %p234 = por %p232, %p233
      %p235 = scmp.ne.s32.totalorder %s226, %s227
      %p236 = scmp.eq.s32.totalorder %s27, 0
      %p237 = por %p235, %p236
      %p238 = scmp.ne.s32.totalorder %s226, %s227
      %p239 = scmp.eq.s32.totalorder %s28, 1
      %p240 = por %p238, %p239
      %p242 = scmp.ne.s32.totalorder %s227, %s241
      %p243 = scmp.eq.s32.totalorder %s28, 0
      %p244 = por %p242, %p243
      %s246 = sadd.s32 %s245, 1
      %p249 = scmp.eq.s32.totalorder %s22, 1
      %p250 = scmp.ne.s32.totalorder %s245, %s247
      %p251 = scmp.eq.s32.totalorder %s22, 0
      %p252 = por %p250, %p251
      %p253 = scmp.ne.s32.totalorder %s245, %s247
      %p254 = scmp.eq.s32.totalorder %s27, 1
      %p255 = por %p253, %p254
      %p256 = scmp.ne.s32.totalorder %s247, %s248
      %p257 = scmp.eq.s32.totalorder %s27, 0
      %p258 = por %p256, %p257
      %p259 = scmp.ne.s32.totalorder %s247, %s248
      %p260 = scmp.eq.s32.totalorder %s28, 1
      %p261 = por %p259, %p260
      %p263 = scmp.ne.s32.totalorder %s248, %s262
      %p264 = scmp.eq.s32.totalorder %s28, 0
      %p265 = por %p263, %p264
      %s266 = ssub.s32 %s22, %s29
      %p267 = scmp.eq.s32.totalorder %s266, 0
      %s269 = sadd.s32 %s268, 1
      %s270 = scalar_select %p267, %s268, %s269
      %p273 = pneg %p267
      %p274 = scmp.eq.s32.totalorder %s22, 1
      %p275 = por %p273, %p274
      %p276 = scmp.ne.s32.totalorder %s268, %s271
      %p277 = scmp.eq.s32.totalorder %s22, 0
      %p278 = por %p276, %p277
      %p279 = scmp.ne.s32.totalorder %s268, %s271
      %p280 = scmp.eq.s32.totalorder %s27, 1
      %p281 = por %p279, %p280
      %p282 = scmp.ne.s32.totalorder %s271, %s272
      %p283 = scmp.eq.s32.totalorder %s27, 0
      %p284 = por %p282, %p283
      %p285 = scmp.ne.s32.totalorder %s271, %s272
      %p286 = scmp.eq.s32.totalorder %s28, 1
      %p287 = por %p285, %p286
      %p289 = scmp.ne.s32.totalorder %s272, %s288
      %p290 = scmp.eq.s32.totalorder %s28, 0
      %p291 = por %p289, %p290
      %p292 = scmp.le.s32.totalorder 1, %s22
      %p293 = scmp.lt.s32.totalorder %s22, 3
      %p294 = pnand %p292, %p293
      %p295 = pneg %p294
      // Predicated region
      $region9: #{unet_forward.1} parent=5 // pred_check
        _
      $region10: #{unet_forward.1} parent=5 // pred_check_branch
        %297 = sbr.rel (%p294) target = $region12
      $region11: #{unet_forward.1} parent=5 // pred_region
        %s298 = ssub.s32 %s22, 1
        // Predicated region
        $region13: #{unet_forward.1} parent=11 // pred_check
          %p299 = pneg %p69
        $region14: #{unet_forward.1} parent=11 // pred_check_branch
          %301 = sbr.rel (%p299) target = $region16
        $region15: #{unet_forward.1} parent=11 // pred_region
          _
        $region16: #{unet_forward.1} parent=11 // pred_fallthru
          _
        // Predicated region
        $region17: #{unet_forward.1} parent=11 // pred_check
          %p302 = pneg %p90
        $region18: #{unet_forward.1} parent=11 // pred_check_branch
          %304 = sbr.rel (%p302) target = $region20
        $region19: #{unet_forward.1} parent=11 // pred_region
          _
        $region20: #{unet_forward.1} parent=11 // pred_fallthru
          _
        // Predicated region
        $region21: #{unet_forward.1} parent=11 // pred_check
          %p305 = pneg %p111
        $region22: #{unet_forward.1} parent=11 // pred_check_branch
          %307 = sbr.rel (%p305) target = $region24
        $region23: #{unet_forward.1} parent=11 // pred_region
          _
        $region24: #{unet_forward.1} parent=11 // pred_fallthru
          _
        // Predicated region
        $region25: #{unet_forward.1} parent=11 // pred_check
          %p308 = pneg %p132
        $region26: #{unet_forward.1} parent=11 // pred_check_branch
          %310 = sbr.rel (%p308) target = $region28
        $region27: #{unet_forward.1} parent=11 // pred_region
          _
        $region28: #{unet_forward.1} parent=11 // pred_fallthru
          _
        // Predicated region
        $region29: #{unet_forward.1} parent=11 // pred_check
          %p311 = pneg %p153
        $region30: #{unet_forward.1} parent=11 // pred_check_branch
          %313 = sbr.rel (%p311) target = $region32
        $region31: #{unet_forward.1} parent=11 // pred_region
          _
        $region32: #{unet_forward.1} parent=11 // pred_fallthru
          _
        // Predicated region
        $region33: #{unet_forward.1} parent=11 // pred_check
          %p314 = pneg %p174
        $region34: #{unet_forward.1} parent=11 // pred_check_branch
          %316 = sbr.rel (%p314) target = $region36
        $region35: #{unet_forward.1} parent=11 // pred_region
          _
        $region36: #{unet_forward.1} parent=11 // pred_fallthru
          _
        // Predicated region
        $region37: #{unet_forward.1} parent=11 // pred_check
          %p317 = pneg %p195
        $region38: #{unet_forward.1} parent=11 // pred_check_branch
          %319 = sbr.rel (%p317) target = $region40
        $region39: #{unet_forward.1} parent=11 // pred_region
          %s321 = ssub.s32 16384, 16384
          %322 = vsyncadd [#allocation3], %s321
          %s323 = sshll.u32 [#allocation2], 4
          %s324 = int_to_ptr.vmem [resolvable:$true] %s323
          %329 = dma.hbm_to_vmem [thread:$0]  %s7, 16384, %s324, [#allocation3], 256, 256, 16
        $region40: #{unet_forward.1} parent=11 // pred_fallthru
          _
        // Predicated region
        $region41: #{unet_forward.1} parent=11 // pred_check
          %p330 = pneg %p216
        $region42: #{unet_forward.1} parent=11 // pred_check_branch
          %332 = sbr.rel (%p330) target = $region44
        $region43: #{unet_forward.1} parent=11 // pred_region
          _
        $region44: #{unet_forward.1} parent=11 // pred_fallthru
          _
        // Predicated region
        $region45: #{unet_forward.1} parent=11 // pred_check
          %p333 = pneg %p237
        $region46: #{unet_forward.1} parent=11 // pred_check_branch
          %335 = sbr.rel (%p333) target = $region48
        $region47: #{unet_forward.1} parent=11 // pred_region
          %s337 = ssub.s32 16384, 16384
          %338 = vsyncadd [#allocation6], %s337
          %s339 = sshll.u32 [#allocation5], 4
          %s340 = int_to_ptr.vmem [resolvable:$true] %s339
          %345 = dma.hbm_to_vmem [thread:$0]  %s9, 16384, %s340, [#allocation6], 512, 512, 32
        $region48: #{unet_forward.1} parent=11 // pred_fallthru
          _
        // Predicated region
        $region49: #{unet_forward.1} parent=11 // pred_check
          %p346 = pneg %p258
        $region50: #{unet_forward.1} parent=11 // pred_check_branch
          %348 = sbr.rel (%p346) target = $region52
        $region51: #{unet_forward.1} parent=11 // pred_region
          _
        $region52: #{unet_forward.1} parent=11 // pred_fallthru
          _
      $region12: #{unet_forward.1} parent=5 // pred_fallthru
        _
      %p349 = scmp.lt.s32.totalorder %s22, 2
      // Predicated region
      $region53: #{unet_forward.1} parent=5 // pred_check
        %p350 = pneg %p349
      $region54: #{unet_forward.1} parent=5 // pred_check_branch
        %352 = sbr.rel (%p350) target = $region56
      $region55: #{unet_forward.1} parent=5 // pred_region
        // Predicated region
        $region57: #{unet_forward.1} parent=55 // pred_check
          %p353 = pneg %p42
        $region58: #{unet_forward.1} parent=55 // pred_check_branch
          %355 = sbr.rel (%p353) target = $region60
        $region59: #{unet_forward.1} parent=55 // pred_region
          %p356 = scmp.lt.s32.totalorder %s22, 1
          %s357 = scalar_select %p356, %s22, 1
          %s358 = smul.addr %s357, 4
          %s359 = smul.addr %s358, 8
          %s360 = scalar_lea.vmem %s0, %s359
        $region60: #{unet_forward.1} parent=55 // pred_fallthru
          _
      $region56: #{unet_forward.1} parent=5 // pred_fallthru
        _
      %p361 = scmp.le.s32.totalorder 1, %s22
      %p362 = scmp.lt.s32.totalorder %s22, 3
      %p363 = pnand %p361, %p362
      %p364 = pneg %p363
      // Predicated region
      $region61: #{unet_forward.1} parent=5 // pred_check
        _
      $region62: #{unet_forward.1} parent=5 // pred_check_branch
        %366 = sbr.rel (%p363) target = $region64
      $region63: #{unet_forward.1} parent=5 // pred_region
        %s367 = ssub.s32 %s22, 1
        // Predicated region
        $region65: #{unet_forward.1} parent=63 // pred_check
          %p368 = pneg %p195
        $region66: #{unet_forward.1} parent=63 // pred_check_branch
          %370 = sbr.rel (%p368) target = $region68
        $region67: #{unet_forward.1} parent=63 // pred_region
          %371 = dma.done [#allocation3], 16384
        $region68: #{unet_forward.1} parent=63 // pred_fallthru
          _
        // Predicated region
        $region69: #{unet_forward.1} parent=63 // pred_check
          %p372 = pneg %p237
        $region70: #{unet_forward.1} parent=63 // pred_check_branch
          %374 = sbr.rel (%p372) target = $region72
        $region71: #{unet_forward.1} parent=63 // pred_region
          %375 = dma.done [#allocation6], 16384
        $region72: #{unet_forward.1} parent=63 // pred_fallthru
          _
        %p376 = scmp.lt.s32.totalorder %s27, 1
        %s377 = scalar_select %p376, %s27, 1
        %s378 = smul.addr %s377, 4
        %s379 = smul.addr %s378, 8
        %s380 = scalar_lea.vmem %s0, %s379
        %p381 = pneg %p48
        %p382 = pneg %p45
        %p383 = pneg %p69
        %p384 = pneg %p66
        %p385 = pneg %p90
        %p386 = pneg %p87
        %p387 = pneg %p111
        %p388 = pneg %p108
        %p389 = pneg %p132
        %p390 = pneg %p129
        %p391 = pneg %p153
        %p392 = pneg %p150
        %p393 = pneg %p174
        %p394 = pneg %p171
        %p395 = pneg %p195
        %p396 = pneg %p192
        %p397 = pneg %p216
        %p398 = pneg %p213
        %p399 = pneg %p237
        %p400 = pneg %p234
        %p401 = pneg %p258
        %p402 = pneg %p255
        %p403 = pneg %p284
        %p404 = pneg %p281
        %s405 = sand.u32 %s271, 1
        %s406 = scalar_lea.sflag [#allocation4], %s405
        %s407 = sand.u32 %s271, 1
        %s408 = smul.addr %s407, 32
        %s409 = scalar_lea.vmem [#allocation7], %s408
        %p410 = scmp.lt.s32.totalorder %s27, 1
        %s411 = scalar_select %p410, %s27, 1
        %s412 = smul.addr %s411, 4
        %s413 = smul.addr %s412, 8
        %s414 = scalar_lea.vmem %s0, %s413
        %v415 = vld [vmem:[%s414] sm:$0xff]
        %v416 = vld [vmem:[%s414 + $0x8] sm:$0xff]
        %v417 = vld [vmem:[%s414 + $0x10] sm:$0xff]
        %v418 = vld [vmem:[%s414 + $0x18] sm:$0xff]
        %v419 = vld [vmem:[%s2] sm:$0xff]
        %v420 = vld [vmem:[%s2 + $0x8] sm:$0xff]
        %v421 = vld [vmem:[%s1] sm:$0xff]
        %v422 = vld [vmem:[%s1 + $0x8] sm:$0xff]
        %v423 = vld [vmem:[%s3] sm:$0xff]
        %v424 = vld [vmem:[%s4] sm:$0xff]
        %v425 = vlaneseq
        %v426 = vand.u32 %v425, 127
        %v427 = vadd.s32 %v426, 128
        %v428 = vadd.s32 %v426, 256
        %v429 = vadd.s32 %v426, 384
        %vm430 = vcmp.gt.s32.totalorder %v426, 0
        %vm431 = vcmp.gt.s32.totalorder %v427, 0
        %vm432 = vcmp.gt.s32.totalorder %v428, 0
        %vm433 = vcmp.gt.s32.totalorder %v429, 0
        %v434 = vsel %vm430, 1, 0
        %v435 = vsel %vm431, 1, 0
        %v436 = vsel %vm432, 1, 0
        %v437 = vsel %vm433, 1, 0
        %v438 = vcvt.s32.f32 %v434
        %v439 = vcvt.s32.f32 %v435
        %v440 = vcvt.s32.f32 %v436
        %v441 = vcvt.s32.f32 %v437
        %vm442 = vcmp.lt.s32.totalorder %v426, 511
        %vm443 = vcmp.lt.s32.totalorder %v427, 511
        %vm444 = vcmp.lt.s32.totalorder %v428, 511
        %vm445 = vcmp.lt.s32.totalorder %v429, 511
        %v446 = vsel %vm442, 1, 0
        %v447 = vsel %vm443, 1, 0
        %v448 = vsel %vm444, 1, 0
        %v449 = vsel %vm445, 1, 0
        %v450 = vcvt.s32.f32 %v446
        %v451 = vcvt.s32.f32 %v447
        %v452 = vcvt.s32.f32 %v448
        %v453 = vcvt.s32.f32 %v449
        %455 = vset.pattern.permute.xlu0 0
        %456 = vperm.xlu0 %455, %v419
        %v457 = vpop.permute.xlu0 %456
        %460 = vset.pattern.permute.xlu0 0
        %461 = vperm.xlu0 %460, %v420
        %v462 = vpop.permute.xlu0 %461
        %vm464 = vcmask 64512
        %v466 = vsel %vm464, %v421, 0
        %v469 = vsel %vm464, %v422, 0
        %471 = vmatprep.subr.mxu0 0.0
        %472 = vmatpush1.msra.mxu0 0.0
        %473 = vmatprep.subr.mxu0 0.0
        %474 = vmatpush1.msra.mxu0 0.0
        %475 = vmatprep.subr.mxu0 0.0
        %476 = vmatpush1.msra.mxu0 0.0
        %477 = vmatprep.subr.mxu0 0.0
        %478 = vmatpush1.msra.mxu0 0.0
        %479 = vmatprep.subr.mxu0 0.0
        %480 = vmatpush1.msra.mxu0 0.0
        %481 = vmatprep.subr.mxu0 0.0
        %482 = vmatpush1.msra.mxu0 0.0
        %483 = vmatprep.subr.mxu0 0.0
        %484 = vmatpush1.msra.mxu0 0.0
        %485 = vmatprep.subr.mxu0 0.0
        %486 = vmatpush1.msra.mxu0 0.0
        %487 = vmatprep.subr.mxu0 0.0
        %488 = vmatpush1.msra.mxu0 0.0
        %489 = vmatprep.subr.mxu0 0.0
        %490 = vmatpush1.msra.mxu0 0.0
        %491 = vmatprep.subr.mxu0 0.0
        %492 = vmatpush1.msra.mxu0 0.0
        %493 = vmatprep.subr.mxu0 0.0
        %494 = vmatpush1.msra.mxu0 0.0
        %495 = vmatprep.subr.mxu0 0.0
        %496 = vmatpush1.msra.mxu0 0.0
        %497 = vmatprep.subr.mxu0 0.0
        %498 = vmatpush1.msra.mxu0 0.0
        %499 = vmatprep.subr.mxu0 0.0
        %500 = vmatpush1.msra.mxu0 0.0
        %501 = vmatprep.subr.mxu0 %v416
        %502 = vmatpush1.msra.mxu0 %v415
        %503 = vmatprep.subr.mxu0 0.0
        %504 = vmatpush2.msra.mxu0 0.0
        %505 = vmatprep.subr.mxu0 0.0
        %506 = vmatpush2.msra.mxu0 0.0
        %507 = vmatprep.subr.mxu0 0.0
        %508 = vmatpush2.msra.mxu0 0.0
        %509 = vmatprep.subr.mxu0 0.0
        %510 = vmatpush2.msra.mxu0 0.0
        %511 = vmatprep.subr.mxu0 0.0
        %512 = vmatpush2.msra.mxu0 0.0
        %513 = vmatprep.subr.mxu0 0.0
        %514 = vmatpush2.msra.mxu0 0.0
        %515 = vmatprep.subr.mxu0 0.0
        %516 = vmatpush2.msra.mxu0 0.0
        %517 = vmatprep.subr.mxu0 0.0
        %518 = vmatpush2.msra.mxu0 0.0
        %519 = vmatprep.subr.mxu0 0.0
        %520 = vmatpush2.msra.mxu0 0.0
        %521 = vmatprep.subr.mxu0 0.0
        %522 = vmatpush2.msra.mxu0 0.0
        %523 = vmatprep.subr.mxu0 0.0
        %524 = vmatpush2.msra.mxu0 0.0
        %525 = vmatprep.subr.mxu0 0.0
        %526 = vmatpush2.msra.mxu0 0.0
        %527 = vmatprep.subr.mxu0 0.0
        %528 = vmatpush2.msra.mxu0 0.0
        %529 = vmatprep.subr.mxu0 0.0
        %530 = vmatpush2.msra.mxu0 0.0
        %531 = vmatprep.subr.mxu0 0.0
        %532 = vmatpush2.msra.mxu0 0.0
        %533 = vmatprep.subr.mxu0 0.0
        %534 = vmatpush2.msra.mxu0 0.0
        %535 = vmatprep.mubr.f32.mxu0 0.0
        %536 = vmatmul.mubr.f32.gmra.mxu0 %v466
        %v537 = vpop.f32.mrf.mxu0
        %v538 = vadd.f32 %v457, %v537
        %v539 = vpop.f32.mrf.mxu0
        %v540 = vadd.f32 %v457, %v539
        %541 = vmatprep.mubr.f32.mxu0 0.0
        %542 = vmatmul.mubr.f32.gmra.mxu0 %v469
        %v543 = vpop.f32.mrf.mxu0
        %v544 = vadd.f32 %v462, %v543
        %v545 = vpop.f32.mrf.mxu0
        %v546 = vadd.f32 %v462, %v545
        %547 = vdwg.mxu0
        %548 = vmatprep.subr.mxu0 0.0
        %549 = vmatpush1.msra.mxu0 0.0
        %550 = vmatprep.subr.mxu0 0.0
        %551 = vmatpush1.msra.mxu0 0.0
        %552 = vmatprep.subr.mxu0 0.0
        %553 = vmatpush1.msra.mxu0 0.0
        %554 = vmatprep.subr.mxu0 0.0
        %555 = vmatpush1.msra.mxu0 0.0
        %556 = vmatprep.subr.mxu0 0.0
        %557 = vmatpush1.msra.mxu0 0.0
        %558 = vmatprep.subr.mxu0 0.0
        %559 = vmatpush1.msra.mxu0 0.0
        %560 = vmatprep.subr.mxu0 0.0
        %561 = vmatpush1.msra.mxu0 0.0
        %562 = vmatprep.subr.mxu0 0.0
        %563 = vmatpush1.msra.mxu0 0.0
        %564 = vmatprep.subr.mxu0 0.0
        %565 = vmatpush1.msra.mxu0 0.0
        %566 = vmatprep.subr.mxu0 0.0
        %567 = vmatpush1.msra.mxu0 0.0
        %568 = vmatprep.subr.mxu0 0.0
        %569 = vmatpush1.msra.mxu0 0.0
        %570 = vmatprep.subr.mxu0 0.0
        %571 = vmatpush1.msra.mxu0 0.0
        %572 = vmatprep.subr.mxu0 0.0
        %573 = vmatpush1.msra.mxu0 0.0
        %574 = vmatprep.subr.mxu0 0.0
        %575 = vmatpush1.msra.mxu0 0.0
        %576 = vmatprep.subr.mxu0 0.0
        %577 = vmatpush1.msra.mxu0 0.0
        %578 = vmatprep.subr.mxu0 %v418
        %579 = vmatpush1.msra.mxu0 %v417
        %580 = vmatprep.subr.mxu0 0.0
        %581 = vmatpush2.msra.mxu0 0.0
        %582 = vmatprep.subr.mxu0 0.0
        %583 = vmatpush2.msra.mxu0 0.0
        %584 = vmatprep.subr.mxu0 0.0
        %585 = vmatpush2.msra.mxu0 0.0
        %586 = vmatprep.subr.mxu0 0.0
        %587 = vmatpush2.msra.mxu0 0.0
        %588 = vmatprep.subr.mxu0 0.0
        %589 = vmatpush2.msra.mxu0 0.0
        %590 = vmatprep.subr.mxu0 0.0
        %591 = vmatpush2.msra.mxu0 0.0
        %592 = vmatprep.subr.mxu0 0.0
        %593 = vmatpush2.msra.mxu0 0.0
        %594 = vmatprep.subr.mxu0 0.0
        %595 = vmatpush2.msra.mxu0 0.0
        %596 = vmatprep.subr.mxu0 0.0
        %597 = vmatpush2.msra.mxu0 0.0
        %598 = vmatprep.subr.mxu0 0.0
        %599 = vmatpush2.msra.mxu0 0.0
        %600 = vmatprep.subr.mxu0 0.0
        %601 = vmatpush2.msra.mxu0 0.0
        %602 = vmatprep.subr.mxu0 0.0
        %603 = vmatpush2.msra.mxu0 0.0
        %604 = vmatprep.subr.mxu0 0.0
        %605 = vmatpush2.msra.mxu0 0.0
        %606 = vmatprep.subr.mxu0 0.0
        %607 = vmatpush2.msra.mxu0 0.0
        %608 = vmatprep.subr.mxu0 0.0
        %609 = vmatpush2.msra.mxu0 0.0
        %610 = vmatprep.subr.mxu0 0.0
        %611 = vmatpush2.msra.mxu0 0.0
        %612 = vmatprep.mubr.f32.mxu0 0.0
        %613 = vmatmul.mubr.f32.gmra.mxu0 %v466
        %v614 = vpop.f32.mrf.mxu0
        %v615 = vadd.f32 %v457, %v614
        %v616 = vpop.f32.mrf.mxu0
        %v617 = vadd.f32 %v457, %v616
        %618 = vmatprep.mubr.f32.mxu0 0.0
        %619 = vmatmul.mubr.f32.gmra.mxu0 %v469
        %v620 = vpop.f32.mrf.mxu0
        %v621 = vadd.f32 %v462, %v620
        %v622 = vpop.f32.mrf.mxu0
        %v623 = vadd.f32 %v462, %v622
        %624 = vdwg.mxu0
        %v625 = vadd.f32 %v538, %v540
        %v626 = vadd.f32 %v625, %v615
        %v627 = vadd.f32 %v626, %v617
        %v628 = vadd.f32 %v627, %v544
        %v629 = vadd.f32 %v628, %v546
        %v630 = vadd.f32 %v629, %v621
        %v631 = vadd.f32 %v630, %v623
        %632 = vadd.xlane.f32.xlu0 %v631
        %v633 = vpop.xlane.xlu0 %632
        %v634 = vrot.slane %v633, 4
        %v635 = vadd.f32 %v633, %v634
        %v636 = vrot.slane %v635, 2
        %v637 = vadd.f32 %v635, %v636
        %v638 = vrot.slane %v637, 1
        %v639 = vadd.f32 %v637, %v638
        %s640 = vtos %v639
        %s641 = smul.f32 %s640, 0.00012207031
        %v642 = vmul.f32 %v538, %v538
        %v643 = vmul.f32 %v540, %v540
        %v644 = vmul.f32 %v615, %v615
        %v645 = vmul.f32 %v617, %v617
        %v646 = vmul.f32 %v544, %v544
        %v647 = vmul.f32 %v546, %v546
        %v648 = vmul.f32 %v621, %v621
        %v649 = vmul.f32 %v623, %v623
        %v650 = vadd.f32 %v642, %v643
        %v651 = vadd.f32 %v650, %v644
        %v652 = vadd.f32 %v651, %v645
        %v653 = vadd.f32 %v652, %v646
        %v654 = vadd.f32 %v653, %v647
        %v655 = vadd.f32 %v654, %v648
        %v656 = vadd.f32 %v655, %v649
        %657 = vadd.xlane.f32.xlu0 %v656
        %v658 = vpop.xlane.xlu0 %657
        %v659 = vrot.slane %v658, 4
        %v660 = vadd.f32 %v658, %v659
        %v661 = vrot.slane %v660, 2
        %v662 = vadd.f32 %v660, %v661
        %v663 = vrot.slane %v662, 1
        %v664 = vadd.f32 %v662, %v663
        %s665 = vtos %v664
        %s666 = smul.f32 %s665, 0.00012207031
        %s667 = smul.f32 %s641, %s641
        %s668 = ssub.f32 %s666, %s667
        %v669 = vstv %s641
        %v670 = vsub.f32 %v538, %v669
        %v671 = vsub.f32 %v540, %v669
        %v672 = vsub.f32 %v615, %v669
        %v673 = vsub.f32 %v617, %v669
        %v674 = vsub.f32 %v544, %v669
        %v675 = vsub.f32 %v546, %v669
        %v676 = vsub.f32 %v621, %v669
        %v677 = vsub.f32 %v623, %v669
        %s678 = sadd.f32 %s668, 1e-05
        %v679 = vstv %s678
        %v680 = vrsqrt.pop %v679
        %s681 = vtos %v680
        %v682 = vstv %s681
        %v683 = vmul.f32 %v682, %v419
        %v684 = vmul.f32 %v682, %v420
        %686 = vset.pattern.permute.xlu0 1
        %687 = vperm.xlu0 %686, %v683
        %v688 = vpop.permute.xlu0 %687
        %691 = vset.pattern.permute.xlu0 1
        %692 = vperm.xlu0 %691, %v684
        %v693 = vpop.permute.xlu0 %692
        %v695 = vmul.f32 %v670, %v688
        %v696 = vmul.f32 %v671, %v688
        %v697 = vmul.f32 %v672, %v688
        %v698 = vmul.f32 %v673, %v688
        %v699 = vmul.f32 %v674, %v693
        %v700 = vmul.f32 %v675, %v693
        %v701 = vmul.f32 %v676, %v693
        %v702 = vmul.f32 %v677, %v693
        %703 = vset.pattern.permute.xlu0 2
        %704 = vperm.xlu0 %703, %v419
        %v705 = vpop.permute.xlu0 %704
        %707 = vset.pattern.permute.xlu0 2
        %708 = vperm.xlu0 %707, %v420
        %v709 = vpop.permute.xlu0 %708
        %v711 = vadd.f32 %v695, %v705
        %v712 = vadd.f32 %v696, %v705
        %v713 = vadd.f32 %v697, %v705
        %v714 = vadd.f32 %v698, %v705
        %v715 = vadd.f32 %v699, %v709
        %v716 = vadd.f32 %v700, %v709
        %v717 = vadd.f32 %v701, %v709
        %v718 = vadd.f32 %v702, %v709
        %v719 = vxor.u32 %v711, 2147483648
        %v720 = vxor.u32 %v712, 2147483648
        %v721 = vxor.u32 %v713, 2147483648
        %v722 = vxor.u32 %v714, 2147483648
        %v723 = vxor.u32 %v715, 2147483648
        %v724 = vxor.u32 %v716, 2147483648
        %v725 = vxor.u32 %v717, 2147483648
        %v726 = vxor.u32 %v718, 2147483648
        %v727 = vmul.f32 %v719, 1.442695
        %v728 = vpow.pop %v727
        %v729 = vmul.f32 %v720, 1.442695
        %v730 = vpow.pop %v729
        %v731 = vmul.f32 %v721, 1.442695
        %v732 = vpow.pop %v731
        %v733 = vmul.f32 %v722, 1.442695
        %v734 = vpow.pop %v733
        %v735 = vmul.f32 %v723, 1.442695
        %v736 = vpow.pop %v735
        %v737 = vmul.f32 %v724, 1.442695
        %v738 = vpow.pop %v737
        %v739 = vmul.f32 %v725, 1.442695
        %v740 = vpow.pop %v739
        %v741 = vmul.f32 %v726, 1.442695
        %v742 = vpow.pop %v741
        %v743 = vadd.f32 %v728, 1.0
        %v744 = vadd.f32 %v730, 1.0
        %v745 = vadd.f32 %v732, 1.0
        %v746 = vadd.f32 %v734, 1.0
        %v747 = vadd.f32 %v736, 1.0
        %v748 = vadd.f32 %v738, 1.0
        %v749 = vadd.f32 %v740, 1.0
        %v750 = vadd.f32 %v742, 1.0
        %v751 = vrcp.pop %v743
        %v752 = vmul.f32 1.0, %v751
        %v753 = vrcp.pop %v744
        %v754 = vmul.f32 1.0, %v753
        %v755 = vrcp.pop %v745
        %v756 = vmul.f32 1.0, %v755
        %v757 = vrcp.pop %v746
        %v758 = vmul.f32 1.0, %v757
        %v759 = vrcp.pop %v747
        %v760 = vmul.f32 1.0, %v759
        %v761 = vrcp.pop %v748
        %v762 = vmul.f32 1.0, %v761
        %v763 = vrcp.pop %v749
        %v764 = vmul.f32 1.0, %v763
        %v765 = vrcp.pop %v750
        %v766 = vmul.f32 1.0, %v765
        %v767 = vmul.f32 %v711, %v752
        %v768 = vmul.f32 %v712, %v754
        %v769 = vmul.f32 %v713, %v756
        %v770 = vmul.f32 %v714, %v758
        %v771 = vmul.f32 %v715, %v760
        %v772 = vmul.f32 %v716, %v762
        %v773 = vmul.f32 %v717, %v764
        %v774 = vmul.f32 %v718, %v766
        %775 = vrot.lane.b32.xlu0 %v767, 1
        %v776 = vpop.permute.xlu0 %775
        %777 = vrot.lane.b32.xlu0 %v771, 1
        %v778 = vpop.permute.xlu0 %777
        %779 = vrot.lane.b32.xlu0 %v768, 1
        %v780 = vpop.permute.xlu0 %779
        %781 = vrot.lane.b32.xlu0 %v772, 1
        %v782 = vpop.permute.xlu0 %781
        %783 = vrot.lane.b32.xlu0 %v769, 1
        %v784 = vpop.permute.xlu0 %783
        %785 = vrot.lane.b32.xlu0 %v773, 1
        %v786 = vpop.permute.xlu0 %785
        %787 = vrot.lane.b32.xlu0 %v770, 1
        %v788 = vpop.permute.xlu0 %787
        %789 = vrot.lane.b32.xlu0 %v774, 1
        %v790 = vpop.permute.xlu0 %789
        %vm791 = vcmp.lt.s32.totalorder %v426, 1
        %v792 = vsel %vm791, %v784, %v788
        %v793 = vsel %vm791, %v786, %v790
        %v794 = vsel %vm791, %v780, %v784
        %v795 = vsel %vm791, %v782, %v786
        %v796 = vsel %vm791, %v776, %v780
        %v797 = vsel %vm791, %v778, %v782
        %v798 = vsel %vm791, %v788, %v776
        %v799 = vsel %vm791, %v790, %v778
        %v800 = vmul.f32 %v798, %v438
        %v801 = vmul.f32 %v796, %v439
        %v802 = vmul.f32 %v794, %v440
        %v803 = vmul.f32 %v792, %v441
        %v804 = vmul.f32 %v799, %v438
        %v805 = vmul.f32 %v797, %v439
        %v806 = vmul.f32 %v795, %v440
        %v807 = vmul.f32 %v793, %v441
        %808 = vrot.lane.b32.xlu0 %v767, 127
        %v809 = vpop.permute.xlu0 %808
        %810 = vrot.lane.b32.xlu0 %v771, 127
        %v811 = vpop.permute.xlu0 %810
        %812 = vrot.lane.b32.xlu0 %v768, 127
        %v813 = vpop.permute.xlu0 %812
        %814 = vrot.lane.b32.xlu0 %v772, 127
        %v815 = vpop.permute.xlu0 %814
        %816 = vrot.lane.b32.xlu0 %v769, 127
        %v817 = vpop.permute.xlu0 %816
        %818 = vrot.lane.b32.xlu0 %v773, 127
        %v819 = vpop.permute.xlu0 %818
        %820 = vrot.lane.b32.xlu0 %v770, 127
        %v821 = vpop.permute.xlu0 %820
        %822 = vrot.lane.b32.xlu0 %v774, 127
        %v823 = vpop.permute.xlu0 %822
        %vm824 = vcmp.lt.s32.totalorder %v426, 127
        %v825 = vsel %vm824, %v817, %v821
        %v826 = vsel %vm824, %v819, %v823
        %v827 = vsel %vm824, %v813, %v817
        %v828 = vsel %vm824, %v815, %v819
        %v829 = vsel %vm824, %v809, %v813
        %v830 = vsel %vm824, %v811, %v815
        %v831 = vsel %vm824, %v821, %v809
        %v832 = vsel %vm824, %v823, %v811
        %v833 = vmul.f32 %v829, %v450
        %v834 = vmul.f32 %v827, %v451
        %v835 = vmul.f32 %v825, %v452
        %v836 = vmul.f32 %v831, %v453
        %v837 = vmul.f32 %v830, %v450
        %v838 = vmul.f32 %v828, %v451
        %v839 = vmul.f32 %v826, %v452
        %v840 = vmul.f32 %v832, %v453
        %v841 = vmul.f32 %v800, 0.25
        %v842 = vmul.f32 %v801, 0.25
        %v843 = vmul.f32 %v802, 0.25
        %v844 = vmul.f32 %v803, 0.25
        %v845 = vmul.f32 %v804, 0.25
        %v846 = vmul.f32 %v805, 0.25
        %v847 = vmul.f32 %v806, 0.25
        %v848 = vmul.f32 %v807, 0.25
        %v849 = vmul.f32 %v767, 0.5
        %v850 = vmul.f32 %v768, 0.5
        %v851 = vmul.f32 %v769, 0.5
        %v852 = vmul.f32 %v770, 0.5
        %v853 = vmul.f32 %v771, 0.5
        %v854 = vmul.f32 %v772, 0.5
        %v855 = vmul.f32 %v773, 0.5
        %v856 = vmul.f32 %v774, 0.5
        %v857 = vadd.f32 %v841, %v849
        %v858 = vadd.f32 %v842, %v850
        %v859 = vadd.f32 %v843, %v851
        %v860 = vadd.f32 %v844, %v852
        %v861 = vadd.f32 %v845, %v853
        %v862 = vadd.f32 %v846, %v854
        %v863 = vadd.f32 %v847, %v855
        %v864 = vadd.f32 %v848, %v856
        %v865 = vmul.f32 %v833, 0.25
        %v866 = vmul.f32 %v834, 0.25
        %v867 = vmul.f32 %v835, 0.25
        %v868 = vmul.f32 %v836, 0.25
        %v869 = vmul.f32 %v837, 0.25
        %v870 = vmul.f32 %v838, 0.25
        %v871 = vmul.f32 %v839, 0.25
        %v872 = vmul.f32 %v840, 0.25
        %v873 = vadd.f32 %v857, %v865
        %v874 = vadd.f32 %v858, %v866
        %v875 = vadd.f32 %v859, %v867
        %v876 = vadd.f32 %v860, %v868
        %v877 = vadd.f32 %v861, %v869
        %v878 = vadd.f32 %v862, %v870
        %v879 = vadd.f32 %v863, %v871
        %v880 = vadd.f32 %v864, %v872
        %882 = vset.pattern.permute.xlu0 0
        %883 = vperm.xlu0 %882, %v424
        %v884 = vpop.permute.xlu0 %883
        %vm886 = vcmask 130048
        %v888 = vsel %vm886, %v423, 0
        %890 = vmatprep.subr.mxu0 0.0
        %891 = vmatpush1.msra.mxu0 0.0
        %892 = vmatprep.subr.mxu0 0.0
        %893 = vmatpush1.msra.mxu0 0.0
        %894 = vmatprep.subr.mxu0 0.0
        %895 = vmatpush1.msra.mxu0 0.0
        %896 = vmatprep.subr.mxu0 0.0
        %897 = vmatpush1.msra.mxu0 0.0
        %898 = vmatprep.subr.mxu0 0.0
        %899 = vmatpush1.msra.mxu0 0.0
        %900 = vmatprep.subr.mxu0 0.0
        %901 = vmatpush1.msra.mxu0 0.0
        %902 = vmatprep.subr.mxu0 0.0
        %903 = vmatpush1.msra.mxu0 0.0
        %904 = vmatprep.subr.mxu0 0.0
        %905 = vmatpush1.msra.mxu0 0.0
        %906 = vmatprep.subr.mxu0 0.0
        %907 = vmatpush1.msra.mxu0 0.0
        %908 = vmatprep.subr.mxu0 0.0
        %909 = vmatpush1.msra.mxu0 0.0
        %910 = vmatprep.subr.mxu0 0.0
        %911 = vmatpush1.msra.mxu0 0.0
        %912 = vmatprep.subr.mxu0 0.0
        %913 = vmatpush1.msra.mxu0 0.0
        %914 = vmatprep.subr.mxu0 0.0
        %915 = vmatpush1.msra.mxu0 0.0
        %916 = vmatprep.subr.mxu0 0.0
        %917 = vmatpush1.msra.mxu0 0.0
        %918 = vmatprep.subr.mxu0 %v878
        %919 = vmatpush1.msra.mxu0 %v877
        %920 = vmatprep.subr.mxu0 %v874
        %921 = vmatpush1.msra.mxu0 %v873
        %922 = vmatprep.subr.mxu0 0.0
        %923 = vmatpush2.msra.mxu0 0.0
        %924 = vmatprep.subr.mxu0 0.0
        %925 = vmatpush2.msra.mxu0 0.0
        %926 = vmatprep.subr.mxu0 0.0
        %927 = vmatpush2.msra.mxu0 0.0
        %928 = vmatprep.subr.mxu0 0.0
        %929 = vmatpush2.msra.mxu0 0.0
        %930 = vmatprep.subr.mxu0 0.0
        %931 = vmatpush2.msra.mxu0 0.0
        %932 = vmatprep.subr.mxu0 0.0
        %933 = vmatpush2.msra.mxu0 0.0
        %934 = vmatprep.subr.mxu0 0.0
        %935 = vmatpush2.msra.mxu0 0.0
        %936 = vmatprep.subr.mxu0 0.0
        %937 = vmatpush2.msra.mxu0 0.0
        %938 = vmatprep.subr.mxu0 0.0
        %939 = vmatpush2.msra.mxu0 0.0
        %940 = vmatprep.subr.mxu0 0.0
        %941 = vmatpush2.msra.mxu0 0.0
        %942 = vmatprep.subr.mxu0 0.0
        %943 = vmatpush2.msra.mxu0 0.0
        %944 = vmatprep.subr.mxu0 0.0
        %945 = vmatpush2.msra.mxu0 0.0
        %946 = vmatprep.subr.mxu0 0.0
        %947 = vmatpush2.msra.mxu0 0.0
        %948 = vmatprep.subr.mxu0 0.0
        %949 = vmatpush2.msra.mxu0 0.0
        %950 = vmatprep.subr.mxu0 0.0
        %951 = vmatpush2.msra.mxu0 0.0
        %952 = vmatprep.subr.mxu0 0.0
        %953 = vmatpush2.msra.mxu0 0.0
        %954 = vmatprep.mubr.f32.mxu0 0.0
        %955 = vmatmul.mubr.f32.gmra.mxu0 %v888
        %v956 = vpop.f32.mrf.mxu0
        %v957 = vadd.f32 %v884, %v956
        %v958 = vpop.f32.mrf.mxu0
        %v959 = vadd.f32 %v884, %v958
        %960 = vdwg.mxu0
        %961 = vmatprep.subr.mxu0 0.0
        %962 = vmatpush1.msra.mxu0 0.0
        %963 = vmatprep.subr.mxu0 0.0
        %964 = vmatpush1.msra.mxu0 0.0
        %965 = vmatprep.subr.mxu0 0.0
        %966 = vmatpush1.msra.mxu0 0.0
        %967 = vmatprep.subr.mxu0 0.0
        %968 = vmatpush1.msra.mxu0 0.0
        %969 = vmatprep.subr.mxu0 0.0
        %970 = vmatpush1.msra.mxu0 0.0
        %971 = vmatprep.subr.mxu0 0.0
        %972 = vmatpush1.msra.mxu0 0.0
        %973 = vmatprep.subr.mxu0 0.0
        %974 = vmatpush1.msra.mxu0 0.0
        %975 = vmatprep.subr.mxu0 0.0
        %976 = vmatpush1.msra.mxu0 0.0
        %977 = vmatprep.subr.mxu0 0.0
        %978 = vmatpush1.msra.mxu0 0.0
        %979 = vmatprep.subr.mxu0 0.0
        %980 = vmatpush1.msra.mxu0 0.0
        %981 = vmatprep.subr.mxu0 0.0
        %982 = vmatpush1.msra.mxu0 0.0
        %983 = vmatprep.subr.mxu0 0.0
        %984 = vmatpush1.msra.mxu0 0.0
        %985 = vmatprep.subr.mxu0 0.0
        %986 = vmatpush1.msra.mxu0 0.0
        %987 = vmatprep.subr.mxu0 0.0
        %988 = vmatpush1.msra.mxu0 0.0
        %989 = vmatprep.subr.mxu0 %v880
        %990 = vmatpush1.msra.mxu0 %v879
        %991 = vmatprep.subr.mxu0 %v876
        %992 = vmatpush1.msra.mxu0 %v875
        %993 = vmatprep.subr.mxu0 0.0
        %994 = vmatpush2.msra.mxu0 0.0
        %995 = vmatprep.subr.mxu0 0.0
        %996 = vmatpush2.msra.mxu0 0.0
        %997 = vmatprep.subr.mxu0 0.0
        %998 = vmatpush2.msra.mxu0 0.0
        %999 = vmatprep.subr.mxu0 0.0
        %1000 = vmatpush2.msra.mxu0 0.0
        %1001 = vmatprep.subr.mxu0 0.0
        %1002 = vmatpush2.msra.mxu0 0.0
        %1003 = vmatprep.subr.mxu0 0.0
        %1004 = vmatpush2.msra.mxu0 0.0
        %1005 = vmatprep.subr.mxu0 0.0
        %1006 = vmatpush2.msra.mxu0 0.0
        %1007 = vmatprep.subr.mxu0 0.0
        %1008 = vmatpush2.msra.mxu0 0.0
        %1009 = vmatprep.subr.mxu0 0.0
        %1010 = vmatpush2.msra.mxu0 0.0
        %1011 = vmatprep.subr.mxu0 0.0
        %1012 = vmatpush2.msra.mxu0 0.0
        %1013 = vmatprep.subr.mxu0 0.0
        %1014 = vmatpush2.msra.mxu0 0.0
        %1015 = vmatprep.subr.mxu0 0.0
        %1016 = vmatpush2.msra.mxu0 0.0
        %1017 = vmatprep.subr.mxu0 0.0
        %1018 = vmatpush2.msra.mxu0 0.0
        %1019 = vmatprep.subr.mxu0 0.0
        %1020 = vmatpush2.msra.mxu0 0.0
        %1021 = vmatprep.subr.mxu0 0.0
        %1022 = vmatpush2.msra.mxu0 0.0
        %1023 = vmatprep.subr.mxu0 0.0
        %1024 = vmatpush2.msra.mxu0 0.0
        %1025 = vmatprep.mubr.f32.mxu0 0.0
        %1026 = vmatmul.mubr.f32.gmra.mxu0 %v888
        %v1027 = vpop.f32.mrf.mxu0
        %v1028 = vadd.f32 %v884, %v1027
        %v1029 = vpop.f32.mrf.mxu0
        %v1030 = vadd.f32 %v884, %v1029
        %1031 = vdwg.mxu0
        %v1032 = vsub.f32 %v415, %v957
        %v1033 = vsub.f32 %v416, %v959
        %v1034 = vsub.f32 %v417, %v1028
        %v1035 = vsub.f32 %v418, %v1030
        %v1036 = vld [vmem:[#allocation2] sm:$0xff]
        %v1037 = vld [vmem:[#allocation2 + $0x8] sm:$0xff]
        %v1038 = vld [vmem:[#allocation2 + $0x10] sm:$0xff]
        %v1039 = vld [vmem:[#allocation2 + $0x18] sm:$0xff]
        %v1040 = vld [vmem:[#allocation2 + $0x20] sm:$0xff]
        %v1041 = vld [vmem:[#allocation2 + $0x28] sm:$0xff]
        %v1042 = vld [vmem:[#allocation2 + $0x30] sm:$0xff]
        %v1043 = vld [vmem:[#allocation2 + $0x38] sm:$0xff]
        %v1044 = vld [vmem:[#allocation2 + $0x40] sm:$0xff]
        %v1045 = vld [vmem:[#allocation2 + $0x48] sm:$0xff]
        %v1046 = vld [vmem:[#allocation2 + $0x50] sm:$0xff]
        %v1047 = vld [vmem:[#allocation2 + $0x58] sm:$0xff]
        %v1048 = vld [vmem:[#allocation2 + $0x60] sm:$0xff]
        %v1049 = vld [vmem:[#allocation2 + $0x68] sm:$0xff]
        %v1050 = vld [vmem:[#allocation2 + $0x70] sm:$0xff]
        %v1051 = vld [vmem:[#allocation2 + $0x78] sm:$0xff]
        %v1052 = vld [vmem:[#allocation2 + $0x80] sm:$0xff]
        %v1053 = vld [vmem:[#allocation2 + $0x88] sm:$0xff]
        %v1054 = vld [vmem:[#allocation2 + $0x90] sm:$0xff]
        %v1055 = vld [vmem:[#allocation2 + $0x98] sm:$0xff]
        %v1056 = vld [vmem:[#allocation2 + $0xa0] sm:$0xff]
        %v1057 = vld [vmem:[#allocation2 + $0xa8] sm:$0xff]
        %v1058 = vld [vmem:[#allocation2 + $0xb0] sm:$0xff]
        %v1059 = vld [vmem:[#allocation2 + $0xb8] sm:$0xff]
        %v1060 = vld [vmem:[#allocation2 + $0xc0] sm:$0xff]
        %v1061 = vld [vmem:[#allocation2 + $0xc8] sm:$0xff]
        %v1062 = vld [vmem:[#allocation2 + $0xd0] sm:$0xff]
        %v1063 = vld [vmem:[#allocation2 + $0xd8] sm:$0xff]
        %v1064 = vld [vmem:[#allocation2 + $0xe0] sm:$0xff]
        %v1065 = vld [vmem:[#allocation2 + $0xe8] sm:$0xff]
        %v1066 = vld [vmem:[#allocation2 + $0xf0] sm:$0xff]
        %v1067 = vld [vmem:[#allocation2 + $0xf8] sm:$0xff]
        %v1068 = vld [vmem:[#allocation2 + $0x100] sm:$0xff]
        %v1069 = vld [vmem:[#allocation2 + $0x108] sm:$0xff]
        %v1070 = vld [vmem:[#allocation2 + $0x110] sm:$0xff]
        %v1071 = vld [vmem:[#allocation2 + $0x118] sm:$0xff]
        %v1072 = vld [vmem:[#allocation2 + $0x120] sm:$0xff]
        %v1073 = vld [vmem:[#allocation2 + $0x128] sm:$0xff]
        %v1074 = vld [vmem:[#allocation2 + $0x130] sm:$0xff]
        %v1075 = vld [vmem:[#allocation2 + $0x138] sm:$0xff]
        %v1076 = vld [vmem:[#allocation2 + $0x140] sm:$0xff]
        %v1077 = vld [vmem:[#allocation2 + $0x148] sm:$0xff]
        %v1078 = vld [vmem:[#allocation2 + $0x150] sm:$0xff]
        %v1079 = vld [vmem:[#allocation2 + $0x158] sm:$0xff]
        %v1080 = vld [vmem:[#allocation2 + $0x160] sm:$0xff]
        %v1081 = vld [vmem:[#allocation2 + $0x168] sm:$0xff]
        %v1082 = vld [vmem:[#allocation2 + $0x170] sm:$0xff]
        %v1083 = vld [vmem:[#allocation2 + $0x178] sm:$0xff]
        %v1084 = vld [vmem:[#allocation2 + $0x180] sm:$0xff]
        %v1085 = vld [vmem:[#allocation2 + $0x188] sm:$0xff]
        %v1086 = vld [vmem:[#allocation2 + $0x190] sm:$0xff]
        %v1087 = vld [vmem:[#allocation2 + $0x198] sm:$0xff]
        %v1088 = vld [vmem:[#allocation2 + $0x1a0] sm:$0xff]
        %v1089 = vld [vmem:[#allocation2 + $0x1a8] sm:$0xff]
        %v1090 = vld [vmem:[#allocation2 + $0x1b0] sm:$0xff]
        %v1091 = vld [vmem:[#allocation2 + $0x1b8] sm:$0xff]
        %v1092 = vld [vmem:[#allocation2 + $0x1c0] sm:$0xff]
        %v1093 = vld [vmem:[#allocation2 + $0x1c8] sm:$0xff]
        %v1094 = vld [vmem:[#allocation2 + $0x1d0] sm:$0xff]
        %v1095 = vld [vmem:[#allocation2 + $0x1d8] sm:$0xff]
        %v1096 = vld [vmem:[#allocation2 + $0x1e0] sm:$0xff]
        %v1097 = vld [vmem:[#allocation2 + $0x1e8] sm:$0xff]
        %v1098 = vld [vmem:[#allocation2 + $0x1f0] sm:$0xff]
        %v1099 = vld [vmem:[#allocation2 + $0x1f8] sm:$0xff]
        %v1100 = vld [vmem:[#allocation2 + $0x200] sm:$0xff]
        %v1101 = vld [vmem:[#allocation2 + $0x208] sm:$0xff]
        %v1102 = vld [vmem:[#allocation2 + $0x210] sm:$0xff]
        %v1103 = vld [vmem:[#allocation2 + $0x218] sm:$0xff]
        %v1104 = vld [vmem:[#allocation2 + $0x220] sm:$0xff]
        %v1105 = vld [vmem:[#allocation2 + $0x228] sm:$0xff]
        %v1106 = vld [vmem:[#allocation2 + $0x230] sm:$0xff]
        %v1107 = vld [vmem:[#allocation2 + $0x238] sm:$0xff]
        %v1108 = vld [vmem:[#allocation2 + $0x240] sm:$0xff]
        %v1109 = vld [vmem:[#allocation2 + $0x248] sm:$0xff]
        %v1110 = vld [vmem:[#allocation2 + $0x250] sm:$0xff]
        %v1111 = vld [vmem:[#allocation2 + $0x258] sm:$0xff]
        %v1112 = vld [vmem:[#allocation2 + $0x260] sm:$0xff]
        %v1113 = vld [vmem:[#allocation2 + $0x268] sm:$0xff]
        %v1114 = vld [vmem:[#allocation2 + $0x270] sm:$0xff]
        %v1115 = vld [vmem:[#allocation2 + $0x278] sm:$0xff]
        %v1116 = vld [vmem:[#allocation2 + $0x280] sm:$0xff]
        %v1117 = vld [vmem:[#allocation2 + $0x288] sm:$0xff]
        %v1118 = vld [vmem:[#allocation2 + $0x290] sm:$0xff]
        %v1119 = vld [vmem:[#allocation2 + $0x298] sm:$0xff]
        %v1120 = vld [vmem:[#allocation2 + $0x2a0] sm:$0xff]
        %v1121 = vld [vmem:[#allocation2 + $0x2a8] sm:$0xff]
        %v1122 = vld [vmem:[#allocation2 + $0x2b0] sm:$0xff]
        %v1123 = vld [vmem:[#allocation2 + $0x2b8] sm:$0xff]
        %v1124 = vld [vmem:[#allocation2 + $0x2c0] sm:$0xff]
        %v1125 = vld [vmem:[#allocation2 + $0x2c8] sm:$0xff]
        %v1126 = vld [vmem:[#allocation2 + $0x2d0] sm:$0xff]
        %v1127 = vld [vmem:[#allocation2 + $0x2d8] sm:$0xff]
        %v1128 = vld [vmem:[#allocation2 + $0x2e0] sm:$0xff]
        %v1129 = vld [vmem:[#allocation2 + $0x2e8] sm:$0xff]
        %v1130 = vld [vmem:[#allocation2 + $0x2f0] sm:$0xff]
        %v1131 = vld [vmem:[#allocation2 + $0x2f8] sm:$0xff]
        %v1132 = vld [vmem:[#allocation2 + $0x300] sm:$0xff]
        %v1133 = vld [vmem:[#allocation2 + $0x308] sm:$0xff]
        %v1134 = vld [vmem:[#allocation2 + $0x310] sm:$0xff]
        %v1135 = vld [vmem:[#allocation2 + $0x318] sm:$0xff]
        %v1136 = vld [vmem:[#allocation2 + $0x320] sm:$0xff]
        %v1137 = vld [vmem:[#allocation2 + $0x328] sm:$0xff]
        %v1138 = vld [vmem:[#allocation2 + $0x330] sm:$0xff]
        %v1139 = vld [vmem:[#allocation2 + $0x338] sm:$0xff]
        %v1140 = vld [vmem:[#allocation2 + $0x340] sm:$0xff]
        %v1141 = vld [vmem:[#allocation2 + $0x348] sm:$0xff]
        %v1142 = vld [vmem:[#allocation2 + $0x350] sm:$0xff]
        %v1143 = vld [vmem:[#allocation2 + $0x358] sm:$0xff]
        %v1144 = vld [vmem:[#allocation2 + $0x360] sm:$0xff]
        %v1145 = vld [vmem:[#allocation2 + $0x368] sm:$0xff]
        %v1146 = vld [vmem:[#allocation2 + $0x370] sm:$0xff]
        %v1147 = vld [vmem:[#allocation2 + $0x378] sm:$0xff]
        %v1148 = vld [vmem:[#allocation2 + $0x380] sm:$0xff]
        %v1149 = vld [vmem:[#allocation2 + $0x388] sm:$0xff]
        %v1150 = vld [vmem:[#allocation2 + $0x390] sm:$0xff]
        %v1151 = vld [vmem:[#allocation2 + $0x398] sm:$0xff]
        %v1152 = vld [vmem:[#allocation2 + $0x3a0] sm:$0xff]
        %v1153 = vld [vmem:[#allocation2 + $0x3a8] sm:$0xff]
        %v1154 = vld [vmem:[#allocation2 + $0x3b0] sm:$0xff]
        %v1155 = vld [vmem:[#allocation2 + $0x3b8] sm:$0xff]
        %v1156 = vld [vmem:[#allocation2 + $0x3c0] sm:$0xff]
        %v1157 = vld [vmem:[#allocation2 + $0x3c8] sm:$0xff]
        %v1158 = vld [vmem:[#allocation2 + $0x3d0] sm:$0xff]
        %v1159 = vld [vmem:[#allocation2 + $0x3d8] sm:$0xff]
        %v1160 = vld [vmem:[#allocation2 + $0x3e0] sm:$0xff]
        %v1161 = vld [vmem:[#allocation2 + $0x3e8] sm:$0xff]
        %v1162 = vld [vmem:[#allocation2 + $0x3f0] sm:$0xff]
        %v1163 = vld [vmem:[#allocation2 + $0x3f8] sm:$0xff]
        %1164 = vmatprep.subr.mxu0 %v1067
        %1165 = vmatpush1.msra.mxu0 %v1066
        %1166 = vmatprep.subr.mxu0 %v1065
        %1167 = vmatpush1.msra.mxu0 %v1064
        %1168 = vmatprep.subr.mxu0 %v1063
        %1169 = vmatpush1.msra.mxu0 %v1062
        %1170 = vmatprep.subr.mxu0 %v1061
        %1171 = vmatpush1.msra.mxu0 %v1060
        %1172 = vmatprep.subr.mxu0 %v1059
        %1173 = vmatpush1.msra.mxu0 %v1058
        %1174 = vmatprep.subr.mxu0 %v1057
        %1175 = vmatpush1.msra.mxu0 %v1056
        %1176 = vmatprep.subr.mxu0 %v1055
        %1177 = vmatpush1.msra.mxu0 %v1054
        %1178 = vmatprep.subr.mxu0 %v1053
        %1179 = vmatpush1.msra.mxu0 %v1052
        %1180 = vmatprep.subr.mxu0 %v1051
        %1181 = vmatpush1.msra.mxu0 %v1050
        %1182 = vmatprep.subr.mxu0 %v1049
        %1183 = vmatpush1.msra.mxu0 %v1048
        %1184 = vmatprep.subr.mxu0 %v1047
        %1185 = vmatpush1.msra.mxu0 %v1046
        %1186 = vmatprep.subr.mxu0 %v1045
        %1187 = vmatpush1.msra.mxu0 %v1044
        %1188 = vmatprep.subr.mxu0 %v1043
        %1189 = vmatpush1.msra.mxu0 %v1042
        %1190 = vmatprep.subr.mxu0 %v1041
        %1191 = vmatpush1.msra.mxu0 %v1040
        %1192 = vmatprep.subr.mxu0 %v1039
        %1193 = vmatpush1.msra.mxu0 %v1038
        %1194 = vmatprep.subr.mxu0 %v1037
        %1195 = vmatpush1.msra.mxu0 %v1036
        %1196 = vmatprep.subr.mxu0 %v1099
        %1197 = vmatpush2.msra.mxu0 %v1098
        %1198 = vmatprep.subr.mxu0 %v1097
        %1199 = vmatpush2.msra.mxu0 %v1096
        %1200 = vmatprep.subr.mxu0 %v1095
        %1201 = vmatpush2.msra.mxu0 %v1094
        %1202 = vmatprep.subr.mxu0 %v1093
        %1203 = vmatpush2.msra.mxu0 %v1092
        %1204 = vmatprep.subr.mxu0 %v1091
        %1205 = vmatpush2.msra.mxu0 %v1090
        %1206 = vmatprep.subr.mxu0 %v1089
        %1207 = vmatpush2.msra.mxu0 %v1088
        %1208 = vmatprep.subr.mxu0 %v1087
        %1209 = vmatpush2.msra.mxu0 %v1086
        %1210 = vmatprep.subr.mxu0 %v1085
        %1211 = vmatpush2.msra.mxu0 %v1084
        %1212 = vmatprep.subr.mxu0 %v1083
        %1213 = vmatpush2.msra.mxu0 %v1082
        %1214 = vmatprep.subr.mxu0 %v1081
        %1215 = vmatpush2.msra.mxu0 %v1080
        %1216 = vmatprep.subr.mxu0 %v1079
        %1217 = vmatpush2.msra.mxu0 %v1078
        %1218 = vmatprep.subr.mxu0 %v1077
        %1219 = vmatpush2.msra.mxu0 %v1076
        %1220 = vmatprep.subr.mxu0 %v1075
        %1221 = vmatpush2.msra.mxu0 %v1074
        %1222 = vmatprep.subr.mxu0 %v1073
        %1223 = vmatpush2.msra.mxu0 %v1072
        %1224 = vmatprep.subr.mxu0 %v1071
        %1225 = vmatpush2.msra.mxu0 %v1070
        %1226 = vmatprep.subr.mxu0 %v1069
        %1227 = vmatpush2.msra.mxu0 %v1068
        %1228 = vmatprep.mubr.f32.mxu0 %v1033
        %1229 = vmatmul.mubr.f32.gmra.mxu0 %v1032
        %v1230 = vpop.f32.mrf.mxu0
        %v1231 = vadd.f32 0.0, %v1230
        %v1232 = vpop.f32.mrf.mxu0
        %v1233 = vadd.f32 0.0, %v1232
        %1234 = vdwg.mxu0
        %1235 = vmatprep.subr.mxu0 %v1131
        %1236 = vmatpush1.msra.mxu0 %v1130
        %1237 = vmatprep.subr.mxu0 %v1129
        %1238 = vmatpush1.msra.mxu0 %v1128
        %1239 = vmatprep.subr.mxu0 %v1127
        %1240 = vmatpush1.msra.mxu0 %v1126
        %1241 = vmatprep.subr.mxu0 %v1125
        %1242 = vmatpush1.msra.mxu0 %v1124
        %1243 = vmatprep.subr.mxu0 %v1123
        %1244 = vmatpush1.msra.mxu0 %v1122
        %1245 = vmatprep.subr.mxu0 %v1121
        %1246 = vmatpush1.msra.mxu0 %v1120
        %1247 = vmatprep.subr.mxu0 %v1119
        %1248 = vmatpush1.msra.mxu0 %v1118
        %1249 = vmatprep.subr.mxu0 %v1117
        %1250 = vmatpush1.msra.mxu0 %v1116
        %1251 = vmatprep.subr.mxu0 %v1115
        %1252 = vmatpush1.msra.mxu0 %v1114
        %1253 = vmatprep.subr.mxu0 %v1113
        %1254 = vmatpush1.msra.mxu0 %v1112
        %1255 = vmatprep.subr.mxu0 %v1111
        %1256 = vmatpush1.msra.mxu0 %v1110
        %1257 = vmatprep.subr.mxu0 %v1109
        %1258 = vmatpush1.msra.mxu0 %v1108
        %1259 = vmatprep.subr.mxu0 %v1107
        %1260 = vmatpush1.msra.mxu0 %v1106
        %1261 = vmatprep.subr.mxu0 %v1105
        %1262 = vmatpush1.msra.mxu0 %v1104
        %1263 = vmatprep.subr.mxu0 %v1103
        %1264 = vmatpush1.msra.mxu0 %v1102
        %1265 = vmatprep.subr.mxu0 %v1101
        %1266 = vmatpush1.msra.mxu0 %v1100
        %1267 = vmatprep.subr.mxu0 %v1163
        %1268 = vmatpush2.msra.mxu0 %v1162
        %1269 = vmatprep.subr.mxu0 %v1161
        %1270 = vmatpush2.msra.mxu0 %v1160
        %1271 = vmatprep.subr.mxu0 %v1159
        %1272 = vmatpush2.msra.mxu0 %v1158
        %1273 = vmatprep.subr.mxu0 %v1157
        %1274 = vmatpush2.msra.mxu0 %v1156
        %1275 = vmatprep.subr.mxu0 %v1155
        %1276 = vmatpush2.msra.mxu0 %v1154
        %1277 = vmatprep.subr.mxu0 %v1153
        %1278 = vmatpush2.msra.mxu0 %v1152
        %1279 = vmatprep.subr.mxu0 %v1151
        %1280 = vmatpush2.msra.mxu0 %v1150
        %1281 = vmatprep.subr.mxu0 %v1149
        %1282 = vmatpush2.msra.mxu0 %v1148
        %1283 = vmatprep.subr.mxu0 %v1147
        %1284 = vmatpush2.msra.mxu0 %v1146
        %1285 = vmatprep.subr.mxu0 %v1145
        %1286 = vmatpush2.msra.mxu0 %v1144
        %1287 = vmatprep.subr.mxu0 %v1143
        %1288 = vmatpush2.msra.mxu0 %v1142
        %1289 = vmatprep.subr.mxu0 %v1141
        %1290 = vmatpush2.msra.mxu0 %v1140
        %1291 = vmatprep.subr.mxu0 %v1139
        %1292 = vmatpush2.msra.mxu0 %v1138
        %1293 = vmatprep.subr.mxu0 %v1137
        %1294 = vmatpush2.msra.mxu0 %v1136
        %1295 = vmatprep.subr.mxu0 %v1135
        %1296 = vmatpush2.msra.mxu0 %v1134
        %1297 = vmatprep.subr.mxu0 %v1133
        %1298 = vmatpush2.msra.mxu0 %v1132
        %1299 = vmatprep.mubr.f32.mxu0 %v1035
        %1300 = vmatmul.mubr.f32.gmra.mxu0 %v1034
        %v1301 = vpop.f32.mrf.mxu0
        %v1302 = vadd.f32 %v1231, %v1301
        %v1303 = vpop.f32.mrf.mxu0
        %v1304 = vadd.f32 %v1233, %v1303
        %1305 = vdwg.mxu0
        %s1306 = scalar_lea.vmem %s2, 16
        %v1307 = vld [vmem:[%s1306] sm:$0xff]
        %v1308 = vld [vmem:[%s1306 + $0x8] sm:$0xff]
        %s1309 = scalar_lea.vmem %s1, 16
        %v1310 = vld [vmem:[%s1309] sm:$0xff]
        %v1311 = vld [vmem:[%s1309 + $0x8] sm:$0xff]
        %s1312 = scalar_lea.vmem %s3, 8
        %v1313 = vld [vmem:[%s1312] sm:$0xff]
        %s1314 = scalar_lea.vmem %s4, 8
        %v1315 = vld [vmem:[%s1314] sm:$0xff]
        %vm1316 = vcmp.lt.s32.totalorder %v426, 255
        %vm1317 = vcmp.lt.s32.totalorder %v427, 255
        %v1318 = vsel %vm1316, 1, 0
        %v1319 = vsel %vm1317, 1, 0
        %v1320 = vcvt.s32.f32 %v1318
        %v1321 = vcvt.s32.f32 %v1319
        %1323 = vset.pattern.permute.xlu0 0
        %1324 = vperm.xlu0 %1323, %v1307
        %v1325 = vpop.permute.xlu0 %1324
        %1328 = vset.pattern.permute.xlu0 0
        %1329 = vperm.xlu0 %1328, %v1308
        %v1330 = vpop.permute.xlu0 %1329
        %v1333 = vsel %vm464, %v1310, 0
        %v1336 = vsel %vm464, %v1311, 0
        %1338 = vmatprep.subr.mxu0 0.0
        %1339 = vmatpush1.msra.mxu0 0.0
        %1340 = vmatprep.subr.mxu0 0.0
        %1341 = vmatpush1.msra.mxu0 0.0
        %1342 = vmatprep.subr.mxu0 0.0
        %1343 = vmatpush1.msra.mxu0 0.0
        %1344 = vmatprep.subr.mxu0 0.0
        %1345 = vmatpush1.msra.mxu0 0.0
        %1346 = vmatprep.subr.mxu0 0.0
        %1347 = vmatpush1.msra.mxu0 0.0
        %1348 = vmatprep.subr.mxu0 0.0
        %1349 = vmatpush1.msra.mxu0 0.0
        %1350 = vmatprep.subr.mxu0 0.0
        %1351 = vmatpush1.msra.mxu0 0.0
        %1352 = vmatprep.subr.mxu0 0.0
        %1353 = vmatpush1.msra.mxu0 0.0
        %1354 = vmatprep.subr.mxu0 0.0
        %1355 = vmatpush1.msra.mxu0 0.0
        %1356 = vmatprep.subr.mxu0 0.0
        %1357 = vmatpush1.msra.mxu0 0.0
        %1358 = vmatprep.subr.mxu0 0.0
        %1359 = vmatpush1.msra.mxu0 0.0
        %1360 = vmatprep.subr.mxu0 0.0
        %1361 = vmatpush1.msra.mxu0 0.0
        %1362 = vmatprep.subr.mxu0 0.0
        %1363 = vmatpush1.msra.mxu0 0.0
        %1364 = vmatprep.subr.mxu0 0.0
        %1365 = vmatpush1.msra.mxu0 0.0
        %1366 = vmatprep.subr.mxu0 0.0
        %1367 = vmatpush1.msra.mxu0 0.0
        %1368 = vmatprep.subr.mxu0 %v1304
        %1369 = vmatpush1.msra.mxu0 %v1302
        %1370 = vmatprep.subr.mxu0 0.0
        %1371 = vmatpush2.msra.mxu0 0.0
        %1372 = vmatprep.subr.mxu0 0.0
        %1373 = vmatpush2.msra.mxu0 0.0
        %1374 = vmatprep.subr.mxu0 0.0
        %1375 = vmatpush2.msra.mxu0 0.0
        %1376 = vmatprep.subr.mxu0 0.0
        %1377 = vmatpush2.msra.mxu0 0.0
        %1378 = vmatprep.subr.mxu0 0.0
        %1379 = vmatpush2.msra.mxu0 0.0
        %1380 = vmatprep.subr.mxu0 0.0
        %1381 = vmatpush2.msra.mxu0 0.0
        %1382 = vmatprep.subr.mxu0 0.0
        %1383 = vmatpush2.msra.mxu0 0.0
        %1384 = vmatprep.subr.mxu0 0.0
        %1385 = vmatpush2.msra.mxu0 0.0
        %1386 = vmatprep.subr.mxu0 0.0
        %1387 = vmatpush2.msra.mxu0 0.0
        %1388 = vmatprep.subr.mxu0 0.0
        %1389 = vmatpush2.msra.mxu0 0.0
        %1390 = vmatprep.subr.mxu0 0.0
        %1391 = vmatpush2.msra.mxu0 0.0
        %1392 = vmatprep.subr.mxu0 0.0
        %1393 = vmatpush2.msra.mxu0 0.0
        %1394 = vmatprep.subr.mxu0 0.0
        %1395 = vmatpush2.msra.mxu0 0.0
        %1396 = vmatprep.subr.mxu0 0.0
        %1397 = vmatpush2.msra.mxu0 0.0
        %1398 = vmatprep.subr.mxu0 0.0
        %1399 = vmatpush2.msra.mxu0 0.0
        %1400 = vmatprep.subr.mxu0 0.0
        %1401 = vmatpush2.msra.mxu0 0.0
        %1402 = vmatprep.mubr.f32.mxu0 0.0
        %1403 = vmatmul.mubr.f32.gmra.mxu0 %v1333
        %v1404 = vpop.f32.mrf.mxu0
        %v1405 = vadd.f32 %v1325, %v1404
        %v1406 = vpop.f32.mrf.mxu0
        %v1407 = vadd.f32 %v1325, %v1406
        %1408 = vmatprep.mubr.f32.mxu0 0.0
        %1409 = vmatmul.mubr.f32.gmra.mxu0 %v1336
        %v1410 = vpop.f32.mrf.mxu0
        %v1411 = vadd.f32 %v1330, %v1410
        %v1412 = vpop.f32.mrf.mxu0
        %v1413 = vadd.f32 %v1330, %v1412
        %1414 = vdwg.mxu0
        %v1415 = vadd.f32 %v1405, %v1407
        %v1416 = vadd.f32 %v1415, %v1411
        %v1417 = vadd.f32 %v1416, %v1413
        %1418 = vadd.xlane.f32.xlu0 %v1417
        %v1419 = vpop.xlane.xlu0 %1418
        %v1420 = vrot.slane %v1419, 4
        %v1421 = vadd.f32 %v1419, %v1420
        %v1422 = vrot.slane %v1421, 2
        %v1423 = vadd.f32 %v1421, %v1422
        %v1424 = vrot.slane %v1423, 1
        %v1425 = vadd.f32 %v1423, %v1424
        %s1426 = vtos %v1425
        %s1427 = smul.f32 %s1426, 0.00024414063
        %v1428 = vmul.f32 %v1405, %v1405
        %v1429 = vmul.f32 %v1407, %v1407
        %v1430 = vmul.f32 %v1411, %v1411
        %v1431 = vmul.f32 %v1413, %v1413
        %v1432 = vadd.f32 %v1428, %v1429
        %v1433 = vadd.f32 %v1432, %v1430
        %v1434 = vadd.f32 %v1433, %v1431
        %1435 = vadd.xlane.f32.xlu0 %v1434
        %v1436 = vpop.xlane.xlu0 %1435
        %v1437 = vrot.slane %v1436, 4
        %v1438 = vadd.f32 %v1436, %v1437
        %v1439 = vrot.slane %v1438, 2
        %v1440 = vadd.f32 %v1438, %v1439
        %v1441 = vrot.slane %v1440, 1
        %v1442 = vadd.f32 %v1440, %v1441
        %s1443 = vtos %v1442
        %s1444 = smul.f32 %s1443, 0.00024414063
        %s1445 = smul.f32 %s1427, %s1427
        %s1446 = ssub.f32 %s1444, %s1445
        %v1447 = vstv %s1427
        %v1448 = vsub.f32 %v1405, %v1447
        %v1449 = vsub.f32 %v1407, %v1447
        %v1450 = vsub.f32 %v1411, %v1447
        %v1451 = vsub.f32 %v1413, %v1447
        %s1452 = sadd.f32 %s1446, 1e-05
        %v1453 = vstv %s1452
        %v1454 = vrsqrt.pop %v1453
        %s1455 = vtos %v1454
        %v1456 = vstv %s1455
        %v1457 = vmul.f32 %v1456, %v1307
        %v1458 = vmul.f32 %v1456, %v1308
        %1460 = vset.pattern.permute.xlu0 1
        %1461 = vperm.xlu0 %1460, %v1457
        %v1462 = vpop.permute.xlu0 %1461
        %1465 = vset.pattern.permute.xlu0 1
        %1466 = vperm.xlu0 %1465, %v1458
        %v1467 = vpop.permute.xlu0 %1466
        %v1469 = vmul.f32 %v1448, %v1462
        %v1470 = vmul.f32 %v1449, %v1462
        %v1471 = vmul.f32 %v1450, %v1467
        %v1472 = vmul.f32 %v1451, %v1467
        %1473 = vset.pattern.permute.xlu0 2
        %1474 = vperm.xlu0 %1473, %v1307
        %v1475 = vpop.permute.xlu0 %1474
        %1477 = vset.pattern.permute.xlu0 2
        %1478 = vperm.xlu0 %1477, %v1308
        %v1479 = vpop.permute.xlu0 %1478
        %v1481 = vadd.f32 %v1469, %v1475
        %v1482 = vadd.f32 %v1470, %v1475
        %v1483 = vadd.f32 %v1471, %v1479
        %v1484 = vadd.f32 %v1472, %v1479
        %v1485 = vxor.u32 %v1481, 2147483648
        %v1486 = vxor.u32 %v1482, 2147483648
        %v1487 = vxor.u32 %v1483, 2147483648
        %v1488 = vxor.u32 %v1484, 2147483648
        %v1489 = vmul.f32 %v1485, 1.442695
        %v1490 = vpow.pop %v1489
        %v1491 = vmul.f32 %v1486, 1.442695
        %v1492 = vpow.pop %v1491
        %v1493 = vmul.f32 %v1487, 1.442695
        %v1494 = vpow.pop %v1493
        %v1495 = vmul.f32 %v1488, 1.442695
        %v1496 = vpow.pop %v1495
        %v1497 = vadd.f32 %v1490, 1.0
        %v1498 = vadd.f32 %v1492, 1.0
        %v1499 = vadd.f32 %v1494, 1.0
        %v1500 = vadd.f32 %v1496, 1.0
        %v1501 = vrcp.pop %v1497
        %v1502 = vmul.f32 1.0, %v1501
        %v1503 = vrcp.pop %v1498
        %v1504 = vmul.f32 1.0, %v1503
        %v1505 = vrcp.pop %v1499
        %v1506 = vmul.f32 1.0, %v1505
        %v1507 = vrcp.pop %v1500
        %v1508 = vmul.f32 1.0, %v1507
        %v1509 = vmul.f32 %v1481, %v1502
        %v1510 = vmul.f32 %v1482, %v1504
        %v1511 = vmul.f32 %v1483, %v1506
        %v1512 = vmul.f32 %v1484, %v1508
        %1513 = vrot.lane.b32.xlu0 %v1509, 1
        %v1514 = vpop.permute.xlu0 %1513
        %1515 = vrot.lane.b32.xlu0 %v1511, 1
        %v1516 = vpop.permute.xlu0 %1515
        %1517 = vrot.lane.b32.xlu0 %v1510, 1
        %v1518 = vpop.permute.xlu0 %1517
        %1519 = vrot.lane.b32.xlu0 %v1512, 1
        %v1520 = vpop.permute.xlu0 %1519
        %v1521 = vsel %vm791, %v1514, %v1518
        %v1522 = vsel %vm791, %v1516, %v1520
        %v1523 = vsel %vm791, %v1518, %v1514
        %v1524 = vsel %vm791, %v1520, %v1516
        %v1525 = vmul.f32 %v1523, %v438
        %v1526 = vmul.f32 %v1521, %v439
        %v1527 = vmul.f32 %v1524, %v438
        %v1528 = vmul.f32 %v1522, %v439
        %1529 = vrot.lane.b32.xlu0 %v1509, 127
        %v1530 = vpop.permute.xlu0 %1529
        %1531 = vrot.lane.b32.xlu0 %v1511, 127
        %v1532 = vpop.permute.xlu0 %1531
        %1533 = vrot.lane.b32.xlu0 %v1510, 127
        %v1534 = vpop.permute.xlu0 %1533
        %1535 = vrot.lane.b32.xlu0 %v1512, 127
        %v1536 = vpop.permute.xlu0 %1535
        %v1537 = vsel %vm824, %v1530, %v1534
        %v1538 = vsel %vm824, %v1532, %v1536
        %v1539 = vsel %vm824, %v1534, %v1530
        %v1540 = vsel %vm824, %v1536, %v1532
        %v1541 = vmul.f32 %v1537, %v1320
        %v1542 = vmul.f32 %v1539, %v1321
        %v1543 = vmul.f32 %v1538, %v1320
        %v1544 = vmul.f32 %v1540, %v1321
        %v1545 = vmul.f32 %v1525, 0.25
        %v1546 = vmul.f32 %v1526, 0.25
        %v1547 = vmul.f32 %v1527, 0.25
        %v1548 = vmul.f32 %v1528, 0.25
        %v1549 = vmul.f32 %v1509, 0.5
        %v1550 = vmul.f32 %v1510, 0.5
        %v1551 = vmul.f32 %v1511, 0.5
        %v1552 = vmul.f32 %v1512, 0.5
        %v1553 = vadd.f32 %v1545, %v1549
        %v1554 = vadd.f32 %v1546, %v1550
        %v1555 = vadd.f32 %v1547, %v1551
        %v1556 = vadd.f32 %v1548, %v1552
        %v1557 = vmul.f32 %v1541, 0.25
        %v1558 = vmul.f32 %v1542, 0.25
        %v1559 = vmul.f32 %v1543, 0.25
        %v1560 = vmul.f32 %v1544, 0.25
        %v1561 = vadd.f32 %v1553, %v1557
        %v1562 = vadd.f32 %v1554, %v1558
        %v1563 = vadd.f32 %v1555, %v1559
        %v1564 = vadd.f32 %v1556, %v1560
        %1566 = vset.pattern.permute.xlu0 0
        %1567 = vperm.xlu0 %1566, %v1315
        %v1568 = vpop.permute.xlu0 %1567
        %v1571 = vsel %vm886, %v1313, 0
        %1573 = vmatprep.subr.mxu0 0.0
        %1574 = vmatpush1.msra.mxu0 0.0
        %1575 = vmatprep.subr.mxu0 0.0
        %1576 = vmatpush1.msra.mxu0 0.0
        %1577 = vmatprep.subr.mxu0 0.0
        %1578 = vmatpush1.msra.mxu0 0.0
        %1579 = vmatprep.subr.mxu0 0.0
        %1580 = vmatpush1.msra.mxu0 0.0
        %1581 = vmatprep.subr.mxu0 0.0
        %1582 = vmatpush1.msra.mxu0 0.0
        %1583 = vmatprep.subr.mxu0 0.0
        %1584 = vmatpush1.msra.mxu0 0.0
        %1585 = vmatprep.subr.mxu0 0.0
        %1586 = vmatpush1.msra.mxu0 0.0
        %1587 = vmatprep.subr.mxu0 0.0
        %1588 = vmatpush1.msra.mxu0 0.0
        %1589 = vmatprep.subr.mxu0 0.0
        %1590 = vmatpush1.msra.mxu0 0.0
        %1591 = vmatprep.subr.mxu0 0.0
        %1592 = vmatpush1.msra.mxu0 0.0
        %1593 = vmatprep.subr.mxu0 0.0
        %1594 = vmatpush1.msra.mxu0 0.0
        %1595 = vmatprep.subr.mxu0 0.0
        %1596 = vmatpush1.msra.mxu0 0.0
        %1597 = vmatprep.subr.mxu0 0.0
        %1598 = vmatpush1.msra.mxu0 0.0
        %1599 = vmatprep.subr.mxu0 0.0
        %1600 = vmatpush1.msra.mxu0 0.0
        %1601 = vmatprep.subr.mxu0 %v1564
        %1602 = vmatpush1.msra.mxu0 %v1563
        %1603 = vmatprep.subr.mxu0 %v1562
        %1604 = vmatpush1.msra.mxu0 %v1561
        %1605 = vmatprep.subr.mxu0 0.0
        %1606 = vmatpush2.msra.mxu0 0.0
        %1607 = vmatprep.subr.mxu0 0.0
        %1608 = vmatpush2.msra.mxu0 0.0
        %1609 = vmatprep.subr.mxu0 0.0
        %1610 = vmatpush2.msra.mxu0 0.0
        %1611 = vmatprep.subr.mxu0 0.0
        %1612 = vmatpush2.msra.mxu0 0.0
        %1613 = vmatprep.subr.mxu0 0.0
        %1614 = vmatpush2.msra.mxu0 0.0
        %1615 = vmatprep.subr.mxu0 0.0
        %1616 = vmatpush2.msra.mxu0 0.0
        %1617 = vmatprep.subr.mxu0 0.0
        %1618 = vmatpush2.msra.mxu0 0.0
        %1619 = vmatprep.subr.mxu0 0.0
        %1620 = vmatpush2.msra.mxu0 0.0
        %1621 = vmatprep.subr.mxu0 0.0
        %1622 = vmatpush2.msra.mxu0 0.0
        %1623 = vmatprep.subr.mxu0 0.0
        %1624 = vmatpush2.msra.mxu0 0.0
        %1625 = vmatprep.subr.mxu0 0.0
        %1626 = vmatpush2.msra.mxu0 0.0
        %1627 = vmatprep.subr.mxu0 0.0
        %1628 = vmatpush2.msra.mxu0 0.0
        %1629 = vmatprep.subr.mxu0 0.0
        %1630 = vmatpush2.msra.mxu0 0.0
        %1631 = vmatprep.subr.mxu0 0.0
        %1632 = vmatpush2.msra.mxu0 0.0
        %1633 = vmatprep.subr.mxu0 0.0
        %1634 = vmatpush2.msra.mxu0 0.0
        %1635 = vmatprep.subr.mxu0 0.0
        %1636 = vmatpush2.msra.mxu0 0.0
        %1637 = vmatprep.mubr.f32.mxu0 0.0
        %1638 = vmatmul.mubr.f32.gmra.mxu0 %v1571
        %v1639 = vpop.f32.mrf.mxu0
        %v1640 = vadd.f32 %v1568, %v1639
        %v1641 = vpop.f32.mrf.mxu0
        %v1642 = vadd.f32 %v1568, %v1641
        %1643 = vdwg.mxu0
        %v1644 = vsub.f32 %v1302, %v1640
        %v1645 = vsub.f32 %v1304, %v1642
        %v1646 = vld [vmem:[%s8] sm:$0xff]
        %v1647 = vld [vmem:[%s8 + $0x8] sm:$0xff]
        %v1648 = vld [vmem:[%s8 + $0x10] sm:$0xff]
        %v1649 = vld [vmem:[%s8 + $0x18] sm:$0xff]
        %v1650 = vld [vmem:[%s8 + $0x20] sm:$0xff]
        %v1651 = vld [vmem:[%s8 + $0x28] sm:$0xff]
        %v1652 = vld [vmem:[%s8 + $0x30] sm:$0xff]
        %v1653 = vld [vmem:[%s8 + $0x38] sm:$0xff]
        %v1654 = vld [vmem:[%s8 + $0x40] sm:$0xff]
        %v1655 = vld [vmem:[%s8 + $0x48] sm:$0xff]
        %v1656 = vld [vmem:[%s8 + $0x50] sm:$0xff]
        %v1657 = vld [vmem:[%s8 + $0x58] sm:$0xff]
        %v1658 = vld [vmem:[%s8 + $0x60] sm:$0xff]
        %v1659 = vld [vmem:[%s8 + $0x68] sm:$0xff]
        %v1660 = vld [vmem:[%s8 + $0x70] sm:$0xff]
        %v1661 = vld [vmem:[%s8 + $0x78] sm:$0xff]
        %v1662 = vld [vmem:[%s8 + $0x80] sm:$0xff]
        %v1663 = vld [vmem:[%s8 + $0x88] sm:$0xff]
        %v1664 = vld [vmem:[%s8 + $0x90] sm:$0xff]
        %v1665 = vld [vmem:[%s8 + $0x98] sm:$0xff]
        %v1666 = vld [vmem:[%s8 + $0xa0] sm:$0xff]
        %v1667 = vld [vmem:[%s8 + $0xa8] sm:$0xff]
        %v1668 = vld [vmem:[%s8 + $0xb0] sm:$0xff]
        %v1669 = vld [vmem:[%s8 + $0xb8] sm:$0xff]
        %v1670 = vld [vmem:[%s8 + $0xc0] sm:$0xff]
        %v1671 = vld [vmem:[%s8 + $0xc8] sm:$0xff]
        %v1672 = vld [vmem:[%s8 + $0xd0] sm:$0xff]
        %v1673 = vld [vmem:[%s8 + $0xd8] sm:$0xff]
        %v1674 = vld [vmem:[%s8 + $0xe0] sm:$0xff]
        %v1675 = vld [vmem:[%s8 + $0xe8] sm:$0xff]
        %v1676 = vld [vmem:[%s8 + $0xf0] sm:$0xff]
        %v1677 = vld [vmem:[%s8 + $0xf8] sm:$0xff]
        %1678 = vmatprep.subr.mxu0 0.0
        %1679 = vmatpush1.msra.mxu0 %v1661
        %1680 = vmatprep.subr.mxu0 0.0
        %1681 = vmatpush1.msra.mxu0 %v1660
        %1682 = vmatprep.subr.mxu0 0.0
        %1683 = vmatpush1.msra.mxu0 %v1659
        %1684 = vmatprep.subr.mxu0 0.0
        %1685 = vmatpush1.msra.mxu0 %v1658
        %1686 = vmatprep.subr.mxu0 0.0
        %1687 = vmatpush1.msra.mxu0 %v1657
        %1688 = vmatprep.subr.mxu0 0.0
        %1689 = vmatpush1.msra.mxu0 %v1656
        %1690 = vmatprep.subr.mxu0 0.0
        %1691 = vmatpush1.msra.mxu0 %v1655
        %1692 = vmatprep.subr.mxu0 0.0
        %1693 = vmatpush1.msra.mxu0 %v1654
        %1694 = vmatprep.subr.mxu0 0.0
        %1695 = vmatpush1.msra.mxu0 %v1653
        %1696 = vmatprep.subr.mxu0 0.0
        %1697 = vmatpush1.msra.mxu0 %v1652
        %1698 = vmatprep.subr.mxu0 0.0
        %1699 = vmatpush1.msra.mxu0 %v1651
        %1700 = vmatprep.subr.mxu0 0.0
        %1701 = vmatpush1.msra.mxu0 %v1650
        %1702 = vmatprep.subr.mxu0 0.0
        %1703 = vmatpush1.msra.mxu0 %v1649
        %1704 = vmatprep.subr.mxu0 0.0
        %1705 = vmatpush1.msra.mxu0 %v1648
        %1706 = vmatprep.subr.mxu0 0.0
        %1707 = vmatpush1.msra.mxu0 %v1647
        %1708 = vmatprep.subr.mxu0 0.0
        %1709 = vmatpush1.msra.mxu0 %v1646
        %1710 = vmatprep.subr.mxu0 0.0
        %1711 = vmatpush2.msra.mxu0 %v1677
        %1712 = vmatprep.subr.mxu0 0.0
        %1713 = vmatpush2.msra.mxu0 %v1676
        %1714 = vmatprep.subr.mxu0 0.0
        %1715 = vmatpush2.msra.mxu0 %v1675
        %1716 = vmatprep.subr.mxu0 0.0
        %1717 = vmatpush2.msra.mxu0 %v1674
        %1718 = vmatprep.subr.mxu0 0.0
        %1719 = vmatpush2.msra.mxu0 %v1673
        %1720 = vmatprep.subr.mxu0 0.0
        %1721 = vmatpush2.msra.mxu0 %v1672
        %1722 = vmatprep.subr.mxu0 0.0
        %1723 = vmatpush2.msra.mxu0 %v1671
        %1724 = vmatprep.subr.mxu0 0.0
        %1725 = vmatpush2.msra.mxu0 %v1670
        %1726 = vmatprep.subr.mxu0 0.0
        %1727 = vmatpush2.msra.mxu0 %v1669
        %1728 = vmatprep.subr.mxu0 0.0
        %1729 = vmatpush2.msra.mxu0 %v1668
        %1730 = vmatprep.subr.mxu0 0.0
        %1731 = vmatpush2.msra.mxu0 %v1667
        %1732 = vmatprep.subr.mxu0 0.0
        %1733 = vmatpush2.msra.mxu0 %v1666
        %1734 = vmatprep.subr.mxu0 0.0
        %1735 = vmatpush2.msra.mxu0 %v1665
        %1736 = vmatprep.subr.mxu0 0.0
        %1737 = vmatpush2.msra.mxu0 %v1664
        %1738 = vmatprep.subr.mxu0 0.0
        %1739 = vmatpush2.msra.mxu0 %v1663
        %1740 = vmatprep.subr.mxu0 0.0
        %1741 = vmatpush2.msra.mxu0 %v1662
        %1742 = vmatprep.mubr.f32.mxu0 %v1645
        %1743 = vmatmul.mubr.f32.gmra.mxu0 %v1644
        %v1744 = vpop.f32.mrf.mxu0
        %v1745 = vadd.f32 0.0, %v1744
        %v1746 = vpop.f32.mrf.mxu0
        %1747 = vdwg.mxu0
        %v1748 = vld [vmem:[%s5] sm:$0xff]
        %v1749 = vld [vmem:[%s6] sm:$0xff]
        %1751 = vset.pattern.permute.xlu0 0
        %1752 = vperm.xlu0 %1751, %v1749
        %v1753 = vpop.permute.xlu0 %1752
        %v1756 = vsel %vm464, %v1748, 0
        %1758 = vmatprep.subr.mxu0 0.0
        %1759 = vmatpush1.msra.mxu0 0.0
        %1760 = vmatprep.subr.mxu0 0.0
        %1761 = vmatpush1.msra.mxu0 0.0
        %1762 = vmatprep.subr.mxu0 0.0
        %1763 = vmatpush1.msra.mxu0 0.0
        %1764 = vmatprep.subr.mxu0 0.0
        %1765 = vmatpush1.msra.mxu0 0.0
        %1766 = vmatprep.subr.mxu0 0.0
        %1767 = vmatpush1.msra.mxu0 0.0
        %1768 = vmatprep.subr.mxu0 0.0
        %1769 = vmatpush1.msra.mxu0 0.0
        %1770 = vmatprep.subr.mxu0 0.0
        %1771 = vmatpush1.msra.mxu0 0.0
        %1772 = vmatprep.subr.mxu0 0.0
        %1773 = vmatpush1.msra.mxu0 0.0
        %1774 = vmatprep.subr.mxu0 0.0
        %1775 = vmatpush1.msra.mxu0 0.0
        %1776 = vmatprep.subr.mxu0 0.0
        %1777 = vmatpush1.msra.mxu0 0.0
        %1778 = vmatprep.subr.mxu0 0.0
        %1779 = vmatpush1.msra.mxu0 0.0
        %1780 = vmatprep.subr.mxu0 0.0
        %1781 = vmatpush1.msra.mxu0 0.0
        %1782 = vmatprep.subr.mxu0 0.0
        %1783 = vmatpush1.msra.mxu0 0.0
        %1784 = vmatprep.subr.mxu0 0.0
        %1785 = vmatpush1.msra.mxu0 0.0
        %1786 = vmatprep.subr.mxu0 0.0
        %1787 = vmatpush1.msra.mxu0 0.0
        %1788 = vmatprep.subr.mxu0 0.0
        %1789 = vmatpush1.msra.mxu0 %v1745
        %1790 = vmatprep.subr.mxu0 0.0
        %1791 = vmatpush2.msra.mxu0 0.0
        %1792 = vmatprep.subr.mxu0 0.0
        %1793 = vmatpush2.msra.mxu0 0.0
        %1794 = vmatprep.subr.mxu0 0.0
        %1795 = vmatpush2.msra.mxu0 0.0
        %1796 = vmatprep.subr.mxu0 0.0
        %1797 = vmatpush2.msra.mxu0 0.0
        %1798 = vmatprep.subr.mxu0 0.0
        %1799 = vmatpush2.msra.mxu0 0.0
        %1800 = vmatprep.subr.mxu0 0.0
        %1801 = vmatpush2.msra.mxu0 0.0
        %1802 = vmatprep.subr.mxu0 0.0
        %1803 = vmatpush2.msra.mxu0 0.0
        %1804 = vmatprep.subr.mxu0 0.0
        %1805 = vmatpush2.msra.mxu0 0.0
        %1806 = vmatprep.subr.mxu0 0.0
        %1807 = vmatpush2.msra.mxu0 0.0
        %1808 = vmatprep.subr.mxu0 0.0
        %1809 = vmatpush2.msra.mxu0 0.0
        %1810 = vmatprep.subr.mxu0 0.0
        %1811 = vmatpush2.msra.mxu0 0.0
        %1812 = vmatprep.subr.mxu0 0.0
        %1813 = vmatpush2.msra.mxu0 0.0
        %1814 = vmatprep.subr.mxu0 0.0
        %1815 = vmatpush2.msra.mxu0 0.0
        %1816 = vmatprep.subr.mxu0 0.0
        %1817 = vmatpush2.msra.mxu0 0.0
        %1818 = vmatprep.subr.mxu0 0.0
        %1819 = vmatpush2.msra.mxu0 0.0
        %1820 = vmatprep.subr.mxu0 0.0
        %1821 = vmatpush2.msra.mxu0 0.0
        %1822 = vmatprep.mubr.f32.mxu0 0.0
        %1823 = vmatmul.mubr.f32.gmra.mxu0 %v1756
        %v1824 = vpop.f32.mrf.mxu0
        %v1825 = vadd.f32 %v1753, %v1824
        %v1826 = vpop.f32.mrf.mxu0
        %1827 = vdwg.mxu0
        %v1828 = vxor.u32 %v1825, 2147483648
        %v1829 = vmul.f32 %v1828, 1.442695
        %v1830 = vpow.pop %v1829
        %v1831 = vadd.f32 %v1830, 1.0
        %v1832 = vrcp.pop %v1831
        %v1833 = vmul.f32 1.0, %v1832
        %v1834 = vmul.f32 %v1825, %v1833
        %v1835 = vld [vmem:[%s10] sm:$0xff]
        %v1836 = vld [vmem:[%s10 + $0x8] sm:$0xff]
        %v1837 = vld [vmem:[%s10 + $0x10] sm:$0xff]
        %v1838 = vld [vmem:[%s10 + $0x18] sm:$0xff]
        %v1839 = vld [vmem:[%s10 + $0x20] sm:$0xff]
        %v1840 = vld [vmem:[%s10 + $0x28] sm:$0xff]
        %v1841 = vld [vmem:[%s10 + $0x30] sm:$0xff]
        %v1842 = vld [vmem:[%s10 + $0x38] sm:$0xff]
        %v1843 = vld [vmem:[%s10 + $0x40] sm:$0xff]
        %v1844 = vld [vmem:[%s10 + $0x48] sm:$0xff]
        %v1845 = vld [vmem:[%s10 + $0x50] sm:$0xff]
        %v1846 = vld [vmem:[%s10 + $0x58] sm:$0xff]
        %v1847 = vld [vmem:[%s10 + $0x60] sm:$0xff]
        %v1848 = vld [vmem:[%s10 + $0x68] sm:$0xff]
        %v1849 = vld [vmem:[%s10 + $0x70] sm:$0xff]
        %v1850 = vld [vmem:[%s10 + $0x78] sm:$0xff]
        %v1851 = vld [vmem:[%s10 + $0x80] sm:$0xff]
        %v1852 = vld [vmem:[%s10 + $0x88] sm:$0xff]
        %v1853 = vld [vmem:[%s10 + $0x90] sm:$0xff]
        %v1854 = vld [vmem:[%s10 + $0x98] sm:$0xff]
        %v1855 = vld [vmem:[%s10 + $0xa0] sm:$0xff]
        %v1856 = vld [vmem:[%s10 + $0xa8] sm:$0xff]
        %v1857 = vld [vmem:[%s10 + $0xb0] sm:$0xff]
        %v1858 = vld [vmem:[%s10 + $0xb8] sm:$0xff]
        %v1859 = vld [vmem:[%s10 + $0xc0] sm:$0xff]
        %v1860 = vld [vmem:[%s10 + $0xc8] sm:$0xff]
        %v1861 = vld [vmem:[%s10 + $0xd0] sm:$0xff]
        %v1862 = vld [vmem:[%s10 + $0xd8] sm:$0xff]
        %v1863 = vld [vmem:[%s10 + $0xe0] sm:$0xff]
        %v1864 = vld [vmem:[%s10 + $0xe8] sm:$0xff]
        %v1865 = vld [vmem:[%s10 + $0xf0] sm:$0xff]
        %v1866 = vld [vmem:[%s10 + $0xf8] sm:$0xff]
        %1867 = vmatprep.subr.mxu0 %v1866
        %1868 = vmatpush1.msra.mxu0 %v1865
        %1869 = vmatprep.subr.mxu0 %v1864
        %1870 = vmatpush1.msra.mxu0 %v1863
        %1871 = vmatprep.subr.mxu0 %v1862
        %1872 = vmatpush1.msra.mxu0 %v1861
        %1873 = vmatprep.subr.mxu0 %v1860
        %1874 = vmatpush1.msra.mxu0 %v1859
        %1875 = vmatprep.subr.mxu0 %v1858
        %1876 = vmatpush1.msra.mxu0 %v1857
        %1877 = vmatprep.subr.mxu0 %v1856
        %1878 = vmatpush1.msra.mxu0 %v1855
        %1879 = vmatprep.subr.mxu0 %v1854
        %1880 = vmatpush1.msra.mxu0 %v1853
        %1881 = vmatprep.subr.mxu0 %v1852
        %1882 = vmatpush1.msra.mxu0 %v1851
        %1883 = vmatprep.subr.mxu0 %v1850
        %1884 = vmatpush1.msra.mxu0 %v1849
        %1885 = vmatprep.subr.mxu0 %v1848
        %1886 = vmatpush1.msra.mxu0 %v1847
        %1887 = vmatprep.subr.mxu0 %v1846
        %1888 = vmatpush1.msra.mxu0 %v1845
        %1889 = vmatprep.subr.mxu0 %v1844
        %1890 = vmatpush1.msra.mxu0 %v1843
        %1891 = vmatprep.subr.mxu0 %v1842
        %1892 = vmatpush1.msra.mxu0 %v1841
        %1893 = vmatprep.subr.mxu0 %v1840
        %1894 = vmatpush1.msra.mxu0 %v1839
        %1895 = vmatprep.subr.mxu0 %v1838
        %1896 = vmatpush1.msra.mxu0 %v1837
        %1897 = vmatprep.subr.mxu0 %v1836
        %1898 = vmatpush1.msra.mxu0 %v1835
        %1899 = vmatprep.subr.mxu0 0.0
        %1900 = vmatpush2.msra.mxu0 0.0
        %1901 = vmatprep.subr.mxu0 0.0
        %1902 = vmatpush2.msra.mxu0 0.0
        %1903 = vmatprep.subr.mxu0 0.0
        %1904 = vmatpush2.msra.mxu0 0.0
        %1905 = vmatprep.subr.mxu0 0.0
        %1906 = vmatpush2.msra.mxu0 0.0
        %1907 = vmatprep.subr.mxu0 0.0
        %1908 = vmatpush2.msra.mxu0 0.0
        %1909 = vmatprep.subr.mxu0 0.0
        %1910 = vmatpush2.msra.mxu0 0.0
        %1911 = vmatprep.subr.mxu0 0.0
        %1912 = vmatpush2.msra.mxu0 0.0
        %1913 = vmatprep.subr.mxu0 0.0
        %1914 = vmatpush2.msra.mxu0 0.0
        %1915 = vmatprep.subr.mxu0 0.0
        %1916 = vmatpush2.msra.mxu0 0.0
        %1917 = vmatprep.subr.mxu0 0.0
        %1918 = vmatpush2.msra.mxu0 0.0
        %1919 = vmatprep.subr.mxu0 0.0
        %1920 = vmatpush2.msra.mxu0 0.0
        %1921 = vmatprep.subr.mxu0 0.0
        %1922 = vmatpush2.msra.mxu0 0.0
        %1923 = vmatprep.subr.mxu0 0.0
        %1924 = vmatpush2.msra.mxu0 0.0
        %1925 = vmatprep.subr.mxu0 0.0
        %1926 = vmatpush2.msra.mxu0 0.0
        %1927 = vmatprep.subr.mxu0 0.0
        %1928 = vmatpush2.msra.mxu0 0.0
        %1929 = vmatprep.subr.mxu0 0.0
        %1930 = vmatpush2.msra.mxu0 0.0
        %1931 = vmatprep.mubr.f32.mxu0 0.0
        %1932 = vmatmul.mubr.f32.gmra.mxu0 %v1834
        %v1933 = vpop.f32.mrf.mxu0
        %v1934 = vadd.f32 %v1640, %v1933
        %v1935 = vpop.f32.mrf.mxu0
        %v1936 = vadd.f32 %v1642, %v1935
        %1937 = vdwg.mxu0
        %s1938 = scalar_lea.vmem %s2, 48
        %v1939 = vld [vmem:[%s1938] sm:$0xff]
        %v1940 = vld [vmem:[%s1938 + $0x8] sm:$0xff]
        %s1941 = scalar_lea.vmem %s1, 48
        %v1942 = vld [vmem:[%s1941] sm:$0xff]
        %v1943 = vld [vmem:[%s1941 + $0x8] sm:$0xff]
        %s1944 = scalar_lea.vmem %s3, 24
        %v1945 = vld [vmem:[%s1944] sm:$0xff]
        %s1946 = scalar_lea.vmem %s4, 24
        %v1947 = vld [vmem:[%s1946] sm:$0xff]
        %1949 = vset.pattern.permute.xlu0 0
        %1950 = vperm.xlu0 %1949, %v1939
        %v1951 = vpop.permute.xlu0 %1950
        %1954 = vset.pattern.permute.xlu0 0
        %1955 = vperm.xlu0 %1954, %v1940
        %v1956 = vpop.permute.xlu0 %1955
        %v1959 = vsel %vm464, %v1942, 0
        %v1962 = vsel %vm464, %v1943, 0
        %1964 = vmatprep.subr.mxu0 0.0
        %1965 = vmatpush1.msra.mxu0 0.0
        %1966 = vmatprep.subr.mxu0 0.0
        %1967 = vmatpush1.msra.mxu0 0.0
        %1968 = vmatprep.subr.mxu0 0.0
        %1969 = vmatpush1.msra.mxu0 0.0
        %1970 = vmatprep.subr.mxu0 0.0
        %1971 = vmatpush1.msra.mxu0 0.0
        %1972 = vmatprep.subr.mxu0 0.0
        %1973 = vmatpush1.msra.mxu0 0.0
        %1974 = vmatprep.subr.mxu0 0.0
        %1975 = vmatpush1.msra.mxu0 0.0
        %1976 = vmatprep.subr.mxu0 0.0
        %1977 = vmatpush1.msra.mxu0 0.0
        %1978 = vmatprep.subr.mxu0 0.0
        %1979 = vmatpush1.msra.mxu0 0.0
        %1980 = vmatprep.subr.mxu0 0.0
        %1981 = vmatpush1.msra.mxu0 0.0
        %1982 = vmatprep.subr.mxu0 0.0
        %1983 = vmatpush1.msra.mxu0 0.0
        %1984 = vmatprep.subr.mxu0 0.0
        %1985 = vmatpush1.msra.mxu0 0.0
        %1986 = vmatprep.subr.mxu0 0.0
        %1987 = vmatpush1.msra.mxu0 0.0
        %1988 = vmatprep.subr.mxu0 0.0
        %1989 = vmatpush1.msra.mxu0 0.0
        %1990 = vmatprep.subr.mxu0 0.0
        %1991 = vmatpush1.msra.mxu0 0.0
        %1992 = vmatprep.subr.mxu0 0.0
        %1993 = vmatpush1.msra.mxu0 0.0
        %1994 = vmatprep.subr.mxu0 %v1936
        %1995 = vmatpush1.msra.mxu0 %v1934
        %1996 = vmatprep.subr.mxu0 0.0
        %1997 = vmatpush2.msra.mxu0 0.0
        %1998 = vmatprep.subr.mxu0 0.0
        %1999 = vmatpush2.msra.mxu0 0.0
        %2000 = vmatprep.subr.mxu0 0.0
        %2001 = vmatpush2.msra.mxu0 0.0
        %2002 = vmatprep.subr.mxu0 0.0
        %2003 = vmatpush2.msra.mxu0 0.0
        %2004 = vmatprep.subr.mxu0 0.0
        %2005 = vmatpush2.msra.mxu0 0.0
        %2006 = vmatprep.subr.mxu0 0.0
        %2007 = vmatpush2.msra.mxu0 0.0
        %2008 = vmatprep.subr.mxu0 0.0
        %2009 = vmatpush2.msra.mxu0 0.0
        %2010 = vmatprep.subr.mxu0 0.0
        %2011 = vmatpush2.msra.mxu0 0.0
        %2012 = vmatprep.subr.mxu0 0.0
        %2013 = vmatpush2.msra.mxu0 0.0
        %2014 = vmatprep.subr.mxu0 0.0
        %2015 = vmatpush2.msra.mxu0 0.0
        %2016 = vmatprep.subr.mxu0 0.0
        %2017 = vmatpush2.msra.mxu0 0.0
        %2018 = vmatprep.subr.mxu0 0.0
        %2019 = vmatpush2.msra.mxu0 0.0
        %2020 = vmatprep.subr.mxu0 0.0
        %2021 = vmatpush2.msra.mxu0 0.0
        %2022 = vmatprep.subr.mxu0 0.0
        %2023 = vmatpush2.msra.mxu0 0.0
        %2024 = vmatprep.subr.mxu0 0.0
        %2025 = vmatpush2.msra.mxu0 0.0
        %2026 = vmatprep.subr.mxu0 0.0
        %2027 = vmatpush2.msra.mxu0 0.0
        %2028 = vmatprep.mubr.f32.mxu0 0.0
        %2029 = vmatmul.mubr.f32.gmra.mxu0 %v1959
        %v2030 = vpop.f32.mrf.mxu0
        %v2031 = vadd.f32 %v1951, %v2030
        %v2032 = vpop.f32.mrf.mxu0
        %v2033 = vadd.f32 %v1951, %v2032
        %2034 = vmatprep.mubr.f32.mxu0 0.0
        %2035 = vmatmul.mubr.f32.gmra.mxu0 %v1962
        %v2036 = vpop.f32.mrf.mxu0
        %v2037 = vadd.f32 %v1956, %v2036
        %v2038 = vpop.f32.mrf.mxu0
        %v2039 = vadd.f32 %v1956, %v2038
        %2040 = vdwg.mxu0
        %v2041 = vadd.f32 %v2031, %v2033
        %v2042 = vadd.f32 %v2041, %v2037
        %v2043 = vadd.f32 %v2042, %v2039
        %2044 = vadd.xlane.f32.xlu0 %v2043
        %v2045 = vpop.xlane.xlu0 %2044
        %v2046 = vrot.slane %v2045, 4
        %v2047 = vadd.f32 %v2045, %v2046
        %v2048 = vrot.slane %v2047, 2
        %v2049 = vadd.f32 %v2047, %v2048
        %v2050 = vrot.slane %v2049, 1
        %v2051 = vadd.f32 %v2049, %v2050
        %s2052 = vtos %v2051
        %s2053 = smul.f32 %s2052, 0.00024414063
        %v2054 = vmul.f32 %v2031, %v2031
        %v2055 = vmul.f32 %v2033, %v2033
        %v2056 = vmul.f32 %v2037, %v2037
        %v2057 = vmul.f32 %v2039, %v2039
        %v2058 = vadd.f32 %v2054, %v2055
        %v2059 = vadd.f32 %v2058, %v2056
        %v2060 = vadd.f32 %v2059, %v2057
        %2061 = vadd.xlane.f32.xlu0 %v2060
        %v2062 = vpop.xlane.xlu0 %2061
        %v2063 = vrot.slane %v2062, 4
        %v2064 = vadd.f32 %v2062, %v2063
        %v2065 = vrot.slane %v2064, 2
        %v2066 = vadd.f32 %v2064, %v2065
        %v2067 = vrot.slane %v2066, 1
        %v2068 = vadd.f32 %v2066, %v2067
        %s2069 = vtos %v2068
        %s2070 = smul.f32 %s2069, 0.00024414063
        %s2071 = smul.f32 %s2053, %s2053
        %s2072 = ssub.f32 %s2070, %s2071
        %v2073 = vstv %s2053
        %v2074 = vsub.f32 %v2031, %v2073
        %v2075 = vsub.f32 %v2033, %v2073
        %v2076 = vsub.f32 %v2037, %v2073
        %v2077 = vsub.f32 %v2039, %v2073
        %s2078 = sadd.f32 %s2072, 1e-05
        %v2079 = vstv %s2078
        %v2080 = vrsqrt.pop %v2079
        %s2081 = vtos %v2080
        %v2082 = vstv %s2081
        %v2083 = vmul.f32 %v2082, %v1939
        %v2084 = vmul.f32 %v2082, %v1940
        %2086 = vset.pattern.permute.xlu0 1
        %2087 = vperm.xlu0 %2086, %v2083
        %v2088 = vpop.permute.xlu0 %2087
        %2091 = vset.pattern.permute.xlu0 1
        %2092 = vperm.xlu0 %2091, %v2084
        %v2093 = vpop.permute.xlu0 %2092
        %v2095 = vmul.f32 %v2074, %v2088
        %v2096 = vmul.f32 %v2075, %v2088
        %v2097 = vmul.f32 %v2076, %v2093
        %v2098 = vmul.f32 %v2077, %v2093
        %2099 = vset.pattern.permute.xlu0 2
        %2100 = vperm.xlu0 %2099, %v1939
        %v2101 = vpop.permute.xlu0 %2100
        %2103 = vset.pattern.permute.xlu0 2
        %2104 = vperm.xlu0 %2103, %v1940
        %v2105 = vpop.permute.xlu0 %2104
        %v2107 = vadd.f32 %v2095, %v2101
        %v2108 = vadd.f32 %v2096, %v2101
        %v2109 = vadd.f32 %v2097, %v2105
        %v2110 = vadd.f32 %v2098, %v2105
        %v2111 = vxor.u32 %v2107, 2147483648
        %v2112 = vxor.u32 %v2108, 2147483648
        %v2113 = vxor.u32 %v2109, 2147483648
        %v2114 = vxor.u32 %v2110, 2147483648
        %v2115 = vmul.f32 %v2111, 1.442695
        %v2116 = vpow.pop %v2115
        %v2117 = vmul.f32 %v2112, 1.442695
        %v2118 = vpow.pop %v2117
        %v2119 = vmul.f32 %v2113, 1.442695
        %v2120 = vpow.pop %v2119
        %v2121 = vmul.f32 %v2114, 1.442695
        %v2122 = vpow.pop %v2121
        %v2123 = vadd.f32 %v2116, 1.0
        %v2124 = vadd.f32 %v2118, 1.0
        %v2125 = vadd.f32 %v2120, 1.0
        %v2126 = vadd.f32 %v2122, 1.0
        %v2127 = vrcp.pop %v2123
        %v2128 = vmul.f32 1.0, %v2127
        %v2129 = vrcp.pop %v2124
        %v2130 = vmul.f32 1.0, %v2129
        %v2131 = vrcp.pop %v2125
        %v2132 = vmul.f32 1.0, %v2131
        %v2133 = vrcp.pop %v2126
        %v2134 = vmul.f32 1.0, %v2133
        %v2135 = vmul.f32 %v2107, %v2128
        %v2136 = vmul.f32 %v2108, %v2130
        %v2137 = vmul.f32 %v2109, %v2132
        %v2138 = vmul.f32 %v2110, %v2134
        %2139 = vrot.lane.b32.xlu0 %v2135, 1
        %v2140 = vpop.permute.xlu0 %2139
        %2141 = vrot.lane.b32.xlu0 %v2137, 1
        %v2142 = vpop.permute.xlu0 %2141
        %2143 = vrot.lane.b32.xlu0 %v2136, 1
        %v2144 = vpop.permute.xlu0 %2143
        %2145 = vrot.lane.b32.xlu0 %v2138, 1
        %v2146 = vpop.permute.xlu0 %2145
        %v2147 = vsel %vm791, %v2140, %v2144
        %v2148 = vsel %vm791, %v2142, %v2146
        %v2149 = vsel %vm791, %v2144, %v2140
        %v2150 = vsel %vm791, %v2146, %v2142
        %v2151 = vmul.f32 %v2149, %v438
        %v2152 = vmul.f32 %v2147, %v439
        %v2153 = vmul.f32 %v2150, %v438
        %v2154 = vmul.f32 %v2148, %v439
        %2155 = vrot.lane.b32.xlu0 %v2135, 127
        %v2156 = vpop.permute.xlu0 %2155
        %2157 = vrot.lane.b32.xlu0 %v2137, 127
        %v2158 = vpop.permute.xlu0 %2157
        %2159 = vrot.lane.b32.xlu0 %v2136, 127
        %v2160 = vpop.permute.xlu0 %2159
        %2161 = vrot.lane.b32.xlu0 %v2138, 127
        %v2162 = vpop.permute.xlu0 %2161
        %v2163 = vsel %vm824, %v2156, %v2160
        %v2164 = vsel %vm824, %v2158, %v2162
        %v2165 = vsel %vm824, %v2160, %v2156
        %v2166 = vsel %vm824, %v2162, %v2158
        %v2167 = vmul.f32 %v2163, %v1320
        %v2168 = vmul.f32 %v2165, %v1321
        %v2169 = vmul.f32 %v2164, %v1320
        %v2170 = vmul.f32 %v2166, %v1321
        %v2171 = vmul.f32 %v2151, 0.25
        %v2172 = vmul.f32 %v2152, 0.25
        %v2173 = vmul.f32 %v2153, 0.25
        %v2174 = vmul.f32 %v2154, 0.25
        %v2175 = vmul.f32 %v2135, 0.5
        %v2176 = vmul.f32 %v2136, 0.5
        %v2177 = vmul.f32 %v2137, 0.5
        %v2178 = vmul.f32 %v2138, 0.5
        %v2179 = vadd.f32 %v2171, %v2175
        %v2180 = vadd.f32 %v2172, %v2176
        %v2181 = vadd.f32 %v2173, %v2177
        %v2182 = vadd.f32 %v2174, %v2178
        %v2183 = vmul.f32 %v2167, 0.25
        %v2184 = vmul.f32 %v2168, 0.25
        %v2185 = vmul.f32 %v2169, 0.25
        %v2186 = vmul.f32 %v2170, 0.25
        %v2187 = vadd.f32 %v2179, %v2183
        %v2188 = vadd.f32 %v2180, %v2184
        %v2189 = vadd.f32 %v2181, %v2185
        %v2190 = vadd.f32 %v2182, %v2186
        %2192 = vset.pattern.permute.xlu0 0
        %2193 = vperm.xlu0 %2192, %v1947
        %v2194 = vpop.permute.xlu0 %2193
        %v2197 = vsel %vm886, %v1945, 0
        %2199 = vmatprep.subr.mxu0 0.0
        %2200 = vmatpush1.msra.mxu0 0.0
        %2201 = vmatprep.subr.mxu0 0.0
        %2202 = vmatpush1.msra.mxu0 0.0
        %2203 = vmatprep.subr.mxu0 0.0
        %2204 = vmatpush1.msra.mxu0 0.0
        %2205 = vmatprep.subr.mxu0 0.0
        %2206 = vmatpush1.msra.mxu0 0.0
        %2207 = vmatprep.subr.mxu0 0.0
        %2208 = vmatpush1.msra.mxu0 0.0
        %2209 = vmatprep.subr.mxu0 0.0
        %2210 = vmatpush1.msra.mxu0 0.0
        %2211 = vmatprep.subr.mxu0 0.0
        %2212 = vmatpush1.msra.mxu0 0.0
        %2213 = vmatprep.subr.mxu0 0.0
        %2214 = vmatpush1.msra.mxu0 0.0
        %2215 = vmatprep.subr.mxu0 0.0
        %2216 = vmatpush1.msra.mxu0 0.0
        %2217 = vmatprep.subr.mxu0 0.0
        %2218 = vmatpush1.msra.mxu0 0.0
        %2219 = vmatprep.subr.mxu0 0.0
        %2220 = vmatpush1.msra.mxu0 0.0
        %2221 = vmatprep.subr.mxu0 0.0
        %2222 = vmatpush1.msra.mxu0 0.0
        %2223 = vmatprep.subr.mxu0 0.0
        %2224 = vmatpush1.msra.mxu0 0.0
        %2225 = vmatprep.subr.mxu0 0.0
        %2226 = vmatpush1.msra.mxu0 0.0
        %2227 = vmatprep.subr.mxu0 %v2190
        %2228 = vmatpush1.msra.mxu0 %v2189
        %2229 = vmatprep.subr.mxu0 %v2188
        %2230 = vmatpush1.msra.mxu0 %v2187
        %2231 = vmatprep.subr.mxu0 0.0
        %2232 = vmatpush2.msra.mxu0 0.0
        %2233 = vmatprep.subr.mxu0 0.0
        %2234 = vmatpush2.msra.mxu0 0.0
        %2235 = vmatprep.subr.mxu0 0.0
        %2236 = vmatpush2.msra.mxu0 0.0
        %2237 = vmatprep.subr.mxu0 0.0
        %2238 = vmatpush2.msra.mxu0 0.0
        %2239 = vmatprep.subr.mxu0 0.0
        %2240 = vmatpush2.msra.mxu0 0.0
        %2241 = vmatprep.subr.mxu0 0.0
        %2242 = vmatpush2.msra.mxu0 0.0
        %2243 = vmatprep.subr.mxu0 0.0
        %2244 = vmatpush2.msra.mxu0 0.0
        %2245 = vmatprep.subr.mxu0 0.0
        %2246 = vmatpush2.msra.mxu0 0.0
        %2247 = vmatprep.subr.mxu0 0.0
        %2248 = vmatpush2.msra.mxu0 0.0
        %2249 = vmatprep.subr.mxu0 0.0
        %2250 = vmatpush2.msra.mxu0 0.0
        %2251 = vmatprep.subr.mxu0 0.0
        %2252 = vmatpush2.msra.mxu0 0.0
        %2253 = vmatprep.subr.mxu0 0.0
        %2254 = vmatpush2.msra.mxu0 0.0
        %2255 = vmatprep.subr.mxu0 0.0
        %2256 = vmatpush2.msra.mxu0 0.0
        %2257 = vmatprep.subr.mxu0 0.0
        %2258 = vmatpush2.msra.mxu0 0.0
        %2259 = vmatprep.subr.mxu0 0.0
        %2260 = vmatpush2.msra.mxu0 0.0
        %2261 = vmatprep.subr.mxu0 0.0
        %2262 = vmatpush2.msra.mxu0 0.0
        %2263 = vmatprep.mubr.f32.mxu0 0.0
        %2264 = vmatmul.mubr.f32.gmra.mxu0 %v2197
        %v2265 = vpop.f32.mrf.mxu0
        %v2266 = vadd.f32 %v2194, %v2265
        %v2267 = vpop.f32.mrf.mxu0
        %v2268 = vadd.f32 %v2194, %v2267
        %2269 = vdwg.mxu0
        %v2270 = vld [vmem:[#allocation5] sm:$0xff]
        %v2271 = vld [vmem:[#allocation5 + $0x8] sm:$0xff]
        %v2272 = vld [vmem:[#allocation5 + $0x10] sm:$0xff]
        %v2273 = vld [vmem:[#allocation5 + $0x18] sm:$0xff]
        %v2274 = vld [vmem:[#allocation5 + $0x20] sm:$0xff]
        %v2275 = vld [vmem:[#allocation5 + $0x28] sm:$0xff]
        %v2276 = vld [vmem:[#allocation5 + $0x30] sm:$0xff]
        %v2277 = vld [vmem:[#allocation5 + $0x38] sm:$0xff]
        %v2278 = vld [vmem:[#allocation5 + $0x40] sm:$0xff]
        %v2279 = vld [vmem:[#allocation5 + $0x48] sm:$0xff]
        %v2280 = vld [vmem:[#allocation5 + $0x50] sm:$0xff]
        %v2281 = vld [vmem:[#allocation5 + $0x58] sm:$0xff]
        %v2282 = vld [vmem:[#allocation5 + $0x60] sm:$0xff]
        %v2283 = vld [vmem:[#allocation5 + $0x68] sm:$0xff]
        %v2284 = vld [vmem:[#allocation5 + $0x70] sm:$0xff]
        %v2285 = vld [vmem:[#allocation5 + $0x78] sm:$0xff]
        %v2286 = vld [vmem:[#allocation5 + $0x80] sm:$0xff]
        %v2287 = vld [vmem:[#allocation5 + $0x88] sm:$0xff]
        %v2288 = vld [vmem:[#allocation5 + $0x90] sm:$0xff]
        %v2289 = vld [vmem:[#allocation5 + $0x98] sm:$0xff]
        %v2290 = vld [vmem:[#allocation5 + $0xa0] sm:$0xff]
        %v2291 = vld [vmem:[#allocation5 + $0xa8] sm:$0xff]
        %v2292 = vld [vmem:[#allocation5 + $0xb0] sm:$0xff]
        %v2293 = vld [vmem:[#allocation5 + $0xb8] sm:$0xff]
        %v2294 = vld [vmem:[#allocation5 + $0xc0] sm:$0xff]
        %v2295 = vld [vmem:[#allocation5 + $0xc8] sm:$0xff]
        %v2296 = vld [vmem:[#allocation5 + $0xd0] sm:$0xff]
        %v2297 = vld [vmem:[#allocation5 + $0xd8] sm:$0xff]
        %v2298 = vld [vmem:[#allocation5 + $0xe0] sm:$0xff]
        %v2299 = vld [vmem:[#allocation5 + $0xe8] sm:$0xff]
        %v2300 = vld [vmem:[#allocation5 + $0xf0] sm:$0xff]
        %v2301 = vld [vmem:[#allocation5 + $0xf8] sm:$0xff]
        %v2302 = vld [vmem:[#allocation5 + $0x100] sm:$0xff]
        %v2303 = vld [vmem:[#allocation5 + $0x108] sm:$0xff]
        %v2304 = vld [vmem:[#allocation5 + $0x110] sm:$0xff]
        %v2305 = vld [vmem:[#allocation5 + $0x118] sm:$0xff]
        %v2306 = vld [vmem:[#allocation5 + $0x120] sm:$0xff]
        %v2307 = vld [vmem:[#allocation5 + $0x128] sm:$0xff]
        %v2308 = vld [vmem:[#allocation5 + $0x130] sm:$0xff]
        %v2309 = vld [vmem:[#allocation5 + $0x138] sm:$0xff]
        %v2310 = vld [vmem:[#allocation5 + $0x140] sm:$0xff]
        %v2311 = vld [vmem:[#allocation5 + $0x148] sm:$0xff]
        %v2312 = vld [vmem:[#allocation5 + $0x150] sm:$0xff]
        %v2313 = vld [vmem:[#allocation5 + $0x158] sm:$0xff]
        %v2314 = vld [vmem:[#allocation5 + $0x160] sm:$0xff]
        %v2315 = vld [vmem:[#allocation5 + $0x168] sm:$0xff]
        %v2316 = vld [vmem:[#allocation5 + $0x170] sm:$0xff]
        %v2317 = vld [vmem:[#allocation5 + $0x178] sm:$0xff]
        %v2318 = vld [vmem:[#allocation5 + $0x180] sm:$0xff]
        %v2319 = vld [vmem:[#allocation5 + $0x188] sm:$0xff]
        %v2320 = vld [vmem:[#allocation5 + $0x190] sm:$0xff]
        %v2321 = vld [vmem:[#allocation5 + $0x198] sm:$0xff]
        %v2322 = vld [vmem:[#allocation5 + $0x1a0] sm:$0xff]
        %v2323 = vld [vmem:[#allocation5 + $0x1a8] sm:$0xff]
        %v2324 = vld [vmem:[#allocation5 + $0x1b0] sm:$0xff]
        %v2325 = vld [vmem:[#allocation5 + $0x1b8] sm:$0xff]
        %v2326 = vld [vmem:[#allocation5 + $0x1c0] sm:$0xff]
        %v2327 = vld [vmem:[#allocation5 + $0x1c8] sm:$0xff]
        %v2328 = vld [vmem:[#allocation5 + $0x1d0] sm:$0xff]
        %v2329 = vld [vmem:[#allocation5 + $0x1d8] sm:$0xff]
        %v2330 = vld [vmem:[#allocation5 + $0x1e0] sm:$0xff]
        %v2331 = vld [vmem:[#allocation5 + $0x1e8] sm:$0xff]
        %v2332 = vld [vmem:[#allocation5 + $0x1f0] sm:$0xff]
        %v2333 = vld [vmem:[#allocation5 + $0x1f8] sm:$0xff]
        %v2334 = vld [vmem:[#allocation5 + $0x200] sm:$0xff]
        %v2335 = vld [vmem:[#allocation5 + $0x208] sm:$0xff]
        %v2336 = vld [vmem:[#allocation5 + $0x210] sm:$0xff]
        %v2337 = vld [vmem:[#allocation5 + $0x218] sm:$0xff]
        %v2338 = vld [vmem:[#allocation5 + $0x220] sm:$0xff]
        %v2339 = vld [vmem:[#allocation5 + $0x228] sm:$0xff]
        %v2340 = vld [vmem:[#allocation5 + $0x230] sm:$0xff]
        %v2341 = vld [vmem:[#allocation5 + $0x238] sm:$0xff]
        %v2342 = vld [vmem:[#allocation5 + $0x240] sm:$0xff]
        %v2343 = vld [vmem:[#allocation5 + $0x248] sm:$0xff]
        %v2344 = vld [vmem:[#allocation5 + $0x250] sm:$0xff]
        %v2345 = vld [vmem:[#allocation5 + $0x258] sm:$0xff]
        %v2346 = vld [vmem:[#allocation5 + $0x260] sm:$0xff]
        %v2347 = vld [vmem:[#allocation5 + $0x268] sm:$0xff]
        %v2348 = vld [vmem:[#allocation5 + $0x270] sm:$0xff]
        %v2349 = vld [vmem:[#allocation5 + $0x278] sm:$0xff]
        %v2350 = vld [vmem:[#allocation5 + $0x280] sm:$0xff]
        %v2351 = vld [vmem:[#allocation5 + $0x288] sm:$0xff]
        %v2352 = vld [vmem:[#allocation5 + $0x290] sm:$0xff]
        %v2353 = vld [vmem:[#allocation5 + $0x298] sm:$0xff]
        %v2354 = vld [vmem:[#allocation5 + $0x2a0] sm:$0xff]
        %v2355 = vld [vmem:[#allocation5 + $0x2a8] sm:$0xff]
        %v2356 = vld [vmem:[#allocation5 + $0x2b0] sm:$0xff]
        %v2357 = vld [vmem:[#allocation5 + $0x2b8] sm:$0xff]
        %v2358 = vld [vmem:[#allocation5 + $0x2c0] sm:$0xff]
        %v2359 = vld [vmem:[#allocation5 + $0x2c8] sm:$0xff]
        %v2360 = vld [vmem:[#allocation5 + $0x2d0] sm:$0xff]
        %v2361 = vld [vmem:[#allocation5 + $0x2d8] sm:$0xff]
        %v2362 = vld [vmem:[#allocation5 + $0x2e0] sm:$0xff]
        %v2363 = vld [vmem:[#allocation5 + $0x2e8] sm:$0xff]
        %v2364 = vld [vmem:[#allocation5 + $0x2f0] sm:$0xff]
        %v2365 = vld [vmem:[#allocation5 + $0x2f8] sm:$0xff]
        %v2366 = vld [vmem:[#allocation5 + $0x300] sm:$0xff]
        %v2367 = vld [vmem:[#allocation5 + $0x308] sm:$0xff]
        %v2368 = vld [vmem:[#allocation5 + $0x310] sm:$0xff]
        %v2369 = vld [vmem:[#allocation5 + $0x318] sm:$0xff]
        %v2370 = vld [vmem:[#allocation5 + $0x320] sm:$0xff]
        %v2371 = vld [vmem:[#allocation5 + $0x328] sm:$0xff]
        %v2372 = vld [vmem:[#allocation5 + $0x330] sm:$0xff]
        %v2373 = vld [vmem:[#allocation5 + $0x338] sm:$0xff]
        %v2374 = vld [vmem:[#allocation5 + $0x340] sm:$0xff]
        %v2375 = vld [vmem:[#allocation5 + $0x348] sm:$0xff]
        %v2376 = vld [vmem:[#allocation5 + $0x350] sm:$0xff]
        %v2377 = vld [vmem:[#allocation5 + $0x358] sm:$0xff]
        %v2378 = vld [vmem:[#allocation5 + $0x360] sm:$0xff]
        %v2379 = vld [vmem:[#allocation5 + $0x368] sm:$0xff]
        %v2380 = vld [vmem:[#allocation5 + $0x370] sm:$0xff]
        %v2381 = vld [vmem:[#allocation5 + $0x378] sm:$0xff]
        %v2382 = vld [vmem:[#allocation5 + $0x380] sm:$0xff]
        %v2383 = vld [vmem:[#allocation5 + $0x388] sm:$0xff]
        %v2384 = vld [vmem:[#allocation5 + $0x390] sm:$0xff]
        %v2385 = vld [vmem:[#allocation5 + $0x398] sm:$0xff]
        %v2386 = vld [vmem:[#allocation5 + $0x3a0] sm:$0xff]
        %v2387 = vld [vmem:[#allocation5 + $0x3a8] sm:$0xff]
        %v2388 = vld [vmem:[#allocation5 + $0x3b0] sm:$0xff]
        %v2389 = vld [vmem:[#allocation5 + $0x3b8] sm:$0xff]
        %v2390 = vld [vmem:[#allocation5 + $0x3c0] sm:$0xff]
        %v2391 = vld [vmem:[#allocation5 + $0x3c8] sm:$0xff]
        %v2392 = vld [vmem:[#allocation5 + $0x3d0] sm:$0xff]
        %v2393 = vld [vmem:[#allocation5 + $0x3d8] sm:$0xff]
        %v2394 = vld [vmem:[#allocation5 + $0x3e0] sm:$0xff]
        %v2395 = vld [vmem:[#allocation5 + $0x3e8] sm:$0xff]
        %v2396 = vld [vmem:[#allocation5 + $0x3f0] sm:$0xff]
        %v2397 = vld [vmem:[#allocation5 + $0x3f8] sm:$0xff]
        %2398 = vmatprep.subr.mxu0 %v2331
        %2399 = vmatpush1.msra.mxu0 %v2330
        %2400 = vmatprep.subr.mxu0 %v2327
        %2401 = vmatpush1.msra.mxu0 %v2326
        %2402 = vmatprep.subr.mxu0 %v2323
        %2403 = vmatpush1.msra.mxu0 %v2322
        %2404 = vmatprep.subr.mxu0 %v2319
        %2405 = vmatpush1.msra.mxu0 %v2318
        %2406 = vmatprep.subr.mxu0 %v2315
        %2407 = vmatpush1.msra.mxu0 %v2314
        %2408 = vmatprep.subr.mxu0 %v2311
        %2409 = vmatpush1.msra.mxu0 %v2310
        %2410 = vmatprep.subr.mxu0 %v2307
        %2411 = vmatpush1.msra.mxu0 %v2306
        %2412 = vmatprep.subr.mxu0 %v2303
        %2413 = vmatpush1.msra.mxu0 %v2302
        %2414 = vmatprep.subr.mxu0 %v2299
        %2415 = vmatpush1.msra.mxu0 %v2298
        %2416 = vmatprep.subr.mxu0 %v2295
        %2417 = vmatpush1.msra.mxu0 %v2294
        %2418 = vmatprep.subr.mxu0 %v2291
        %2419 = vmatpush1.msra.mxu0 %v2290
        %2420 = vmatprep.subr.mxu0 %v2287
        %2421 = vmatpush1.msra.mxu0 %v2286
        %2422 = vmatprep.subr.mxu0 %v2283
        %2423 = vmatpush1.msra.mxu0 %v2282
        %2424 = vmatprep.subr.mxu0 %v2279
        %2425 = vmatpush1.msra.mxu0 %v2278
        %2426 = vmatprep.subr.mxu0 %v2275
        %2427 = vmatpush1.msra.mxu0 %v2274
        %2428 = vmatprep.subr.mxu0 %v2271
        %2429 = vmatpush1.msra.mxu0 %v2270
        %2430 = vmatprep.subr.mxu0 %v2395
        %2431 = vmatpush2.msra.mxu0 %v2394
        %2432 = vmatprep.subr.mxu0 %v2391
        %2433 = vmatpush2.msra.mxu0 %v2390
        %2434 = vmatprep.subr.mxu0 %v2387
        %2435 = vmatpush2.msra.mxu0 %v2386
        %2436 = vmatprep.subr.mxu0 %v2383
        %2437 = vmatpush2.msra.mxu0 %v2382
        %2438 = vmatprep.subr.mxu0 %v2379
        %2439 = vmatpush2.msra.mxu0 %v2378
        %2440 = vmatprep.subr.mxu0 %v2375
        %2441 = vmatpush2.msra.mxu0 %v2374
        %2442 = vmatprep.subr.mxu0 %v2371
        %2443 = vmatpush2.msra.mxu0 %v2370
        %2444 = vmatprep.subr.mxu0 %v2367
        %2445 = vmatpush2.msra.mxu0 %v2366
        %2446 = vmatprep.subr.mxu0 %v2363
        %2447 = vmatpush2.msra.mxu0 %v2362
        %2448 = vmatprep.subr.mxu0 %v2359
        %2449 = vmatpush2.msra.mxu0 %v2358
        %2450 = vmatprep.subr.mxu0 %v2355
        %2451 = vmatpush2.msra.mxu0 %v2354
        %2452 = vmatprep.subr.mxu0 %v2351
        %2453 = vmatpush2.msra.mxu0 %v2350
        %2454 = vmatprep.subr.mxu0 %v2347
        %2455 = vmatpush2.msra.mxu0 %v2346
        %2456 = vmatprep.subr.mxu0 %v2343
        %2457 = vmatpush2.msra.mxu0 %v2342
        %2458 = vmatprep.subr.mxu0 %v2339
        %2459 = vmatpush2.msra.mxu0 %v2338
        %2460 = vmatprep.subr.mxu0 %v2335
        %2461 = vmatpush2.msra.mxu0 %v2334
        %2462 = vmatprep.mubr.f32.mxu0 %v2268
        %2463 = vmatmul.mubr.f32.gmra.mxu0 %v2266
        %v2464 = vpop.f32.mrf.mxu0
        %v2465 = vadd.f32 %v957, %v2464
        %v2466 = vpop.f32.mrf.mxu0
        %v2467 = vadd.f32 %v959, %v2466
        %2468 = vdwg.mxu0
        %2469 = vmatprep.subr.mxu0 %v2333
        %2470 = vmatpush1.msra.mxu0 %v2332
        %2471 = vmatprep.subr.mxu0 %v2329
        %2472 = vmatpush1.msra.mxu0 %v2328
        %2473 = vmatprep.subr.mxu0 %v2325
        %2474 = vmatpush1.msra.mxu0 %v2324
        %2475 = vmatprep.subr.mxu0 %v2321
        %2476 = vmatpush1.msra.mxu0 %v2320
        %2477 = vmatprep.subr.mxu0 %v2317
        %2478 = vmatpush1.msra.mxu0 %v2316
        %2479 = vmatprep.subr.mxu0 %v2313
        %2480 = vmatpush1.msra.mxu0 %v2312
        %2481 = vmatprep.subr.mxu0 %v2309
        %2482 = vmatpush1.msra.mxu0 %v2308
        %2483 = vmatprep.subr.mxu0 %v2305
        %2484 = vmatpush1.msra.mxu0 %v2304
        %2485 = vmatprep.subr.mxu0 %v2301
        %2486 = vmatpush1.msra.mxu0 %v2300
        %2487 = vmatprep.subr.mxu0 %v2297
        %2488 = vmatpush1.msra.mxu0 %v2296
        %2489 = vmatprep.subr.mxu0 %v2293
        %2490 = vmatpush1.msra.mxu0 %v2292
        %2491 = vmatprep.subr.mxu0 %v2289
        %2492 = vmatpush1.msra.mxu0 %v2288
        %2493 = vmatprep.subr.mxu0 %v2285
        %2494 = vmatpush1.msra.mxu0 %v2284
        %2495 = vmatprep.subr.mxu0 %v2281
        %2496 = vmatpush1.msra.mxu0 %v2280
        %2497 = vmatprep.subr.mxu0 %v2277
        %2498 = vmatpush1.msra.mxu0 %v2276
        %2499 = vmatprep.subr.mxu0 %v2273
        %2500 = vmatpush1.msra.mxu0 %v2272
        %2501 = vmatprep.subr.mxu0 %v2397
        %2502 = vmatpush2.msra.mxu0 %v2396
        %2503 = vmatprep.subr.mxu0 %v2393
        %2504 = vmatpush2.msra.mxu0 %v2392
        %2505 = vmatprep.subr.mxu0 %v2389
        %2506 = vmatpush2.msra.mxu0 %v2388
        %2507 = vmatprep.subr.mxu0 %v2385
        %2508 = vmatpush2.msra.mxu0 %v2384
        %2509 = vmatprep.subr.mxu0 %v2381
        %2510 = vmatpush2.msra.mxu0 %v2380
        %2511 = vmatprep.subr.mxu0 %v2377
        %2512 = vmatpush2.msra.mxu0 %v2376
        %2513 = vmatprep.subr.mxu0 %v2373
        %2514 = vmatpush2.msra.mxu0 %v2372
        %2515 = vmatprep.subr.mxu0 %v2369
        %2516 = vmatpush2.msra.mxu0 %v2368
        %2517 = vmatprep.subr.mxu0 %v2365
        %2518 = vmatpush2.msra.mxu0 %v2364
        %2519 = vmatprep.subr.mxu0 %v2361
        %2520 = vmatpush2.msra.mxu0 %v2360
        %2521 = vmatprep.subr.mxu0 %v2357
        %2522 = vmatpush2.msra.mxu0 %v2356
        %2523 = vmatprep.subr.mxu0 %v2353
        %2524 = vmatpush2.msra.mxu0 %v2352
        %2525 = vmatprep.subr.mxu0 %v2349
        %2526 = vmatpush2.msra.mxu0 %v2348
        %2527 = vmatprep.subr.mxu0 %v2345
        %2528 = vmatpush2.msra.mxu0 %v2344
        %2529 = vmatprep.subr.mxu0 %v2341
        %2530 = vmatpush2.msra.mxu0 %v2340
        %2531 = vmatprep.subr.mxu0 %v2337
        %2532 = vmatpush2.msra.mxu0 %v2336
        %2533 = vmatprep.mubr.f32.mxu0 %v2268
        %2534 = vmatmul.mubr.f32.gmra.mxu0 %v2266
        %v2535 = vpop.f32.mrf.mxu0
        %v2536 = vadd.f32 %v1028, %v2535
        %v2537 = vpop.f32.mrf.mxu0
        %v2538 = vadd.f32 %v1030, %v2537
        %2539 = vdwg.mxu0
        %s2540 = scalar_lea.vmem %s2, 32
        %v2541 = vld [vmem:[%s2540] sm:$0xff]
        %v2542 = vld [vmem:[%s2540 + $0x8] sm:$0xff]
        %s2543 = scalar_lea.vmem %s1, 32
        %v2544 = vld [vmem:[%s2543] sm:$0xff]
        %v2545 = vld [vmem:[%s2543 + $0x8] sm:$0xff]
        %s2546 = scalar_lea.vmem %s3, 16
        %v2547 = vld [vmem:[%s2546] sm:$0xff]
        %s2548 = scalar_lea.vmem %s4, 16
        %v2549 = vld [vmem:[%s2548] sm:$0xff]
        %2551 = vset.pattern.permute.xlu0 0
        %2552 = vperm.xlu0 %2551, %v2541
        %v2553 = vpop.permute.xlu0 %2552
        %2556 = vset.pattern.permute.xlu0 0
        %2557 = vperm.xlu0 %2556, %v2542
        %v2558 = vpop.permute.xlu0 %2557
        %v2561 = vsel %vm464, %v2544, 0
        %v2564 = vsel %vm464, %v2545, 0
        %2566 = vmatprep.subr.mxu0 0.0
        %2567 = vmatpush1.msra.mxu0 0.0
        %2568 = vmatprep.subr.mxu0 0.0
        %2569 = vmatpush1.msra.mxu0 0.0
        %2570 = vmatprep.subr.mxu0 0.0
        %2571 = vmatpush1.msra.mxu0 0.0
        %2572 = vmatprep.subr.mxu0 0.0
        %2573 = vmatpush1.msra.mxu0 0.0
        %2574 = vmatprep.subr.mxu0 0.0
        %2575 = vmatpush1.msra.mxu0 0.0
        %2576 = vmatprep.subr.mxu0 0.0
        %2577 = vmatpush1.msra.mxu0 0.0
        %2578 = vmatprep.subr.mxu0 0.0
        %2579 = vmatpush1.msra.mxu0 0.0
        %2580 = vmatprep.subr.mxu0 0.0
        %2581 = vmatpush1.msra.mxu0 0.0
        %2582 = vmatprep.subr.mxu0 0.0
        %2583 = vmatpush1.msra.mxu0 0.0
        %2584 = vmatprep.subr.mxu0 0.0
        %2585 = vmatpush1.msra.mxu0 0.0
        %2586 = vmatprep.subr.mxu0 0.0
        %2587 = vmatpush1.msra.mxu0 0.0
        %2588 = vmatprep.subr.mxu0 0.0
        %2589 = vmatpush1.msra.mxu0 0.0
        %2590 = vmatprep.subr.mxu0 0.0
        %2591 = vmatpush1.msra.mxu0 0.0
        %2592 = vmatprep.subr.mxu0 0.0
        %2593 = vmatpush1.msra.mxu0 0.0
        %2594 = vmatprep.subr.mxu0 0.0
        %2595 = vmatpush1.msra.mxu0 0.0
        %2596 = vmatprep.subr.mxu0 %v2467
        %2597 = vmatpush1.msra.mxu0 %v2465
        %2598 = vmatprep.subr.mxu0 0.0
        %2599 = vmatpush2.msra.mxu0 0.0
        %2600 = vmatprep.subr.mxu0 0.0
        %2601 = vmatpush2.msra.mxu0 0.0
        %2602 = vmatprep.subr.mxu0 0.0
        %2603 = vmatpush2.msra.mxu0 0.0
        %2604 = vmatprep.subr.mxu0 0.0
        %2605 = vmatpush2.msra.mxu0 0.0
        %2606 = vmatprep.subr.mxu0 0.0
        %2607 = vmatpush2.msra.mxu0 0.0
        %2608 = vmatprep.subr.mxu0 0.0
        %2609 = vmatpush2.msra.mxu0 0.0
        %2610 = vmatprep.subr.mxu0 0.0
        %2611 = vmatpush2.msra.mxu0 0.0
        %2612 = vmatprep.subr.mxu0 0.0
        %2613 = vmatpush2.msra.mxu0 0.0
        %2614 = vmatprep.subr.mxu0 0.0
        %2615 = vmatpush2.msra.mxu0 0.0
        %2616 = vmatprep.subr.mxu0 0.0
        %2617 = vmatpush2.msra.mxu0 0.0
        %2618 = vmatprep.subr.mxu0 0.0
        %2619 = vmatpush2.msra.mxu0 0.0
        %2620 = vmatprep.subr.mxu0 0.0
        %2621 = vmatpush2.msra.mxu0 0.0
        %2622 = vmatprep.subr.mxu0 0.0
        %2623 = vmatpush2.msra.mxu0 0.0
        %2624 = vmatprep.subr.mxu0 0.0
        %2625 = vmatpush2.msra.mxu0 0.0
        %2626 = vmatprep.subr.mxu0 0.0
        %2627 = vmatpush2.msra.mxu0 0.0
        %2628 = vmatprep.subr.mxu0 0.0
        %2629 = vmatpush2.msra.mxu0 0.0
        %2630 = vmatprep.mubr.f32.mxu0 0.0
        %2631 = vmatmul.mubr.f32.gmra.mxu0 %v2561
        %v2632 = vpop.f32.mrf.mxu0
        %v2633 = vadd.f32 %v2553, %v2632
        %v2634 = vpop.f32.mrf.mxu0
        %v2635 = vadd.f32 %v2553, %v2634
        %2636 = vmatprep.mubr.f32.mxu0 0.0
        %2637 = vmatmul.mubr.f32.gmra.mxu0 %v2564
        %v2638 = vpop.f32.mrf.mxu0
        %v2639 = vadd.f32 %v2558, %v2638
        %v2640 = vpop.f32.mrf.mxu0
        %v2641 = vadd.f32 %v2558, %v2640
        %2642 = vdwg.mxu0
        %2643 = vmatprep.subr.mxu0 0.0
        %2644 = vmatpush1.msra.mxu0 0.0
        %2645 = vmatprep.subr.mxu0 0.0
        %2646 = vmatpush1.msra.mxu0 0.0
        %2647 = vmatprep.subr.mxu0 0.0
        %2648 = vmatpush1.msra.mxu0 0.0
        %2649 = vmatprep.subr.mxu0 0.0
        %2650 = vmatpush1.msra.mxu0 0.0
        %2651 = vmatprep.subr.mxu0 0.0
        %2652 = vmatpush1.msra.mxu0 0.0
        %2653 = vmatprep.subr.mxu0 0.0
        %2654 = vmatpush1.msra.mxu0 0.0
        %2655 = vmatprep.subr.mxu0 0.0
        %2656 = vmatpush1.msra.mxu0 0.0
        %2657 = vmatprep.subr.mxu0 0.0
        %2658 = vmatpush1.msra.mxu0 0.0
        %2659 = vmatprep.subr.mxu0 0.0
        %2660 = vmatpush1.msra.mxu0 0.0
        %2661 = vmatprep.subr.mxu0 0.0
        %2662 = vmatpush1.msra.mxu0 0.0
        %2663 = vmatprep.subr.mxu0 0.0
        %2664 = vmatpush1.msra.mxu0 0.0
        %2665 = vmatprep.subr.mxu0 0.0
        %2666 = vmatpush1.msra.mxu0 0.0
        %2667 = vmatprep.subr.mxu0 0.0
        %2668 = vmatpush1.msra.mxu0 0.0
        %2669 = vmatprep.subr.mxu0 0.0
        %2670 = vmatpush1.msra.mxu0 0.0
        %2671 = vmatprep.subr.mxu0 0.0
        %2672 = vmatpush1.msra.mxu0 0.0
        %2673 = vmatprep.subr.mxu0 %v2538
        %2674 = vmatpush1.msra.mxu0 %v2536
        %2675 = vmatprep.subr.mxu0 0.0
        %2676 = vmatpush2.msra.mxu0 0.0
        %2677 = vmatprep.subr.mxu0 0.0
        %2678 = vmatpush2.msra.mxu0 0.0
        %2679 = vmatprep.subr.mxu0 0.0
        %2680 = vmatpush2.msra.mxu0 0.0
        %2681 = vmatprep.subr.mxu0 0.0
        %2682 = vmatpush2.msra.mxu0 0.0
        %2683 = vmatprep.subr.mxu0 0.0
        %2684 = vmatpush2.msra.mxu0 0.0
        %2685 = vmatprep.subr.mxu0 0.0
        %2686 = vmatpush2.msra.mxu0 0.0
        %2687 = vmatprep.subr.mxu0 0.0
        %2688 = vmatpush2.msra.mxu0 0.0
        %2689 = vmatprep.subr.mxu0 0.0
        %2690 = vmatpush2.msra.mxu0 0.0
        %2691 = vmatprep.subr.mxu0 0.0
        %2692 = vmatpush2.msra.mxu0 0.0
        %2693 = vmatprep.subr.mxu0 0.0
        %2694 = vmatpush2.msra.mxu0 0.0
        %2695 = vmatprep.subr.mxu0 0.0
        %2696 = vmatpush2.msra.mxu0 0.0
        %2697 = vmatprep.subr.mxu0 0.0
        %2698 = vmatpush2.msra.mxu0 0.0
        %2699 = vmatprep.subr.mxu0 0.0
        %2700 = vmatpush2.msra.mxu0 0.0
        %2701 = vmatprep.subr.mxu0 0.0
        %2702 = vmatpush2.msra.mxu0 0.0
        %2703 = vmatprep.subr.mxu0 0.0
        %2704 = vmatpush2.msra.mxu0 0.0
        %2705 = vmatprep.subr.mxu0 0.0
        %2706 = vmatpush2.msra.mxu0 0.0
        %2707 = vmatprep.mubr.f32.mxu0 0.0
        %2708 = vmatmul.mubr.f32.gmra.mxu0 %v2561
        %v2709 = vpop.f32.mrf.mxu0
        %v2710 = vadd.f32 %v2553, %v2709
        %v2711 = vpop.f32.mrf.mxu0
        %v2712 = vadd.f32 %v2553, %v2711
        %2713 = vmatprep.mubr.f32.mxu0 0.0
        %2714 = vmatmul.mubr.f32.gmra.mxu0 %v2564
        %v2715 = vpop.f32.mrf.mxu0
        %v2716 = vadd.f32 %v2558, %v2715
        %v2717 = vpop.f32.mrf.mxu0
        %v2718 = vadd.f32 %v2558, %v2717
        %2719 = vdwg.mxu0
        %v2720 = vadd.f32 %v2633, %v2635
        %v2721 = vadd.f32 %v2720, %v2710
        %v2722 = vadd.f32 %v2721, %v2712
        %v2723 = vadd.f32 %v2722, %v2639
        %v2724 = vadd.f32 %v2723, %v2641
        %v2725 = vadd.f32 %v2724, %v2716
        %v2726 = vadd.f32 %v2725, %v2718
        %2727 = vadd.xlane.f32.xlu0 %v2726
        %v2728 = vpop.xlane.xlu0 %2727
        %v2729 = vrot.slane %v2728, 4
        %v2730 = vadd.f32 %v2728, %v2729
        %v2731 = vrot.slane %v2730, 2
        %v2732 = vadd.f32 %v2730, %v2731
        %v2733 = vrot.slane %v2732, 1
        %v2734 = vadd.f32 %v2732, %v2733
        %s2735 = vtos %v2734
        %s2736 = smul.f32 %s2735, 0.00012207031
        %v2737 = vmul.f32 %v2633, %v2633
        %v2738 = vmul.f32 %v2635, %v2635
        %v2739 = vmul.f32 %v2710, %v2710
        %v2740 = vmul.f32 %v2712, %v2712
        %v2741 = vmul.f32 %v2639, %v2639
        %v2742 = vmul.f32 %v2641, %v2641
        %v2743 = vmul.f32 %v2716, %v2716
        %v2744 = vmul.f32 %v2718, %v2718
        %v2745 = vadd.f32 %v2737, %v2738
        %v2746 = vadd.f32 %v2745, %v2739
        %v2747 = vadd.f32 %v2746, %v2740
        %v2748 = vadd.f32 %v2747, %v2741
        %v2749 = vadd.f32 %v2748, %v2742
        %v2750 = vadd.f32 %v2749, %v2743
        %v2751 = vadd.f32 %v2750, %v2744
        %2752 = vadd.xlane.f32.xlu0 %v2751
        %v2753 = vpop.xlane.xlu0 %2752
        %v2754 = vrot.slane %v2753, 4
        %v2755 = vadd.f32 %v2753, %v2754
        %v2756 = vrot.slane %v2755, 2
        %v2757 = vadd.f32 %v2755, %v2756
        %v2758 = vrot.slane %v2757, 1
        %v2759 = vadd.f32 %v2757, %v2758
        %s2760 = vtos %v2759
        %s2761 = smul.f32 %s2760, 0.00012207031
        %s2762 = smul.f32 %s2736, %s2736
        %s2763 = ssub.f32 %s2761, %s2762
        %v2764 = vstv %s2736
        %v2765 = vsub.f32 %v2633, %v2764
        %v2766 = vsub.f32 %v2635, %v2764
        %v2767 = vsub.f32 %v2710, %v2764
        %v2768 = vsub.f32 %v2712, %v2764
        %v2769 = vsub.f32 %v2639, %v2764
        %v2770 = vsub.f32 %v2641, %v2764
        %v2771 = vsub.f32 %v2716, %v2764
        %v2772 = vsub.f32 %v2718, %v2764
        %s2773 = sadd.f32 %s2763, 1e-05
        %v2774 = vstv %s2773
        %v2775 = vrsqrt.pop %v2774
        %s2776 = vtos %v2775
        %v2777 = vstv %s2776
        %v2778 = vmul.f32 %v2777, %v2541
        %v2779 = vmul.f32 %v2777, %v2542
        %2781 = vset.pattern.permute.xlu0 1
        %2782 = vperm.xlu0 %2781, %v2778
        %v2783 = vpop.permute.xlu0 %2782
        %2786 = vset.pattern.permute.xlu0 1
        %2787 = vperm.xlu0 %2786, %v2779
        %v2788 = vpop.permute.xlu0 %2787
        %v2790 = vmul.f32 %v2765, %v2783
        %v2791 = vmul.f32 %v2766, %v2783
        %v2792 = vmul.f32 %v2767, %v2783
        %v2793 = vmul.f32 %v2768, %v2783
        %v2794 = vmul.f32 %v2769, %v2788
        %v2795 = vmul.f32 %v2770, %v2788
        %v2796 = vmul.f32 %v2771, %v2788
        %v2797 = vmul.f32 %v2772, %v2788
        %2798 = vset.pattern.permute.xlu0 2
        %2799 = vperm.xlu0 %2798, %v2541
        %v2800 = vpop.permute.xlu0 %2799
        %2802 = vset.pattern.permute.xlu0 2
        %2803 = vperm.xlu0 %2802, %v2542
        %v2804 = vpop.permute.xlu0 %2803
        %v2806 = vadd.f32 %v2790, %v2800
        %v2807 = vadd.f32 %v2791, %v2800
        %v2808 = vadd.f32 %v2792, %v2800
        %v2809 = vadd.f32 %v2793, %v2800
        %v2810 = vadd.f32 %v2794, %v2804
        %v2811 = vadd.f32 %v2795, %v2804
        %v2812 = vadd.f32 %v2796, %v2804
        %v2813 = vadd.f32 %v2797, %v2804
        %v2814 = vxor.u32 %v2806, 2147483648
        %v2815 = vxor.u32 %v2807, 2147483648
        %v2816 = vxor.u32 %v2808, 2147483648
        %v2817 = vxor.u32 %v2809, 2147483648
        %v2818 = vxor.u32 %v2810, 2147483648
        %v2819 = vxor.u32 %v2811, 2147483648
        %v2820 = vxor.u32 %v2812, 2147483648
        %v2821 = vxor.u32 %v2813, 2147483648
        %v2822 = vmul.f32 %v2814, 1.442695
        %v2823 = vpow.pop %v2822
        %v2824 = vmul.f32 %v2815, 1.442695
        %v2825 = vpow.pop %v2824
        %v2826 = vmul.f32 %v2816, 1.442695
        %v2827 = vpow.pop %v2826
        %v2828 = vmul.f32 %v2817, 1.442695
        %v2829 = vpow.pop %v2828
        %v2830 = vmul.f32 %v2818, 1.442695
        %v2831 = vpow.pop %v2830
        %v2832 = vmul.f32 %v2819, 1.442695
        %v2833 = vpow.pop %v2832
        %v2834 = vmul.f32 %v2820, 1.442695
        %v2835 = vpow.pop %v2834
        %v2836 = vmul.f32 %v2821, 1.442695
        %v2837 = vpow.pop %v2836
        %v2838 = vadd.f32 %v2823, 1.0
        %v2839 = vadd.f32 %v2825, 1.0
        %v2840 = vadd.f32 %v2827, 1.0
        %v2841 = vadd.f32 %v2829, 1.0
        %v2842 = vadd.f32 %v2831, 1.0
        %v2843 = vadd.f32 %v2833, 1.0
        %v2844 = vadd.f32 %v2835, 1.0
        %v2845 = vadd.f32 %v2837, 1.0
        %v2846 = vrcp.pop %v2838
        %v2847 = vmul.f32 1.0, %v2846
        %v2848 = vrcp.pop %v2839
        %v2849 = vmul.f32 1.0, %v2848
        %v2850 = vrcp.pop %v2840
        %v2851 = vmul.f32 1.0, %v2850
        %v2852 = vrcp.pop %v2841
        %v2853 = vmul.f32 1.0, %v2852
        %v2854 = vrcp.pop %v2842
        %v2855 = vmul.f32 1.0, %v2854
        %v2856 = vrcp.pop %v2843
        %v2857 = vmul.f32 1.0, %v2856
        %v2858 = vrcp.pop %v2844
        %v2859 = vmul.f32 1.0, %v2858
        %v2860 = vrcp.pop %v2845
        %v2861 = vmul.f32 1.0, %v2860
        %v2862 = vmul.f32 %v2806, %v2847
        %v2863 = vmul.f32 %v2807, %v2849
        %v2864 = vmul.f32 %v2808, %v2851
        %v2865 = vmul.f32 %v2809, %v2853
        %v2866 = vmul.f32 %v2810, %v2855
        %v2867 = vmul.f32 %v2811, %v2857
        %v2868 = vmul.f32 %v2812, %v2859
        %v2869 = vmul.f32 %v2813, %v2861
        %2870 = vrot.lane.b32.xlu0 %v2862, 1
        %v2871 = vpop.permute.xlu0 %2870
        %2872 = vrot.lane.b32.xlu0 %v2866, 1
        %v2873 = vpop.permute.xlu0 %2872
        %2874 = vrot.lane.b32.xlu0 %v2863, 1
        %v2875 = vpop.permute.xlu0 %2874
        %2876 = vrot.lane.b32.xlu0 %v2867, 1
        %v2877 = vpop.permute.xlu0 %2876
        %2878 = vrot.lane.b32.xlu0 %v2864, 1
        %v2879 = vpop.permute.xlu0 %2878
        %2880 = vrot.lane.b32.xlu0 %v2868, 1
        %v2881 = vpop.permute.xlu0 %2880
        %2882 = vrot.lane.b32.xlu0 %v2865, 1
        %v2883 = vpop.permute.xlu0 %2882
        %2884 = vrot.lane.b32.xlu0 %v2869, 1
        %v2885 = vpop.permute.xlu0 %2884
        %v2886 = vsel %vm791, %v2879, %v2883
        %v2887 = vsel %vm791, %v2881, %v2885
        %v2888 = vsel %vm791, %v2875, %v2879
        %v2889 = vsel %vm791, %v2877, %v2881
        %v2890 = vsel %vm791, %v2871, %v2875
        %v2891 = vsel %vm791, %v2873, %v2877
        %v2892 = vsel %vm791, %v2883, %v2871
        %v2893 = vsel %vm791, %v2885, %v2873
        %v2894 = vmul.f32 %v2892, %v438
        %v2895 = vmul.f32 %v2890, %v439
        %v2896 = vmul.f32 %v2888, %v440
        %v2897 = vmul.f32 %v2886, %v441
        %v2898 = vmul.f32 %v2893, %v438
        %v2899 = vmul.f32 %v2891, %v439
        %v2900 = vmul.f32 %v2889, %v440
        %v2901 = vmul.f32 %v2887, %v441
        %2902 = vrot.lane.b32.xlu0 %v2862, 127
        %v2903 = vpop.permute.xlu0 %2902
        %2904 = vrot.lane.b32.xlu0 %v2866, 127
        %v2905 = vpop.permute.xlu0 %2904
        %2906 = vrot.lane.b32.xlu0 %v2863, 127
        %v2907 = vpop.permute.xlu0 %2906
        %2908 = vrot.lane.b32.xlu0 %v2867, 127
        %v2909 = vpop.permute.xlu0 %2908
        %2910 = vrot.lane.b32.xlu0 %v2864, 127
        %v2911 = vpop.permute.xlu0 %2910
        %2912 = vrot.lane.b32.xlu0 %v2868, 127
        %v2913 = vpop.permute.xlu0 %2912
        %2914 = vrot.lane.b32.xlu0 %v2865, 127
        %v2915 = vpop.permute.xlu0 %2914
        %2916 = vrot.lane.b32.xlu0 %v2869, 127
        %v2917 = vpop.permute.xlu0 %2916
        %v2918 = vsel %vm824, %v2911, %v2915
        %v2919 = vsel %vm824, %v2913, %v2917
        %v2920 = vsel %vm824, %v2907, %v2911
        %v2921 = vsel %vm824, %v2909, %v2913
        %v2922 = vsel %vm824, %v2903, %v2907
        %v2923 = vsel %vm824, %v2905, %v2909
        %v2924 = vsel %vm824, %v2915, %v2903
        %v2925 = vsel %vm824, %v2917, %v2905
        %v2926 = vmul.f32 %v2922, %v450
        %v2927 = vmul.f32 %v2920, %v451
        %v2928 = vmul.f32 %v2918, %v452
        %v2929 = vmul.f32 %v2924, %v453
        %v2930 = vmul.f32 %v2923, %v450
        %v2931 = vmul.f32 %v2921, %v451
        %v2932 = vmul.f32 %v2919, %v452
        %v2933 = vmul.f32 %v2925, %v453
        %v2934 = vmul.f32 %v2894, 0.25
        %v2935 = vmul.f32 %v2895, 0.25
        %v2936 = vmul.f32 %v2896, 0.25
        %v2937 = vmul.f32 %v2897, 0.25
        %v2938 = vmul.f32 %v2898, 0.25
        %v2939 = vmul.f32 %v2899, 0.25
        %v2940 = vmul.f32 %v2900, 0.25
        %v2941 = vmul.f32 %v2901, 0.25
        %v2942 = vmul.f32 %v2862, 0.5
        %v2943 = vmul.f32 %v2863, 0.5
        %v2944 = vmul.f32 %v2864, 0.5
        %v2945 = vmul.f32 %v2865, 0.5
        %v2946 = vmul.f32 %v2866, 0.5
        %v2947 = vmul.f32 %v2867, 0.5
        %v2948 = vmul.f32 %v2868, 0.5
        %v2949 = vmul.f32 %v2869, 0.5
        %v2950 = vadd.f32 %v2934, %v2942
        %v2951 = vadd.f32 %v2935, %v2943
        %v2952 = vadd.f32 %v2936, %v2944
        %v2953 = vadd.f32 %v2937, %v2945
        %v2954 = vadd.f32 %v2938, %v2946
        %v2955 = vadd.f32 %v2939, %v2947
        %v2956 = vadd.f32 %v2940, %v2948
        %v2957 = vadd.f32 %v2941, %v2949
        %v2958 = vmul.f32 %v2926, 0.25
        %v2959 = vmul.f32 %v2927, 0.25
        %v2960 = vmul.f32 %v2928, 0.25
        %v2961 = vmul.f32 %v2929, 0.25
        %v2962 = vmul.f32 %v2930, 0.25
        %v2963 = vmul.f32 %v2931, 0.25
        %v2964 = vmul.f32 %v2932, 0.25
        %v2965 = vmul.f32 %v2933, 0.25
        %v2966 = vadd.f32 %v2950, %v2958
        %v2967 = vadd.f32 %v2951, %v2959
        %v2968 = vadd.f32 %v2952, %v2960
        %v2969 = vadd.f32 %v2953, %v2961
        %v2970 = vadd.f32 %v2954, %v2962
        %v2971 = vadd.f32 %v2955, %v2963
        %v2972 = vadd.f32 %v2956, %v2964
        %v2973 = vadd.f32 %v2957, %v2965
        %2975 = vset.pattern.permute.xlu0 0
        %2976 = vperm.xlu0 %2975, %v2549
        %v2977 = vpop.permute.xlu0 %2976
        %v2980 = vsel %vm886, %v2547, 0
        %2982 = vmatprep.subr.mxu0 0.0
        %2983 = vmatpush1.msra.mxu0 0.0
        %2984 = vmatprep.subr.mxu0 0.0
        %2985 = vmatpush1.msra.mxu0 0.0
        %2986 = vmatprep.subr.mxu0 0.0
        %2987 = vmatpush1.msra.mxu0 0.0
        %2988 = vmatprep.subr.mxu0 0.0
        %2989 = vmatpush1.msra.mxu0 0.0
        %2990 = vmatprep.subr.mxu0 0.0
        %2991 = vmatpush1.msra.mxu0 0.0
        %2992 = vmatprep.subr.mxu0 0.0
        %2993 = vmatpush1.msra.mxu0 0.0
        %2994 = vmatprep.subr.mxu0 0.0
        %2995 = vmatpush1.msra.mxu0 0.0
        %2996 = vmatprep.subr.mxu0 0.0
        %2997 = vmatpush1.msra.mxu0 0.0
        %2998 = vmatprep.subr.mxu0 0.0
        %2999 = vmatpush1.msra.mxu0 0.0
        %3000 = vmatprep.subr.mxu0 0.0
        %3001 = vmatpush1.msra.mxu0 0.0
        %3002 = vmatprep.subr.mxu0 0.0
        %3003 = vmatpush1.msra.mxu0 0.0
        %3004 = vmatprep.subr.mxu0 0.0
        %3005 = vmatpush1.msra.mxu0 0.0
        %3006 = vmatprep.subr.mxu0 0.0
        %3007 = vmatpush1.msra.mxu0 0.0
        %3008 = vmatprep.subr.mxu0 0.0
        %3009 = vmatpush1.msra.mxu0 0.0
        %3010 = vmatprep.subr.mxu0 %v2971
        %3011 = vmatpush1.msra.mxu0 %v2970
        %3012 = vmatprep.subr.mxu0 %v2967
        %3013 = vmatpush1.msra.mxu0 %v2966
        %3014 = vmatprep.subr.mxu0 0.0
        %3015 = vmatpush2.msra.mxu0 0.0
        %3016 = vmatprep.subr.mxu0 0.0
        %3017 = vmatpush2.msra.mxu0 0.0
        %3018 = vmatprep.subr.mxu0 0.0
        %3019 = vmatpush2.msra.mxu0 0.0
        %3020 = vmatprep.subr.mxu0 0.0
        %3021 = vmatpush2.msra.mxu0 0.0
        %3022 = vmatprep.subr.mxu0 0.0
        %3023 = vmatpush2.msra.mxu0 0.0
        %3024 = vmatprep.subr.mxu0 0.0
        %3025 = vmatpush2.msra.mxu0 0.0
        %3026 = vmatprep.subr.mxu0 0.0
        %3027 = vmatpush2.msra.mxu0 0.0
        %3028 = vmatprep.subr.mxu0 0.0
        %3029 = vmatpush2.msra.mxu0 0.0
        %3030 = vmatprep.subr.mxu0 0.0
        %3031 = vmatpush2.msra.mxu0 0.0
        %3032 = vmatprep.subr.mxu0 0.0
        %3033 = vmatpush2.msra.mxu0 0.0
        %3034 = vmatprep.subr.mxu0 0.0
        %3035 = vmatpush2.msra.mxu0 0.0
        %3036 = vmatprep.subr.mxu0 0.0
        %3037 = vmatpush2.msra.mxu0 0.0
        %3038 = vmatprep.subr.mxu0 0.0
        %3039 = vmatpush2.msra.mxu0 0.0
        %3040 = vmatprep.subr.mxu0 0.0
        %3041 = vmatpush2.msra.mxu0 0.0
        %3042 = vmatprep.subr.mxu0 0.0
        %3043 = vmatpush2.msra.mxu0 0.0
        %3044 = vmatprep.subr.mxu0 0.0
        %3045 = vmatpush2.msra.mxu0 0.0
        %3046 = vmatprep.mubr.f32.mxu0 0.0
        %3047 = vmatmul.mubr.f32.gmra.mxu0 %v2980
        %v3048 = vpop.f32.mrf.mxu0
        %v3049 = vadd.f32 %v2977, %v3048
        %v3050 = vpop.f32.mrf.mxu0
        %v3051 = vadd.f32 %v2977, %v3050
        %3052 = vdwg.mxu0
        %3053 = vmatprep.subr.mxu0 0.0
        %3054 = vmatpush1.msra.mxu0 0.0
        %3055 = vmatprep.subr.mxu0 0.0
        %3056 = vmatpush1.msra.mxu0 0.0
        %3057 = vmatprep.subr.mxu0 0.0
        %3058 = vmatpush1.msra.mxu0 0.0
        %3059 = vmatprep.subr.mxu0 0.0
        %3060 = vmatpush1.msra.mxu0 0.0
        %3061 = vmatprep.subr.mxu0 0.0
        %3062 = vmatpush1.msra.mxu0 0.0
        %3063 = vmatprep.subr.mxu0 0.0
        %3064 = vmatpush1.msra.mxu0 0.0
        %3065 = vmatprep.subr.mxu0 0.0
        %3066 = vmatpush1.msra.mxu0 0.0
        %3067 = vmatprep.subr.mxu0 0.0
        %3068 = vmatpush1.msra.mxu0 0.0
        %3069 = vmatprep.subr.mxu0 0.0
        %3070 = vmatpush1.msra.mxu0 0.0
        %3071 = vmatprep.subr.mxu0 0.0
        %3072 = vmatpush1.msra.mxu0 0.0
        %3073 = vmatprep.subr.mxu0 0.0
        %3074 = vmatpush1.msra.mxu0 0.0
        %3075 = vmatprep.subr.mxu0 0.0
        %3076 = vmatpush1.msra.mxu0 0.0
        %3077 = vmatprep.subr.mxu0 0.0
        %3078 = vmatpush1.msra.mxu0 0.0
        %3079 = vmatprep.subr.mxu0 0.0
        %3080 = vmatpush1.msra.mxu0 0.0
        %3081 = vmatprep.subr.mxu0 %v2973
        %3082 = vmatpush1.msra.mxu0 %v2972
        %3083 = vmatprep.subr.mxu0 %v2969
        %3084 = vmatpush1.msra.mxu0 %v2968
        %3085 = vmatprep.subr.mxu0 0.0
        %3086 = vmatpush2.msra.mxu0 0.0
        %3087 = vmatprep.subr.mxu0 0.0
        %3088 = vmatpush2.msra.mxu0 0.0
        %3089 = vmatprep.subr.mxu0 0.0
        %3090 = vmatpush2.msra.mxu0 0.0
        %3091 = vmatprep.subr.mxu0 0.0
        %3092 = vmatpush2.msra.mxu0 0.0
        %3093 = vmatprep.subr.mxu0 0.0
        %3094 = vmatpush2.msra.mxu0 0.0
        %3095 = vmatprep.subr.mxu0 0.0
        %3096 = vmatpush2.msra.mxu0 0.0
        %3097 = vmatprep.subr.mxu0 0.0
        %3098 = vmatpush2.msra.mxu0 0.0
        %3099 = vmatprep.subr.mxu0 0.0
        %3100 = vmatpush2.msra.mxu0 0.0
        %3101 = vmatprep.subr.mxu0 0.0
        %3102 = vmatpush2.msra.mxu0 0.0
        %3103 = vmatprep.subr.mxu0 0.0
        %3104 = vmatpush2.msra.mxu0 0.0
        %3105 = vmatprep.subr.mxu0 0.0
        %3106 = vmatpush2.msra.mxu0 0.0
        %3107 = vmatprep.subr.mxu0 0.0
        %3108 = vmatpush2.msra.mxu0 0.0
        %3109 = vmatprep.subr.mxu0 0.0
        %3110 = vmatpush2.msra.mxu0 0.0
        %3111 = vmatprep.subr.mxu0 0.0
        %3112 = vmatpush2.msra.mxu0 0.0
        %3113 = vmatprep.subr.mxu0 0.0
        %3114 = vmatpush2.msra.mxu0 0.0
        %3115 = vmatprep.subr.mxu0 0.0
        %3116 = vmatpush2.msra.mxu0 0.0
        %3117 = vmatprep.mubr.f32.mxu0 0.0
        %3118 = vmatmul.mubr.f32.gmra.mxu0 %v2980
        %v3119 = vpop.f32.mrf.mxu0
        %v3120 = vadd.f32 %v2977, %v3119
        %v3121 = vpop.f32.mrf.mxu0
        %v3122 = vadd.f32 %v2977, %v3121
        %3123 = vdwg.mxu0
        %3124 = vst [vmem:[%s409] sm:$0xff] %v3049
        %3125 = vst [vmem:[%s409 + $0x8] sm:$0xff] %v3051
        %3126 = vst [vmem:[%s409 + $0x10] sm:$0xff] %v3120
        %3127 = vst [vmem:[%s409 + $0x18] sm:$0xff] %v3122
        %s3128 = sand.u32 %s271, 1
        %s3129 = scalar_lea.sflag [#allocation4], %s3128
        %s3130 = sand.u32 %s271, 1
        %s3131 = smul.addr %s3130, 32
        %s3132 = scalar_lea.vmem [#allocation7], %s3131
        // Predicated region
        $region73: #{unet_forward.1} parent=63 // pred_check
          %p3133 = pneg %p281
        $region74: #{unet_forward.1} parent=63 // pred_check_branch
          %3135 = sbr.rel (%p3133) target = $region76
        $region75: #{unet_forward.1} parent=63 // pred_region
          %s3137 = ssub.s32 512, 512
          %3138 = vsyncadd %s3129, %s3137
          %s3139 = smul.addr %s27, 4
          %s3140 = smul.addr %s3139, 128
          %s3141 = scalar_lea.hbm %s11, %s3140
          %s3143 = sshll.u32 %s3132, 4
          %s3144 = int_to_ptr.vmem [resolvable:$true] %s3143
          %3146 = dma.vmem_to_hbm [thread:$0]  %s3144, 512, %s3141, %s3129
        $region76: #{unet_forward.1} parent=63 // pred_fallthru
          _
      $region64: #{unet_forward.1} parent=5 // pred_fallthru
        _
      %p3147 = scmp.le.s32.totalorder 2, %s22
      // Predicated region
      $region77: #{unet_forward.1} parent=5 // pred_check
        %p3148 = pneg %p3147
      $region78: #{unet_forward.1} parent=5 // pred_check_branch
        %3150 = sbr.rel (%p3148) target = $region80
      $region79: #{unet_forward.1} parent=5 // pred_region
        %s3151 = ssub.s32 %s22, 2
        // Predicated region
        $region81: #{unet_forward.1} parent=79 // pred_check
          %p3152 = pneg %p287
        $region82: #{unet_forward.1} parent=79 // pred_check_branch
          %3154 = sbr.rel (%p3152) target = $region84
        $region83: #{unet_forward.1} parent=79 // pred_region
          %s3155 = sand.u32 %s272, 1
          %s3156 = scalar_lea.sflag [#allocation4], %s3155
          %s3157 = sand.u32 %s272, 1
          %s3158 = smul.addr %s3157, 32
          %s3159 = scalar_lea.vmem [#allocation7], %s3158
          %3160 = dma.done %s3156, 512
        $region84: #{unet_forward.1} parent=79 // pred_fallthru
          _
      $region80: #{unet_forward.1} parent=5 // pred_fallthru
        _
    $region6: #{unet_forward.1} parent=1 // loop_footer
      %s26 = sadd.s32 1, %s22
    $region7: #{unet_forward.1} parent=1 // loop_footer_branch
      %21 = sbr.rel target = $region3
    $region8: #{unet_forward.1} parent=1 // loop_exit
      _
    %3161 = vsyncpa [#allocation3], 1
    %s3162 = scalar_lea.sflag [#allocation3], 1
    %3163 = vsyncpa %s3162, 1
    %3164 = vsyncpa [#allocation6], 1
    %3165 = vsyncpa [#allocation4], 1
    %s3166 = scalar_lea.sflag [#allocation4], 1
    %3167 = vsyncpa %s3166, 1

</llo_original>
